<compile_context>
chip_gen: v6e
topology: v6e:2x2x1
jax: 0.10.0
libtpu: 0.0.40
codegen_flags: <defaults>
</compile_context>

<pallas_src>
import functools
import math

import jax
import jax.numpy as jnp
from jax.experimental import pallas as pl
from jax.experimental.pallas import tpu as pltpu

# ----------------------------------------------------------------------------
# Small deterministic config (mirrors DeepSeekMiniConfig structure, scaled down)
# ----------------------------------------------------------------------------
CFG = dict(
    vocab_size=256,
    dim=128,
    n_layers=2,
    n_dense_layers=1,
    n_heads=2,
    qk_nope_head_dim=32,
    qk_rope_head_dim=16,
    v_head_dim=32,
    kv_lora_rank=64,
    inter_dim=256,
    moe_inter_dim=64,
    n_routed_experts=4,
    n_shared_experts=1,
    n_activated_experts=2,
    rope_theta=10000.0,
    eps=1e-6,
    route_scale=1.0,
)

VMEM_LIMIT = 48 * 1024 * 1024  # leave headroom under v7x's 64 MiB physical VMEM


def _pick(dim, target, align):
    """Largest legal tile <= target that divides dim (full dim if small / no divisor)."""
    if dim <= target:
        return dim
    t = (target // align) * align
    while t >= align:
        if dim % t == 0:
            return t
        t -= align
    return dim


# ----------------------------------------------------------------------------
# Tiled matmul (bf16 operands, f32 accumulator)
# ----------------------------------------------------------------------------
def _matmul_kernel(x_ref, w_ref, o_ref, acc_ref):
    k = pl.program_id(2)

    @pl.when(k == 0)
    def _():
        acc_ref[...] = jnp.zeros_like(acc_ref)

    acc_ref[...] += jnp.dot(x_ref[...].astype(jnp.bfloat16),
                            w_ref[...].astype(jnp.bfloat16),
                            preferred_element_type=jnp.float32)

    @pl.when(k == pl.num_programs(2) - 1)
    def _():
        o_ref[...] = acc_ref[...].astype(o_ref.dtype)


def matmul(x, w):
    M, K = x.shape
    K2, N = w.shape
    assert K == K2
    tm = _pick(M, 256, 8)
    tn = _pick(N, 512, 128)
    tk = _pick(K, 512, 128)
    return pl.pallas_call(
        _matmul_kernel,
        out_shape=jax.ShapeDtypeStruct((M, N), jnp.float32),
        grid=(M // tm, N // tn, K // tk),
        in_specs=[pl.BlockSpec((tm, tk), lambda i, j, k: (i, k)),
                  pl.BlockSpec((tk, tn), lambda i, j, k: (k, j))],
        out_specs=pl.BlockSpec((tm, tn), lambda i, j, k: (i, j)),
        scratch_shapes=[pltpu.VMEM((tm, tn), jnp.float32)],
        compiler_params=pltpu.CompilerParams(
            dimension_semantics=("parallel", "parallel", "arbitrary"),
            vmem_limit_bytes=VMEM_LIMIT),
    )(x, w)


# ----------------------------------------------------------------------------
# Fused RMSNorm + matmul (norm over full feature row, tiled over M and N)
# ----------------------------------------------------------------------------
def _norm_matmul_kernel(x_ref, g_ref, w_ref, o_ref, *, eps):
    x = x_ref[...].astype(jnp.float32)
    var = jnp.mean(x * x, axis=-1, keepdims=True)
    xn = (x * jax.lax.rsqrt(var + eps) * g_ref[...]).astype(jnp.bfloat16)
    o_ref[...] = jnp.dot(xn, w_ref[...].astype(jnp.bfloat16),
                         preferred_element_type=jnp.float32).astype(o_ref.dtype)


def norm_matmul(x, norm_g, w, eps):
    M, D = x.shape
    N = w.shape[1]
    tm = _pick(M, 256, 8)
    tn = _pick(N, 512, 128)
    return pl.pallas_call(
        functools.partial(_norm_matmul_kernel, eps=eps),
        out_shape=jax.ShapeDtypeStruct((M, N), jnp.float32),
        grid=(M // tm, N // tn),
        in_specs=[pl.BlockSpec((tm, D), lambda i, j: (i, 0)),
                  pl.BlockSpec((1, D), lambda i, j: (0, 0)),
                  pl.BlockSpec((D, tn), lambda i, j: (0, j))],
        out_specs=pl.BlockSpec((tm, tn), lambda i, j: (i, j)),
        compiler_params=pltpu.CompilerParams(
            dimension_semantics=("parallel", "parallel"),
            vmem_limit_bytes=VMEM_LIMIT),
    )(x, norm_g, w)


# ----------------------------------------------------------------------------
# Standalone RMSNorm (only used where the normed activation feeds several kernels)
# ----------------------------------------------------------------------------
def _rmsnorm_kernel(x_ref, g_ref, o_ref, *, eps):
    x = x_ref[...].astype(jnp.float32)
    var = jnp.mean(x * x, axis=-1, keepdims=True)
    o_ref[...] = (x * jax.lax.rsqrt(var + eps) * g_ref[...]).astype(o_ref.dtype)


def rmsnorm(x, norm_g, eps):
    M, D = x.shape
    tm = _pick(M, 256, 8)
    return pl.pallas_call(
        functools.partial(_rmsnorm_kernel, eps=eps),
        out_shape=jax.ShapeDtypeStruct((M, D), jnp.float32),
        grid=(M // tm,),
        in_specs=[pl.BlockSpec((tm, D), lambda i: (i, 0)),
                  pl.BlockSpec((1, D), lambda i: (0, 0))],
        out_specs=pl.BlockSpec((tm, D), lambda i: (i, 0)),
        compiler_params=pltpu.CompilerParams(
            dimension_semantics=("parallel",),
            vmem_limit_bytes=VMEM_LIMIT),
    )(x, norm_g)


# ----------------------------------------------------------------------------
# Fused (optional RMSNorm) + SwiGLU MLP, tiled over tokens and the hidden dim F
# ----------------------------------------------------------------------------
def _swiglu_kernel(x_ref, g_ref, w1_ref, w3_ref, w2_ref, o_ref, xn_ref, acc_ref,
                   *, eps, apply_norm):
    f = pl.program_id(1)

    @pl.when(f == 0)
    def _():
        x = x_ref[...].astype(jnp.float32)
        if apply_norm:
            var = jnp.mean(x * x, axis=-1, keepdims=True)
            x = x * jax.lax.rsqrt(var + eps) * g_ref[...]
        xn_ref[...] = x.astype(jnp.bfloat16)
        acc_ref[...] = jnp.zeros_like(acc_ref)

    xn = xn_ref[...]
    g = jnp.dot(xn, w1_ref[...].astype(jnp.bfloat16), preferred_element_type=jnp.float32)
    u = jnp.dot(xn, w3_ref[...].astype(jnp.bfloat16), preferred_element_type=jnp.float32)
    h = (g * jax.nn.sigmoid(g)) * u  # silu(x@w1) * (x@w3), f32
    acc_ref[...] += jnp.dot(h.astype(jnp.bfloat16), w2_ref[...].astype(jnp.bfloat16),
                            preferred_element_type=jnp.float32)

    @pl.when(f == pl.num_programs(1) - 1)
    def _():
        o_ref[...] = acc_ref[...].astype(o_ref.dtype)


def swiglu_mlp(x, norm_g, w1, w3, w2, eps):
    M, D = x.shape
    F = w1.shape[1]
    apply_norm = norm_g is not None
    if norm_g is None:
        norm_g = jnp.ones((1, D), jnp.float32)  # unused when apply_norm=False
    tm = _pick(M, 256, 8)
    tf = _pick(F, 512, 128)
    return pl.pallas_call(
        functools.partial(_swiglu_kernel, eps=eps, apply_norm=apply_norm),
        out_shape=jax.ShapeDtypeStruct((M, D), jnp.float32),
        grid=(M // tm, F // tf),
        in_specs=[pl.BlockSpec((tm, D), lambda m, f: (m, 0)),
                  pl.BlockSpec((1, D), lambda m, f: (0, 0)),
                  pl.BlockSpec((D, tf), lambda m, f: (0, f)),
                  pl.BlockSpec((D, tf), lambda m, f: (0, f)),
                  pl.BlockSpec((tf, D), lambda m, f: (f, 0))],
        out_specs=pl.BlockSpec((tm, D), lambda m, f: (m, 0)),
        scratch_shapes=[pltpu.VMEM((tm, D), jnp.bfloat16),
                        pltpu.VMEM((tm, D), jnp.float32)],
        compiler_params=pltpu.CompilerParams(
            dimension_semantics=("parallel", "arbitrary"),
            vmem_limit_bytes=VMEM_LIMIT),
    )(x, norm_g, w1, w3, w2)


# ----------------------------------------------------------------------------
# Routed MoE: one pallas_call, expert grid axis streams expert weights, weighted
# outputs accumulate in a VMEM scratch across experts.
# TODO(synk): token-grouped (scalar-prefetch) grouped-matmul so each expert only
#             processes its routed tokens instead of masking (E/K x FLOP waste).
# ----------------------------------------------------------------------------
def _moe_kernel(x_ref, tw_ref, w1_ref, w3_ref, w2_ref, o_ref, acc_ref):
    e = pl.program_id(1)

    @pl.when(e == 0)
    def _():
        acc_ref[...] = jnp.zeros_like(acc_ref)

    xn = x_ref[...].astype(jnp.bfloat16)          # already ffn-normed tokens
    g = jnp.dot(xn, w1_ref[0].astype(jnp.bfloat16), preferred_element_type=jnp.float32)
    u = jnp.dot(xn, w3_ref[0].astype(jnp.bfloat16), preferred_element_type=jnp.float32)
    h = (g * jax.nn.sigmoid(g)) * u
    ye = jnp.dot(h.astype(jnp.bfloat16), w2_ref[0].astype(jnp.bfloat16),
                 preferred_element_type=jnp.float32)
    acc_ref[...] += tw_ref[0] * ye                # (tm,1) per-token routing weight

    @pl.when(e == pl.num_programs(1) - 1)
    def _():
        o_ref[...] = acc_ref[...].astype(o_ref.dtype)


def moe_experts(x, tok_w, w1, w3, w2):
    N, D = x.shape
    E, _, F = w1.shape
    tm = _pick(N, 256, 8)
    return pl.pallas_call(
        _moe_kernel,
        out_shape=jax.ShapeDtypeStruct((N, D), jnp.float32),
        grid=(N // tm, E),
        in_specs=[pl.BlockSpec((tm, D), lambda m, e: (m, 0)),
                  pl.BlockSpec((1, tm, 1), lambda m, e: (e, m, 0)),
                  pl.BlockSpec((1, D, F), lambda m, e: (e, 0, 0)),
                  pl.BlockSpec((1, D, F), lambda m, e: (e, 0, 0)),
                  pl.BlockSpec((1, F, D), lambda m, e: (e, 0, 0))],
        out_specs=pl.BlockSpec((tm, D), lambda m, e: (m, 0)),
        scratch_shapes=[pltpu.VMEM((tm, D), jnp.float32)],
        compiler_params=pltpu.CompilerParams(
            dimension_semantics=("parallel", "arbitrary"),
            vmem_limit_bytes=VMEM_LIMIT),
    )(x, tok_w, w1, w3, w2)


# ----------------------------------------------------------------------------
# MLA causal attention: nope/pe parts as separate refs (no HBM concat, no k_pe
# broadcast across heads), head-packed (T, H*dv) output per batch.
# TODO(synk): flash-style KV blocking with online-softmax scratch for long T.
# ----------------------------------------------------------------------------
def _mla_attn_kernel(qn_ref, qp_ref, kn_ref, kp_ref, v_ref, o_ref, *, scale, H, dv):
    kp = kp_ref[0, 0].astype(jnp.bfloat16)        # (T, dr), shared across heads
    T = kp.shape[0]
    row = jax.lax.broadcasted_iota(jnp.int32, (T, T), 0)
    col = jax.lax.broadcasted_iota(jnp.int32, (T, T), 1)
    causal = col <= row
    for h in range(H):                            # static unroll (H is small)
        qn = qn_ref[0, h].astype(jnp.bfloat16)    # (T, dn)
        qp = qp_ref[0, h].astype(jnp.bfloat16)    # (T, dr)
        kn = kn_ref[0, h].astype(jnp.bfloat16)    # (T, dn)
        vv = v_ref[0, h].astype(jnp.bfloat16)     # (T, dv)
        s = (jnp.dot(qn, kn.T, preferred_element_type=jnp.float32)
             + jnp.dot(qp, kp.T, preferred_element_type=jnp.float32)) * scale
        s = jnp.where(causal, s, -1e30)
        m = jnp.max(s, axis=-1, keepdims=True)
        p = jnp.exp(s - m)
        l = jnp.sum(p, axis=-1, keepdims=True)
        o = jnp.dot(p.astype(jnp.bfloat16), vv, preferred_element_type=jnp.float32) / l
        o_ref[0, :, h * dv:(h + 1) * dv] = o.astype(o_ref.dtype)


def mla_attention_core(q_nope, q_pe, k_nope, k_pe, v, scale):
    B, H, T, dn = q_nope.shape
    dr = q_pe.shape[-1]
    dv = v.shape[-1]
    return pl.pallas_call(
        functools.partial(_mla_attn_kernel, scale=scale, H=H, dv=dv),
        out_shape=jax.ShapeDtypeStruct((B, T, H * dv), jnp.float32),
        grid=(B,),
        in_specs=[pl.BlockSpec((1, H, T, dn), lambda b: (b, 0, 0, 0)),
                  pl.BlockSpec((1, H, T, dr), lambda b: (b, 0, 0, 0)),
                  pl.BlockSpec((1, H, T, dn), lambda b: (b, 0, 0, 0)),
                  pl.BlockSpec((1, 1, T, dr), lambda b: (b, 0, 0, 0)),
                  pl.BlockSpec((1, H, T, dv), lambda b: (b, 0, 0, 0))],
        out_specs=pl.BlockSpec((1, T, H * dv), lambda b: (b, 0, 0)),
        compiler_params=pltpu.CompilerParams(
            dimension_semantics=("parallel",),
            vmem_limit_bytes=VMEM_LIMIT),
    )(q_nope, q_pe, k_nope, k_pe, v)


# ----------------------------------------------------------------------------
# Mean cross-entropy: int32 targets (no one-hot), tiled over tokens with a
# running-sum scratch.
# TODO(synk): tile over the vocab axis + fuse with the LM head matmul at real vocab sizes.
# ----------------------------------------------------------------------------
def _xent_kernel(logits_ref, tgt_ref, o_ref, acc_ref, *, n_total):
    i = pl.program_id(0)

    @pl.when(i == 0)
    def _():
        acc_ref[...] = jnp.zeros_like(acc_ref)

    lg = logits_ref[...].astype(jnp.float32)      # (tn, V)
    m = jnp.max(lg, axis=-1, keepdims=True)
    lse = jnp.log(jnp.sum(jnp.exp(lg - m), axis=-1, keepdims=True)) + m
    col = jax.lax.broadcasted_iota(jnp.int32, lg.shape, 1)
    tlogit = jnp.sum(jnp.where(col == tgt_ref[...], lg, 0.0), axis=-1, keepdims=True)
    acc_ref[...] += jnp.sum(lse - tlogit)[None, None]

    @pl.when(i == pl.num_programs(0) - 1)
    def _():
        o_ref[...] = acc_ref[...] / n_total


def cross_entropy(logits2d, targets_flat):
    N, V = logits2d.shape
    tgt = targets_flat.reshape(N, 1).astype(jnp.int32)
    tn = _pick(N, 256, 8)
    out = pl.pallas_call(
        functools.partial(_xent_kernel, n_total=float(N)),
        out_shape=jax.ShapeDtypeStruct((1, 1), jnp.float32),
        grid=(N // tn,),
        in_specs=[pl.BlockSpec((tn, V), lambda i: (i, 0)),
                  pl.BlockSpec((tn, 1), lambda i: (i, 0))],
        out_specs=pl.BlockSpec((1, 1), lambda i: (0, 0)),
        scratch_shapes=[pltpu.VMEM((1, 1), jnp.float32)],
        compiler_params=pltpu.CompilerParams(
            dimension_semantics=("arbitrary",),
            vmem_limit_bytes=VMEM_LIMIT),
    )(logits2d, tgt)
    return out[0, 0]


# ----------------------------------------------------------------------------
# RoPE tables / application (standard; YaRN correction not needed: seq_len << original_seq_len)
# TODO(synk): fuse RoPE (pre-interleaved cos/sin + pltpu.roll) into the projection epilogue.
# ----------------------------------------------------------------------------
def rope_tables(T, d, theta):
    inv = 1.0 / (theta ** (jnp.arange(0, d, 2, dtype=jnp.float32) / d))
    t = jnp.arange(T, dtype=jnp.float32)
    freqs = jnp.outer(t, inv)                     # (T, d//2)
    return jnp.cos(freqs), jnp.sin(freqs)


def apply_rope(x, cos, sin):
    # x: (B, T, H, d), adjacent-pair complex convention (view_as_complex of (..., d//2, 2))
    x1 = x[..., 0::2]
    x2 = x[..., 1::2]
    c = cos[None, :, None, :]
    s = sin[None, :, None, :]
    r1 = x1 * c - x2 * s
    r2 = x1 * s + x2 * c
    return jnp.stack([r1, r2], axis=-1).reshape(x.shape)


# ----------------------------------------------------------------------------
# Parameter init (deterministic, in-script; weights stored bf16 as (in, out))
# ----------------------------------------------------------------------------
def init_params(key, cfg):
    def nxt():
        nonlocal key
        key, sub = jax.random.split(key)
        return sub

    def w(shape, scale=0.02):
        return (scale * jax.random.normal(nxt(), shape, dtype=jnp.float32)).astype(jnp.bfloat16)

    D = cfg["dim"]
    H = cfg["n_heads"]
    dn, dr, dv = cfg["qk_nope_head_dim"], cfg["qk_rope_head_dim"], cfg["v_head_dim"]
    kvr = cfg["kv_lora_rank"]
    params = {
        "embed": w((cfg["vocab_size"], D)),
        "final_norm": jnp.ones((1, D), jnp.float32),
        "head": w((D, cfg["vocab_size"])),
        "layers": [],
    }
    for li in range(cfg["n_layers"]):
        wq = w((D, H * (dn + dr)))
        wkv_a = w((D, kvr + dr))
        lp = {
            "attn_norm": jnp.ones((1, D), jnp.float32),
            "ffn_norm": jnp.ones((1, D), jnp.float32),
            "wq_kva": jnp.concatenate([wq, wkv_a], axis=1),    # fused [wq | wkv_a]
            "kv_norm": jnp.ones((1, kvr), jnp.float32),
            "wkv_b": w((kvr, H * (dn + dv))),
            "wo": w((H * dv, D)),
        }
        if li < cfg["n_dense_layers"]:
            lp["dense"] = {
                "w1": w((D, cfg["inter_dim"])),
                "w3": w((D, cfg["inter_dim"])),
                "w2": w((cfg["inter_dim"], D)),
            }
        else:
            E, F = cfg["n_routed_experts"], cfg["moe_inter_dim"]
            Fs = cfg["n_shared_experts"] * F
            lp["moe"] = {
                "gate_w": w((D, E)),
                "experts_w1": w((E, D, F)),
                "experts_w3": w((E, D, F)),
                "experts_w2": w((E, F, D)),
                "shared_w1": w((D, Fs)),
                "shared_w3": w((D, Fs)),
                "shared_w2": w((Fs, D)),
            }
        params["layers"].append(lp)
    return params


# ----------------------------------------------------------------------------
# Model forward
# ----------------------------------------------------------------------------
def mla_attention(lp, x, cos, sin, cfg):
    B, T, D = x.shape
    H = cfg["n_heads"]
    dn, dr, dv = cfg["qk_nope_head_dim"], cfg["qk_rope_head_dim"], cfg["v_head_dim"]
    kvr = cfg["kv_lora_rank"]
    eps = cfg["eps"]

    x2 = x.reshape(B * T, D)
    # Fused attn_norm + [wq | wkv_a] projection (single pass over x).
    qkva = norm_matmul(x2, lp["attn_norm"], lp["wq_kva"], eps)
    q_dim = H * (dn + dr)
    q = qkva[:, :q_dim].reshape(B, T, H, dn + dr)
    kv_a = qkva[:, q_dim:]
    kv_c, k_pe = kv_a[:, :kvr], kv_a[:, kvr:]

    q_nope, q_pe = q[..., :dn], q[..., dn:]
    q_pe = apply_rope(q_pe, cos, sin)                        # (B, T, H, dr)
    k_pe = apply_rope(k_pe.reshape(B, T, 1, dr), cos, sin)   # (B, T, 1, dr)

    # Fused kv_norm + wkv_b projection.
    kvb = norm_matmul(kv_c, lp["kv_norm"], lp["wkv_b"], eps).reshape(B, T, H, dn + dv)
    k_nope, v = kvb[..., :dn], kvb[..., dn:]

    scale = 1.0 / math.sqrt(dn + dr)
    o = mla_attention_core(q_nope.transpose(0, 2, 1, 3),
                           q_pe.transpose(0, 2, 1, 3),
                           k_nope.transpose(0, 2, 1, 3),
                           k_pe.transpose(0, 2, 1, 3),
                           v.transpose(0, 2, 1, 3), scale)   # (B, T, H*dv)
    return matmul(o.reshape(B * T, H * dv), lp["wo"]).reshape(B, T, D)


def moe_ffn(mp, h2, cfg):
    # h2: (N, dim), already ffn-normed
    E = cfg["n_routed_experts"]
    K = cfg["n_activated_experts"]
    N, _ = h2.shape
    scores = jax.nn.softmax(matmul(h2, mp["gate_w"]), axis=-1)
    weights, idx = jax.lax.top_k(scores, K)                  # softmax score_func: no renorm
    weights = weights * cfg["route_scale"]
    dense_w = jnp.sum(
        jnp.where(idx[:, :, None] == jnp.arange(E)[None, None, :],
                  weights[:, :, None], 0.0), axis=1)         # (N, E)
    tok_w = dense_w.T[:, :, None].astype(jnp.float32)        # (E, N, 1)
    routed = moe_experts(h2, tok_w, mp["experts_w1"], mp["experts_w3"], mp["experts_w2"])
    shared = swiglu_mlp(h2, None, mp["shared_w1"], mp["shared_w3"], mp["shared_w2"], cfg["eps"])
    return routed + shared


def deepseek_forward(params, input_ids, targets=None, cfg=CFG):
    B, T = input_ids.shape
    # wrapper semantics: pad sequence to at least length 2 (matches the PyTorch adapter)
    if T < 2:
        pad = jnp.zeros((B, 2 - T), dtype=input_ids.dtype)
        input_ids = jnp.concatenate([input_ids, pad], axis=1)
        if targets is not None:
            targets = jnp.concatenate([targets, pad], axis=1)
        T = 2

    D = cfg["dim"]
    eps = cfg["eps"]
    x = jnp.take(params["embed"], input_ids, axis=0).astype(jnp.float32)   # (B, T, D)
    cos, sin = rope_tables(T, cfg["qk_rope_head_dim"], cfg["rope_theta"])

    for lp in params["layers"]:
        x = x + mla_attention(lp, x, cos, sin, cfg)
        if "dense" in lp:
            # ffn_norm fused into the SwiGLU kernel
            f = swiglu_mlp(x.reshape(B * T, D), lp["ffn_norm"],
                           lp["dense"]["w1"], lp["dense"]["w3"], lp["dense"]["w2"], eps)
        else:
            h2 = rmsnorm(x.reshape(B * T, D), lp["ffn_norm"], eps)  # shared by gate/experts
            f = moe_ffn(lp["moe"], h2, cfg)
        x = x + f.reshape(B, T, D)

    # final_norm fused into the LM head matmul
    logits2d = norm_matmul(x.reshape(B * T, D), params["final_norm"], params["head"], eps)
    logits = logits2d.reshape(B, T, cfg["vocab_size"])

    if targets is not None:
        loss = cross_entropy(logits2d, targets.reshape(-1))
        return logits, loss
    return logits, None


# ----------------------------------------------------------------------------
# Main
# ----------------------------------------------------------------------------
if __name__ == "__main__":
    params = init_params(jax.random.PRNGKey(0), CFG)

    B, T = 2, 8
    kid, ktgt = jax.random.split(jax.random.PRNGKey(0))
    input_ids = jax.random.randint(kid, (B, T), 0, CFG["vocab_size"], dtype=jnp.int32)
    targets = jax.random.randint(ktgt, (B, T), 0, CFG["vocab_size"], dtype=jnp.int32)

    fwd = jax.jit(functools.partial(deepseek_forward, cfg=CFG))
    logits, loss = fwd(params, input_ids, targets)
    jax.block_until_ready((logits, loss))

    assert logits.shape == (B, T, CFG["vocab_size"])
    assert loss.shape == ()
    assert bool(jnp.isfinite(loss))
    print("KERNEL_OK")
</pallas_src>

<mosaic_0001>
module attributes {stable_mosaic.version = 11 : i64} {
  func.func @_norm_matmul_kernel(%arg0: i32, %arg1: i32, %arg2: memref<16x128xf32, #tpu.memory_space<vmem>>, %arg3: memref<1x128xf32, #tpu.memory_space<vmem>>, %arg4: memref<128x176xbf16, #tpu.memory_space<vmem>>, %arg5: memref<16x176xf32, #tpu.memory_space<vmem>>) attributes {dimension_semantics = [#tpu.dimension_semantics<parallel>, #tpu.dimension_semantics<parallel>], iteration_bounds = array<i64: 1, 1>, scalar_prefetch = 0 : i64, scratch_operands = 0 : i64, tpu.core_type = #tpu.core_type<tc>, window_params = [{transform_indices = @transform_0, window_bounds = array<i64: 16, 128>}, {pipeline_mode = #tpu.pipeline_mode<synchronous>, transform_indices = @transform_1, window_bounds = array<i64: 1, 128>}, {transform_indices = @transform_2, window_bounds = array<i64: 128, 176>}, {transform_indices = @transform_3, window_bounds = array<i64: 16, 176>}]} {
    %c0 = arith.constant 0 : index
    %c0_0 = arith.constant 0 : index
    %0 = vector.load %arg2[%c0, %c0_0] : memref<16x128xf32, #tpu.memory_space<vmem>>, vector<16x128xf32>
    %1 = arith.mulf %0, %0 : vector<16x128xf32>
    %cst = arith.constant dense<0.000000e+00> : vector<16xf32>
    %2 = vector.multi_reduction <add>, %1, %cst [1] : vector<16x128xf32> to vector<16xf32>
    %3 = vector.shape_cast %2 : vector<16xf32> to vector<16x1xf32>
    %cst_1 = arith.constant 1.280000e+02 : f32
    %4 = vector.broadcast %cst_1 : f32 to vector<16x1xf32>
    %5 = arith.divf %3, %4 : vector<16x1xf32>
    %cst_2 = arith.constant 9.99999997E-7 : f32
    %6 = vector.broadcast %cst_2 : f32 to vector<16x1xf32>
    %7 = arith.addf %5, %6 : vector<16x1xf32>
    %8 = math.rsqrt %7 : vector<16x1xf32>
    %9 = vector.broadcast %8 : vector<16x1xf32> to vector<16x128xf32>
    %10 = arith.mulf %0, %9 : vector<16x128xf32>
    %c0_3 = arith.constant 0 : index
    %c0_4 = arith.constant 0 : index
    %11 = vector.load %arg3[%c0_3, %c0_4] : memref<1x128xf32, #tpu.memory_space<vmem>>, vector<1x128xf32>
    %12 = vector.broadcast %11 : vector<1x128xf32> to vector<16x128xf32>
    %13 = arith.mulf %10, %12 : vector<16x128xf32>
    %14 = arith.truncf %13 : vector<16x128xf32> to vector<16x128xbf16>
    %c0_5 = arith.constant 0 : index
    %c0_6 = arith.constant 0 : index
    %15 = vector.load %arg4[%c0_5, %c0_6] : memref<128x176xbf16, #tpu.memory_space<vmem>>, vector<128x176xbf16>
    %cst_7 = arith.constant dense<0.000000e+00> : vector<16x176xf32>
    %16 = tpu.matmul %14, %15, %cst_7 {dimension_numbers = #tpu.dot_dimension_numbers<[1], [0], [0], [1], [0, 0, 1, 1], [], []>} : vector<16x128xbf16>, vector<128x176xbf16>, vector<16x176xf32> -> vector<16x176xf32>
    %c0_8 = arith.constant 0 : index
    %c0_9 = arith.constant 0 : index
    %17 = vector.load %arg5[%c0_8, %c0_9] : memref<16x176xf32, #tpu.memory_space<vmem>>, vector<16x176xf32>
    tpu.vector_store %arg5[%c0_8, %c0_9], %16 {strides = array<i32>} : memref<16x176xf32, #tpu.memory_space<vmem>>, vector<16x176xf32>,
    return
  }
  func.func @transform_0(%arg0: i32, %arg1: i32) -> (i32, i32) {
    %c0_i32 = arith.constant 0 : i32
    %c0_i32_0 = arith.constant 0 : i32
    return %arg0, %c0_i32 : i32, i32
  }
  func.func @transform_1(%arg0: i32, %arg1: i32) -> (i32, i32) {
    %c0_i32 = arith.constant 0 : i32
    %c0_i32_0 = arith.constant 0 : i32
    %c0_i32_1 = arith.constant 0 : i32
    return %c0_i32, %c0_i32_0 : i32, i32
  }
  func.func @transform_2(%arg0: i32, %arg1: i32) -> (i32, i32) {
    %c0_i32 = arith.constant 0 : i32
    %c0_i32_0 = arith.constant 0 : i32
    return %c0_i32, %arg1 : i32, i32
  }
  func.func @transform_3(%arg0: i32, %arg1: i32) -> (i32, i32) {
    %c0_i32 = arith.constant 0 : i32
    return %arg0, %arg1 : i32, i32
  }
}

module attributes {stable_mosaic.version = 11 : i64} {
  func.func @_norm_matmul_kernel(%arg0: i32, %arg1: i32, %arg2: memref<16x64xf32, #tpu.memory_space<vmem>>, %arg3: memref<1x64xf32, #tpu.memory_space<vmem>>, %arg4: memref<64x128xbf16, #tpu.memory_space<vmem>>, %arg5: memref<16x128xf32, #tpu.memory_space<vmem>>) attributes {dimension_semantics = [#tpu.dimension_semantics<parallel>, #tpu.dimension_semantics<parallel>], iteration_bounds = array<i64: 1, 1>, scalar_prefetch = 0 : i64, scratch_operands = 0 : i64, tpu.core_type = #tpu.core_type<tc>, window_params = [{transform_indices = @transform_0, window_bounds = array<i64: 16, 64>}, {pipeline_mode = #tpu.pipeline_mode<synchronous>, transform_indices = @transform_1, window_bounds = array<i64: 1, 64>}, {transform_indices = @transform_2, window_bounds = array<i64: 64, 128>}, {transform_indices = @transform_3, window_bounds = array<i64: 16, 128>}]} {
    %c0 = arith.constant 0 : index
    %c0_0 = arith.constant 0 : index
    %0 = vector.load %arg2[%c0, %c0_0] : memref<16x64xf32, #tpu.memory_space<vmem>>, vector<16x64xf32>
    %1 = arith.mulf %0, %0 : vector<16x64xf32>
    %cst = arith.constant dense<0.000000e+00> : vector<16xf32>
    %2 = vector.multi_reduction <add>, %1, %cst [1] : vector<16x64xf32> to vector<16xf32>
    %3 = vector.shape_cast %2 : vector<16xf32> to vector<16x1xf32>
    %cst_1 = arith.constant 6.400000e+01 : f32
    %4 = vector.broadcast %cst_1 : f32 to vector<16x1xf32>
    %5 = arith.divf %3, %4 : vector<16x1xf32>
    %cst_2 = arith.constant 9.99999997E-7 : f32
    %6 = vector.broadcast %cst_2 : f32 to vector<16x1xf32>
    %7 = arith.addf %5, %6 : vector<16x1xf32>
    %8 = math.rsqrt %7 : vector<16x1xf32>
    %9 = vector.broadcast %8 : vector<16x1xf32> to vector<16x64xf32>
    %10 = arith.mulf %0, %9 : vector<16x64xf32>
    %c0_3 = arith.constant 0 : index
    %c0_4 = arith.constant 0 : index
    %11 = vector.load %arg3[%c0_3, %c0_4] : memref<1x64xf32, #tpu.memory_space<vmem>>, vector<1x64xf32>
    %12 = vector.broadcast %11 : vector<1x64xf32> to vector<16x64xf32>
    %13 = arith.mulf %10, %12 : vector<16x64xf32>
    %14 = arith.truncf %13 : vector<16x64xf32> to vector<16x64xbf16>
    %c0_5 = arith.constant 0 : index
    %c0_6 = arith.constant 0 : index
    %15 = vector.load %arg4[%c0_5, %c0_6] : memref<64x128xbf16, #tpu.memory_space<vmem>>, vector<64x128xbf16>
    %cst_7 = arith.constant dense<0.000000e+00> : vector<16x128xf32>
    %16 = tpu.matmul %14, %15, %cst_7 {dimension_numbers = #tpu.dot_dimension_numbers<[1], [0], [0], [1], [0, 0, 1, 1], [], []>} : vector<16x64xbf16>, vector<64x128xbf16>, vector<16x128xf32> -> vector<16x128xf32>
    %c0_8 = arith.constant 0 : index
    %c0_9 = arith.constant 0 : index
    %17 = vector.load %arg5[%c0_8, %c0_9] : memref<16x128xf32, #tpu.memory_space<vmem>>, vector<16x128xf32>
    tpu.vector_store %arg5[%c0_8, %c0_9], %16 {strides = array<i32>} : memref<16x128xf32, #tpu.memory_space<vmem>>, vector<16x128xf32>,
    return
  }
  func.func @transform_0(%arg0: i32, %arg1: i32) -> (i32, i32) {
    %c0_i32 = arith.constant 0 : i32
    %c0_i32_0 = arith.constant 0 : i32
    return %arg0, %c0_i32 : i32, i32
  }
  func.func @transform_1(%arg0: i32, %arg1: i32) -> (i32, i32) {
    %c0_i32 = arith.constant 0 : i32
    %c0_i32_0 = arith.constant 0 : i32
    %c0_i32_1 = arith.constant 0 : i32
    return %c0_i32, %c0_i32_0 : i32, i32
  }
  func.func @transform_2(%arg0: i32, %arg1: i32) -> (i32, i32) {
    %c0_i32 = arith.constant 0 : i32
    %c0_i32_0 = arith.constant 0 : i32
    return %c0_i32, %arg1 : i32, i32
  }
  func.func @transform_3(%arg0: i32, %arg1: i32) -> (i32, i32) {
    %c0_i32 = arith.constant 0 : i32
    return %arg0, %arg1 : i32, i32
  }
}

module attributes {stable_mosaic.version = 11 : i64} {
  func.func @_matmul_kernel(%arg0: i32, %arg1: i32, %arg2: i32, %arg3: memref<16x64xf32, #tpu.memory_space<vmem>>, %arg4: memref<64x128xbf16, #tpu.memory_space<vmem>>, %arg5: memref<16x128xf32, #tpu.memory_space<vmem>>, %arg6: memref<16x128xf32, #tpu.memory_space<vmem>>) attributes {dimension_semantics = [#tpu.dimension_semantics<parallel>, #tpu.dimension_semantics<parallel>, #tpu.dimension_semantics<arbitrary>], iteration_bounds = array<i64: 1, 1, 1>, scalar_prefetch = 0 : i64, scratch_operands = 1 : i64, tpu.core_type = #tpu.core_type<tc>, window_params = [{transform_indices = @transform_0, window_bounds = array<i64: 16, 64>}, {transform_indices = @transform_1, window_bounds = array<i64: 64, 128>}, {transform_indices = @transform_2, window_bounds = array<i64: 16, 128>}]} {
    %c0_i32 = arith.constant 0 : i32
    %0 = arith.cmpi eq, %arg2, %c0_i32 : i32
    %1 = arith.extui %0 : i1 to i32
    %c0_i32_0 = arith.constant 0 : i32
    %2 = arith.cmpi ne, %1, %c0_i32_0 : i32
    scf.if %2 {
      %cst_10 = arith.constant 0.000000e+00 : f32
      %13 = vector.broadcast %cst_10 : f32 to vector<16x128xf32>
      %c0_11 = arith.constant 0 : index
      %c0_12 = arith.constant 0 : index
      %14 = vector.load %arg6[%c0_11, %c0_12] : memref<16x128xf32, #tpu.memory_space<vmem>>, vector<16x128xf32>
      tpu.vector_store %arg6[%c0_11, %c0_12], %13 {strides = array<i32>} : memref<16x128xf32, #tpu.memory_space<vmem>>, vector<16x128xf32>,
    } else {
    }
    %c0 = arith.constant 0 : index
    %c0_1 = arith.constant 0 : index
    %3 = vector.load %arg6[%c0, %c0_1] : memref<16x128xf32, #tpu.memory_space<vmem>>, vector<16x128xf32>
    %c0_2 = arith.constant 0 : index
    %c0_3 = arith.constant 0 : index
    %4 = vector.load %arg3[%c0_2, %c0_3] : memref<16x64xf32, #tpu.memory_space<vmem>>, vector<16x64xf32>
    %5 = arith.truncf %4 : vector<16x64xf32> to vector<16x64xbf16>
    %c0_4 = arith.constant 0 : index
    %c0_5 = arith.constant 0 : index
    %6 = vector.load %arg4[%c0_4, %c0_5] : memref<64x128xbf16, #tpu.memory_space<vmem>>, vector<64x128xbf16>
    %cst = arith.constant dense<0.000000e+00> : vector<16x128xf32>
    %7 = tpu.matmul %5, %6, %cst {dimension_numbers = #tpu.dot_dimension_numbers<[1], [0], [0], [1], [0, 0, 1, 1], [], []>} : vector<16x64xbf16>, vector<64x128xbf16>, vector<16x128xf32> -> vector<16x128xf32>
    %8 = arith.addf %3, %7 : vector<16x128xf32>
    %c0_6 = arith.constant 0 : index
    %c0_7 = arith.constant 0 : index
    %9 = vector.load %arg6[%c0_6, %c0_7] : memref<16x128xf32, #tpu.memory_space<vmem>>, vector<16x128xf32>
    tpu.vector_store %arg6[%c0_6, %c0_7], %8 {strides = array<i32>} : memref<16x128xf32, #tpu.memory_space<vmem>>, vector<16x128xf32>,
    %c0_i32_8 = arith.constant 0 : i32
    %10 = arith.cmpi eq, %arg2, %c0_i32_8 : i32
    %11 = arith.extui %10 : i1 to i32
    %c0_i32_9 = arith.constant 0 : i32
    %12 = arith.cmpi ne, %11, %c0_i32_9 : i32
    scf.if %12 {
      %c0_10 = arith.constant 0 : index
      %c0_11 = arith.constant 0 : index
      %13 = vector.load %arg6[%c0_10, %c0_11] : memref<16x128xf32, #tpu.memory_space<vmem>>, vector<16x128xf32>
      %c0_12 = arith.constant 0 : index
      %c0_13 = arith.constant 0 : index
      %14 = vector.load %arg5[%c0_12, %c0_13] : memref<16x128xf32, #tpu.memory_space<vmem>>, vector<16x128xf32>
      tpu.vector_store %arg5[%c0_12, %c0_13], %13 {strides = array<i32>} : memref<16x128xf32, #tpu.memory_space<vmem>>, vector<16x128xf32>,
    } else {
    }
    return
  }
  func.func @transform_0(%arg0: i32, %arg1: i32, %arg2: i32) -> (i32, i32) {
    %c0_i32 = arith.constant 0 : i32
    return %arg0, %arg2 : i32, i32
  }
  func.func @transform_1(%arg0: i32, %arg1: i32, %arg2: i32) -> (i32, i32) {
    %c0_i32 = arith.constant 0 : i32
    return %arg2, %arg1 : i32, i32
  }
  func.func @transform_2(%arg0: i32, %arg1: i32, %arg2: i32) -> (i32, i32) {
    %c0_i32 = arith.constant 0 : i32
    return %arg0, %arg1 : i32, i32
  }
}

module attributes {stable_mosaic.version = 11 : i64} {
  func.func @_mla_attn_kernel(%arg0: i32, %arg1: memref<1x2x8x32xf32, #tpu.memory_space<vmem>>, %arg2: memref<1x2x8x16xf32, #tpu.memory_space<vmem>>, %arg3: memref<1x2x8x32xf32, #tpu.memory_space<vmem>>, %arg4: memref<1x1x8x16xf32, #tpu.memory_space<vmem>>, %arg5: memref<1x2x8x32xf32, #tpu.memory_space<vmem>>, %arg6: memref<1x8x64xf32, #tpu.memory_space<vmem>>) attributes {dimension_semantics = [#tpu.dimension_semantics<parallel>], iteration_bounds = array<i64: 2>, scalar_prefetch = 0 : i64, scratch_operands = 0 : i64, tpu.core_type = #tpu.core_type<tc>, window_params = [{transform_indices = @transform_0, window_bounds = array<i64: 1, 2, 8, 32>}, {transform_indices = @transform_1, window_bounds = array<i64: 1, 2, 8, 16>}, {transform_indices = @transform_2, window_bounds = array<i64: 1, 2, 8, 32>}, {transform_indices = @transform_3, window_bounds = array<i64: 1, 1, 8, 16>}, {transform_indices = @transform_4, window_bounds = array<i64: 1, 2, 8, 32>}, {transform_indices = @transform_5, window_bounds = array<i64: 1, 8, 64>}]} {
    %c0 = arith.constant 0 : index
    %c0_0 = arith.constant 0 : index
    %c0_1 = arith.constant 0 : index
    %c0_2 = arith.constant 0 : index
    %0 = vector.load %arg4[%c0, %c0_0, %c0_1, %c0_2] : memref<1x1x8x16xf32, #tpu.memory_space<vmem>>, vector<1x1x8x16xf32>
    %1 = vector.shape_cast %0 : vector<1x1x8x16xf32> to vector<8x16xf32>
    %2 = arith.truncf %1 : vector<8x16xf32> to vector<8x16xbf16>
    %3 = tpu.iota {dimensions = array<i32: 0>} : vector<8x8xi32>
    %4 = tpu.iota {dimensions = array<i32: 1>} : vector<8x8xi32>
    %5 = arith.cmpi sle, %4, %3 : vector<8x8xi32>
    %c0_3 = arith.constant 0 : index
    %c0_4 = arith.constant 0 : index
    %c0_5 = arith.constant 0 : index
    %c0_6 = arith.constant 0 : index
    %6 = vector.load %arg1[%c0_3, %c0_4, %c0_5, %c0_6] : memref<1x2x8x32xf32, #tpu.memory_space<vmem>>, vector<1x1x8x32xf32>
    %7 = vector.shape_cast %6 : vector<1x1x8x32xf32> to vector<8x32xf32>
    %8 = arith.truncf %7 : vector<8x32xf32> to vector<8x32xbf16>
    %c0_7 = arith.constant 0 : index
    %c0_8 = arith.constant 0 : index
    %c0_9 = arith.constant 0 : index
    %c0_10 = arith.constant 0 : index
    %9 = vector.load %arg2[%c0_7, %c0_8, %c0_9, %c0_10] : memref<1x2x8x16xf32, #tpu.memory_space<vmem>>, vector<1x1x8x16xf32>
    %10 = vector.shape_cast %9 : vector<1x1x8x16xf32> to vector<8x16xf32>
    %11 = arith.truncf %10 : vector<8x16xf32> to vector<8x16xbf16>
    %c0_11 = arith.constant 0 : index
    %c0_12 = arith.constant 0 : index
    %c0_13 = arith.constant 0 : index
    %c0_14 = arith.constant 0 : index
    %12 = vector.load %arg3[%c0_11, %c0_12, %c0_13, %c0_14] : memref<1x2x8x32xf32, #tpu.memory_space<vmem>>, vector<1x1x8x32xf32>
    %13 = vector.shape_cast %12 : vector<1x1x8x32xf32> to vector<8x32xf32>
    %14 = arith.truncf %13 : vector<8x32xf32> to vector<8x32xbf16>
    %c0_15 = arith.constant 0 : index
    %c0_16 = arith.constant 0 : index
    %c0_17 = arith.constant 0 : index
    %c0_18 = arith.constant 0 : index
    %15 = vector.load %arg5[%c0_15, %c0_16, %c0_17, %c0_18] : memref<1x2x8x32xf32, #tpu.memory_space<vmem>>, vector<1x1x8x32xf32>
    %16 = vector.shape_cast %15 : vector<1x1x8x32xf32> to vector<8x32xf32>
    %17 = arith.truncf %16 : vector<8x32xf32> to vector<8x32xbf16>
    %18 = tpu.transpose %14, [1, 0] : vector<8x32xbf16> -> vector<32x8xbf16>
    %cst = arith.constant dense<0.000000e+00> : vector<8x8xf32>
    %19 = tpu.matmul %8, %18, %cst {dimension_numbers = #tpu.dot_dimension_numbers<[1], [0], [0], [1], [0, 0, 1, 1], [], []>} : vector<8x32xbf16>, vector<32x8xbf16>, vector<8x8xf32> -> vector<8x8xf32>
    %20 = tpu.transpose %2, [1, 0] : vector<8x16xbf16> -> vector<16x8xbf16>
    %cst_19 = arith.constant dense<0.000000e+00> : vector<8x8xf32>
    %21 = tpu.matmul %11, %20, %cst_19 {dimension_numbers = #tpu.dot_dimension_numbers<[1], [0], [0], [1], [0, 0, 1, 1], [], []>} : vector<8x16xbf16>, vector<16x8xbf16>, vector<8x8xf32> -> vector<8x8xf32>
    %22 = arith.addf %19, %21 : vector<8x8xf32>
    %cst_20 = arith.constant 0.144337565 : f32
    %23 = vector.broadcast %cst_20 : f32 to vector<8x8xf32>
    %24 = arith.mulf %22, %23 : vector<8x8xf32>
    %cst_21 = arith.constant -1.000000e+30 : f32
    %25 = vector.broadcast %cst_21 : f32 to vector<8x8xf32>
    %26 = arith.select %5, %24, %25 : vector<8x8xi1>, vector<8x8xf32>
    %cst_22 = arith.constant dense<0xFF800000> : vector<8xf32>
    %27 = vector.multi_reduction <maximumf>, %26, %cst_22 [1] : vector<8x8xf32> to vector<8xf32>
    %28 = vector.shape_cast %27 : vector<8xf32> to vector<8x1xf32>
    %29 = vector.broadcast %28 : vector<8x1xf32> to vector<8x8xf32>
    %30 = arith.subf %26, %29 : vector<8x8xf32>
    %31 = math.exp %30 : vector<8x8xf32>
    %cst_23 = arith.constant dense<0.000000e+00> : vector<8xf32>
    %32 = vector.multi_reduction <add>, %31, %cst_23 [1] : vector<8x8xf32> to vector<8xf32>
    %33 = vector.shape_cast %32 : vector<8xf32> to vector<8x1xf32>
    %34 = arith.truncf %31 : vector<8x8xf32> to vector<8x8xbf16>
    %cst_24 = arith.constant dense<0.000000e+00> : vector<8x32xf32>
    %35 = tpu.matmul %34, %17, %cst_24 {dimension_numbers = #tpu.dot_dimension_numbers<[1], [0], [0], [1], [0, 0, 1, 1], [], []>} : vector<8x8xbf16>, vector<8x32xbf16>, vector<8x32xf32> -> vector<8x32xf32>
    %36 = vector.broadcast %33 : vector<8x1xf32> to vector<8x32xf32>
    %37 = arith.divf %35, %36 : vector<8x32xf32>
    %c0_25 = arith.constant 0 : index
    %c0_26 = arith.constant 0 : index
    %c0_27 = arith.constant 0 : index
    %38 = vector.load %arg6[%c0_25, %c0_26, %c0_27] : memref<1x8x64xf32, #tpu.memory_space<vmem>>, vector<1x8x32xf32>
    %39 = vector.shape_cast %38 : vector<1x8x32xf32> to vector<8x32xf32>
    %40 = vector.shape_cast %37 : vector<8x32xf32> to vector<1x8x32xf32>
    tpu.vector_store %arg6[%c0_25, %c0_26, %c0_27], %40 {strides = array<i32>} : memref<1x8x64xf32, #tpu.memory_space<vmem>>, vector<1x8x32xf32>,
    %c0_28 = arith.constant 0 : index
    %c1 = arith.constant 1 : index
    %c0_29 = arith.constant 0 : index
    %c0_30 = arith.constant 0 : index
    %41 = vector.load %arg1[%c0_28, %c1, %c0_29, %c0_30] : memref<1x2x8x32xf32, #tpu.memory_space<vmem>>, vector<1x1x8x32xf32>
    %42 = vector.shape_cast %41 : vector<1x1x8x32xf32> to vector<8x32xf32>
    %43 = arith.truncf %42 : vector<8x32xf32> to vector<8x32xbf16>
    %c0_31 = arith.constant 0 : index
    %c1_32 = arith.constant 1 : index
    %c0_33 = arith.constant 0 : index
    %c0_34 = arith.constant 0 : index
    %44 = vector.load %arg2[%c0_31, %c1_32, %c0_33, %c0_34] : memref<1x2x8x16xf32, #tpu.memory_space<vmem>>, vector<1x1x8x16xf32>
    %45 = vector.shape_cast %44 : vector<1x1x8x16xf32> to vector<8x16xf32>
    %46 = arith.truncf %45 : vector<8x16xf32> to vector<8x16xbf16>
    %c0_35 = arith.constant 0 : index
    %c1_36 = arith.constant 1 : index
    %c0_37 = arith.constant 0 : index
    %c0_38 = arith.constant 0 : index
    %47 = vector.load %arg3[%c0_35, %c1_36, %c0_37, %c0_38] : memref<1x2x8x32xf32, #tpu.memory_space<vmem>>, vector<1x1x8x32xf32>
    %48 = vector.shape_cast %47 : vector<1x1x8x32xf32> to vector<8x32xf32>
    %49 = arith.truncf %48 : vector<8x32xf32> to vector<8x32xbf16>
    %c0_39 = arith.constant 0 : index
    %c1_40 = arith.constant 1 : index
    %c0_41 = arith.constant 0 : index
    %c0_42 = arith.constant 0 : index
    %50 = vector.load %arg5[%c0_39, %c1_40, %c0_41, %c0_42] : memref<1x2x8x32xf32, #tpu.memory_space<vmem>>, vector<1x1x8x32xf32>
    %51 = vector.shape_cast %50 : vector<1x1x8x32xf32> to vector<8x32xf32>
    %52 = arith.truncf %51 : vector<8x32xf32> to vector<8x32xbf16>
    %53 = tpu.transpose %49, [1, 0] : vector<8x32xbf16> -> vector<32x8xbf16>
    %cst_43 = arith.constant dense<0.000000e+00> : vector<8x8xf32>
    %54 = tpu.matmul %43, %53, %cst_43 {dimension_numbers = #tpu.dot_dimension_numbers<[1], [0], [0], [1], [0, 0, 1, 1], [], []>} : vector<8x32xbf16>, vector<32x8xbf16>, vector<8x8xf32> -> vector<8x8xf32>
    %55 = tpu.transpose %2, [1, 0] : vector<8x16xbf16> -> vector<16x8xbf16>
    %cst_44 = arith.constant dense<0.000000e+00> : vector<8x8xf32>
    %56 = tpu.matmul %46, %55, %cst_44 {dimension_numbers = #tpu.dot_dimension_numbers<[1], [0], [0], [1], [0, 0, 1, 1], [], []>} : vector<8x16xbf16>, vector<16x8xbf16>, vector<8x8xf32> -> vector<8x8xf32>
    %57 = arith.addf %54, %56 : vector<8x8xf32>
    %cst_45 = arith.constant 0.144337565 : f32
    %58 = vector.broadcast %cst_45 : f32 to vector<8x8xf32>
    %59 = arith.mulf %57, %58 : vector<8x8xf32>
    %cst_46 = arith.constant -1.000000e+30 : f32
    %60 = vector.broadcast %cst_46 : f32 to vector<8x8xf32>
    %61 = arith.select %5, %59, %60 : vector<8x8xi1>, vector<8x8xf32>
    %cst_47 = arith.constant dense<0xFF800000> : vector<8xf32>
    %62 = vector.multi_reduction <maximumf>, %61, %cst_47 [1] : vector<8x8xf32> to vector<8xf32>
    %63 = vector.shape_cast %62 : vector<8xf32> to vector<8x1xf32>
    %64 = vector.broadcast %63 : vector<8x1xf32> to vector<8x8xf32>
    %65 = arith.subf %61, %64 : vector<8x8xf32>
    %66 = math.exp %65 : vector<8x8xf32>
    %cst_48 = arith.constant dense<0.000000e+00> : vector<8xf32>
    %67 = vector.multi_reduction <add>, %66, %cst_48 [1] : vector<8x8xf32> to vector<8xf32>
    %68 = vector.shape_cast %67 : vector<8xf32> to vector<8x1xf32>
    %69 = arith.truncf %66 : vector<8x8xf32> to vector<8x8xbf16>
    %cst_49 = arith.constant dense<0.000000e+00> : vector<8x32xf32>
    %70 = tpu.matmul %69, %52, %cst_49 {dimension_numbers = #tpu.dot_dimension_numbers<[1], [0], [0], [1], [0, 0, 1, 1], [], []>} : vector<8x8xbf16>, vector<8x32xbf16>, vector<8x32xf32> -> vector<8x32xf32>
    %71 = vector.broadcast %68 : vector<8x1xf32> to vector<8x32xf32>
    %72 = arith.divf %70, %71 : vector<8x32xf32>
    %c0_50 = arith.constant 0 : index
    %c0_51 = arith.constant 0 : index
    %c32 = arith.constant 32 : index
    %73 = vector.load %arg6[%c0_50, %c0_51, %c32] : memref<1x8x64xf32, #tpu.memory_space<vmem>>, vector<1x8x32xf32>
    %74 = vector.shape_cast %73 : vector<1x8x32xf32> to vector<8x32xf32>
    %75 = vector.shape_cast %72 : vector<8x32xf32> to vector<1x8x32xf32>
    tpu.vector_store %arg6[%c0_50, %c0_51, %c32], %75 {strides = array<i32>} : memref<1x8x64xf32, #tpu.memory_space<vmem>>, vector<1x8x32xf32>,
    return
  }
  func.func @transform_0(%arg0: i32) -> (i32, i32, i32, i32) {
    %c0_i32 = arith.constant 0 : i32
    %c0_i32_0 = arith.constant 0 : i32
    %c0_i32_1 = arith.constant 0 : i32
    %c0_i32_2 = arith.constant 0 : i32
    return %arg0, %c0_i32, %c0_i32_0, %c0_i32_1 : i32, i32, i32, i32
  }
  func.func @transform_1(%arg0: i32) -> (i32, i32, i32, i32) {
    %c0_i32 = arith.constant 0 : i32
    %c0_i32_0 = arith.constant 0 : i32
    %c0_i32_1 = arith.constant 0 : i32
    %c0_i32_2 = arith.constant 0 : i32
    return %arg0, %c0_i32, %c0_i32_0, %c0_i32_1 : i32, i32, i32, i32
  }
  func.func @transform_2(%arg0: i32) -> (i32, i32, i32, i32) {
    %c0_i32 = arith.constant 0 : i32
    %c0_i32_0 = arith.constant 0 : i32
    %c0_i32_1 = arith.constant 0 : i32
    %c0_i32_2 = arith.constant 0 : i32
    return %arg0, %c0_i32, %c0_i32_0, %c0_i32_1 : i32, i32, i32, i32
  }
  func.func @transform_3(%arg0: i32) -> (i32, i32, i32, i32) {
    %c0_i32 = arith.constant 0 : i32
    %c0_i32_0 = arith.constant 0 : i32
    %c0_i32_1 = arith.constant 0 : i32
    %c0_i32_2 = arith.constant 0 : i32
    return %arg0, %c0_i32, %c0_i32_0, %c0_i32_1 : i32, i32, i32, i32
  }
  func.func @transform_4(%arg0: i32) -> (i32, i32, i32, i32) {
    %c0_i32 = arith.constant 0 : i32
    %c0_i32_0 = arith.constant 0 : i32
    %c0_i32_1 = arith.constant 0 : i32
    %c0_i32_2 = arith.constant 0 : i32
    return %arg0, %c0_i32, %c0_i32_0, %c0_i32_1 : i32, i32, i32, i32
  }
  func.func @transform_5(%arg0: i32) -> (i32, i32, i32) {
    %c0_i32 = arith.constant 0 : i32
    %c0_i32_0 = arith.constant 0 : i32
    %c0_i32_1 = arith.constant 0 : i32
    return %arg0, %c0_i32, %c0_i32_0 : i32, i32, i32
  }
}

module attributes {stable_mosaic.version = 11 : i64} {
  func.func @_swiglu_kernel(%arg0: i32, %arg1: i32, %arg2: memref<16x128xf32, #tpu.memory_space<vmem>>, %arg3: memref<1x128xf32, #tpu.memory_space<vmem>>, %arg4: memref<128x256xbf16, #tpu.memory_space<vmem>>, %arg5: memref<128x256xbf16, #tpu.memory_space<vmem>>, %arg6: memref<256x128xbf16, #tpu.memory_space<vmem>>, %arg7: memref<16x128xf32, #tpu.memory_space<vmem>>, %arg8: memref<16x128xbf16, #tpu.memory_space<vmem>>, %arg9: memref<16x128xf32, #tpu.memory_space<vmem>>) attributes {dimension_semantics = [#tpu.dimension_semantics<parallel>, #tpu.dimension_semantics<arbitrary>], iteration_bounds = array<i64: 1, 1>, scalar_prefetch = 0 : i64, scratch_operands = 2 : i64, tpu.core_type = #tpu.core_type<tc>, window_params = [{transform_indices = @transform_0, window_bounds = array<i64: 16, 128>}, {pipeline_mode = #tpu.pipeline_mode<synchronous>, transform_indices = @transform_1, window_bounds = array<i64: 1, 128>}, {transform_indices = @transform_2, window_bounds = array<i64: 128, 256>}, {transform_indices = @transform_3, window_bounds = array<i64: 128, 256>}, {transform_indices = @transform_4, window_bounds = array<i64: 256, 128>}, {transform_indices = @transform_5, window_bounds = array<i64: 16, 128>}]} {
    %c0_i32 = arith.constant 0 : i32
    %0 = arith.cmpi eq, %arg1, %c0_i32 : i32
    %1 = arith.extui %0 : i1 to i32
    %c0_i32_0 = arith.constant 0 : i32
    %2 = arith.cmpi ne, %1, %c0_i32_0 : i32
    scf.if %2 {
      %c0_17 = arith.constant 0 : index
      %c0_18 = arith.constant 0 : index
      %24 = vector.load %arg2[%c0_17, %c0_18] : memref<16x128xf32, #tpu.memory_space<vmem>>, vector<16x128xf32>
      %25 = arith.mulf %24, %24 : vector<16x128xf32>
      %cst_19 = arith.constant dense<0.000000e+00> : vector<16xf32>
      %26 = vector.multi_reduction <add>, %25, %cst_19 [1] : vector<16x128xf32> to vector<16xf32>
      %27 = vector.shape_cast %26 : vector<16xf32> to vector<16x1xf32>
      %cst_20 = arith.constant 1.280000e+02 : f32
      %28 = vector.broadcast %cst_20 : f32 to vector<16x1xf32>
      %29 = arith.divf %27, %28 : vector<16x1xf32>
      %cst_21 = arith.constant 9.99999997E-7 : f32
      %30 = vector.broadcast %cst_21 : f32 to vector<16x1xf32>
      %31 = arith.addf %29, %30 : vector<16x1xf32>
      %32 = math.rsqrt %31 : vector<16x1xf32>
      %33 = vector.broadcast %32 : vector<16x1xf32> to vector<16x128xf32>
      %34 = arith.mulf %24, %33 : vector<16x128xf32>
      %c0_22 = arith.constant 0 : index
      %c0_23 = arith.constant 0 : index
      %35 = vector.load %arg3[%c0_22, %c0_23] : memref<1x128xf32, #tpu.memory_space<vmem>>, vector<1x128xf32>
      %36 = vector.broadcast %35 : vector<1x128xf32> to vector<16x128xf32>
      %37 = arith.mulf %34, %36 : vector<16x128xf32>
      %38 = arith.truncf %37 : vector<16x128xf32> to vector<16x128xbf16>
      %c0_24 = arith.constant 0 : index
      %c0_25 = arith.constant 0 : index
      %39 = vector.load %arg8[%c0_24, %c0_25] : memref<16x128xbf16, #tpu.memory_space<vmem>>, vector<16x128xbf16>
      tpu.vector_store %arg8[%c0_24, %c0_25], %38 {strides = array<i32>} : memref<16x128xbf16, #tpu.memory_space<vmem>>, vector<16x128xbf16>,
      %cst_26 = arith.constant 0.000000e+00 : f32
      %40 = vector.broadcast %cst_26 : f32 to vector<16x128xf32>
      %c0_27 = arith.constant 0 : index
      %c0_28 = arith.constant 0 : index
      %41 = vector.load %arg9[%c0_27, %c0_28] : memref<16x128xf32, #tpu.memory_space<vmem>>, vector<16x128xf32>
      tpu.vector_store %arg9[%c0_27, %c0_28], %40 {strides = array<i32>} : memref<16x128xf32, #tpu.memory_space<vmem>>, vector<16x128xf32>,
    } else {
    }
    %c0 = arith.constant 0 : index
    %c0_1 = arith.constant 0 : index
    %3 = vector.load %arg8[%c0, %c0_1] : memref<16x128xbf16, #tpu.memory_space<vmem>>, vector<16x128xbf16>
    %c0_2 = arith.constant 0 : index
    %c0_3 = arith.constant 0 : index
    %4 = vector.load %arg4[%c0_2, %c0_3] : memref<128x256xbf16, #tpu.memory_space<vmem>>, vector<128x256xbf16>
    %cst = arith.constant dense<0.000000e+00> : vector<16x256xf32>
    %5 = tpu.matmul %3, %4, %cst {dimension_numbers = #tpu.dot_dimension_numbers<[1], [0], [0], [1], [0, 0, 1, 1], [], []>} : vector<16x128xbf16>, vector<128x256xbf16>, vector<16x256xf32> -> vector<16x256xf32>
    %c0_4 = arith.constant 0 : index
    %c0_5 = arith.constant 0 : index
    %6 = vector.load %arg5[%c0_4, %c0_5] : memref<128x256xbf16, #tpu.memory_space<vmem>>, vector<128x256xbf16>
    %cst_6 = arith.constant dense<0.000000e+00> : vector<16x256xf32>
    %7 = tpu.matmul %3, %6, %cst_6 {dimension_numbers = #tpu.dot_dimension_numbers<[1], [0], [0], [1], [0, 0, 1, 1], [], []>} : vector<16x128xbf16>, vector<128x256xbf16>, vector<16x256xf32> -> vector<16x256xf32>
    %8 = arith.negf %5 : vector<16x256xf32>
    %9 = math.exp %8 : vector<16x256xf32>
    %cst_7 = arith.constant 1.000000e+00 : f32
    %10 = vector.broadcast %cst_7 : f32 to vector<16x256xf32>
    %11 = arith.addf %10, %9 : vector<16x256xf32>
    %12 = arith.divf %10, %11 : vector<16x256xf32>
    %13 = arith.mulf %5, %12 : vector<16x256xf32>
    %14 = arith.mulf %13, %7 : vector<16x256xf32>
    %c0_8 = arith.constant 0 : index
    %c0_9 = arith.constant 0 : index
    %15 = vector.load %arg9[%c0_8, %c0_9] : memref<16x128xf32, #tpu.memory_space<vmem>>, vector<16x128xf32>
    %16 = arith.truncf %14 : vector<16x256xf32> to vector<16x256xbf16>
    %c0_10 = arith.constant 0 : index
    %c0_11 = arith.constant 0 : index
    %17 = vector.load %arg6[%c0_10, %c0_11] : memref<256x128xbf16, #tpu.memory_space<vmem>>, vector<256x128xbf16>
    %cst_12 = arith.constant dense<0.000000e+00> : vector<16x128xf32>
    %18 = tpu.matmul %16, %17, %cst_12 {dimension_numbers = #tpu.dot_dimension_numbers<[1], [0], [0], [1], [0, 0, 1, 1], [], []>} : vector<16x256xbf16>, vector<256x128xbf16>, vector<16x128xf32> -> vector<16x128xf32>
    %19 = arith.addf %15, %18 : vector<16x128xf32>
    %c0_13 = arith.constant 0 : index
    %c0_14 = arith.constant 0 : index
    %20 = vector.load %arg9[%c0_13, %c0_14] : memref<16x128xf32, #tpu.memory_space<vmem>>, vector<16x128xf32>
    tpu.vector_store %arg9[%c0_13, %c0_14], %19 {strides = array<i32>} : memref<16x128xf32, #tpu.memory_space<vmem>>, vector<16x128xf32>,
    %c0_i32_15 = arith.constant 0 : i32
    %21 = arith.cmpi eq, %arg1, %c0_i32_15 : i32
    %22 = arith.extui %21 : i1 to i32
    %c0_i32_16 = arith.constant 0 : i32
    %23 = arith.cmpi ne, %22, %c0_i32_16 : i32
    scf.if %23 {
      %c0_17 = arith.constant 0 : index
      %c0_18 = arith.constant 0 : index
      %24 = vector.load %arg9[%c0_17, %c0_18] : memref<16x128xf32, #tpu.memory_space<vmem>>, vector<16x128xf32>
      %c0_19 = arith.constant 0 : index
      %c0_20 = arith.constant 0 : index
      %25 = vector.load %arg7[%c0_19, %c0_20] : memref<16x128xf32, #tpu.memory_space<vmem>>, vector<16x128xf32>
      tpu.vector_store %arg7[%c0_19, %c0_20], %24 {strides = array<i32>} : memref<16x128xf32, #tpu.memory_space<vmem>>, vector<16x128xf32>,
    } else {
    }
    return
  }
  func.func @transform_0(%arg0: i32, %arg1: i32) -> (i32, i32) {
    %c0_i32 = arith.constant 0 : i32
    %c0_i32_0 = arith.constant 0 : i32
    return %arg0, %c0_i32 : i32, i32
  }
  func.func @transform_1(%arg0: i32, %arg1: i32) -> (i32, i32) {
    %c0_i32 = arith.constant 0 : i32
    %c0_i32_0 = arith.constant 0 : i32
    %c0_i32_1 = arith.constant 0 : i32
    return %c0_i32, %c0_i32_0 : i32, i32
  }
  func.func @transform_2(%arg0: i32, %arg1: i32) -> (i32, i32) {
    %c0_i32 = arith.constant 0 : i32
    %c0_i32_0 = arith.constant 0 : i32
    return %c0_i32, %arg1 : i32, i32
  }
  func.func @transform_3(%arg0: i32, %arg1: i32) -> (i32, i32) {
    %c0_i32 = arith.constant 0 : i32
    %c0_i32_0 = arith.constant 0 : i32
    return %c0_i32, %arg1 : i32, i32
  }
  func.func @transform_4(%arg0: i32, %arg1: i32) -> (i32, i32) {
    %c0_i32 = arith.constant 0 : i32
    %c0_i32_0 = arith.constant 0 : i32
    return %arg1, %c0_i32 : i32, i32
  }
  func.func @transform_5(%arg0: i32, %arg1: i32) -> (i32, i32) {
    %c0_i32 = arith.constant 0 : i32
    %c0_i32_0 = arith.constant 0 : i32
    return %arg0, %c0_i32 : i32, i32
  }
}

module attributes {stable_mosaic.version = 11 : i64} {
  func.func @_rmsnorm_kernel(%arg0: i32, %arg1: memref<16x128xf32, #tpu.memory_space<vmem>>, %arg2: memref<1x128xf32, #tpu.memory_space<vmem>>, %arg3: memref<16x128xf32, #tpu.memory_space<vmem>>) attributes {dimension_semantics = [#tpu.dimension_semantics<parallel>], iteration_bounds = array<i64: 1>, scalar_prefetch = 0 : i64, scratch_operands = 0 : i64, tpu.core_type = #tpu.core_type<tc>, window_params = [{transform_indices = @transform_0, window_bounds = array<i64: 16, 128>}, {pipeline_mode = #tpu.pipeline_mode<synchronous>, transform_indices = @transform_1, window_bounds = array<i64: 1, 128>}, {transform_indices = @transform_2, window_bounds = array<i64: 16, 128>}]} {
    %c0 = arith.constant 0 : index
    %c0_0 = arith.constant 0 : index
    %0 = vector.load %arg1[%c0, %c0_0] : memref<16x128xf32, #tpu.memory_space<vmem>>, vector<16x128xf32>
    %1 = arith.mulf %0, %0 : vector<16x128xf32>
    %cst = arith.constant dense<0.000000e+00> : vector<16xf32>
    %2 = vector.multi_reduction <add>, %1, %cst [1] : vector<16x128xf32> to vector<16xf32>
    %3 = vector.shape_cast %2 : vector<16xf32> to vector<16x1xf32>
    %cst_1 = arith.constant 1.280000e+02 : f32
    %4 = vector.broadcast %cst_1 : f32 to vector<16x1xf32>
    %5 = arith.divf %3, %4 : vector<16x1xf32>
    %cst_2 = arith.constant 9.99999997E-7 : f32
    %6 = vector.broadcast %cst_2 : f32 to vector<16x1xf32>
    %7 = arith.addf %5, %6 : vector<16x1xf32>
    %8 = math.rsqrt %7 : vector<16x1xf32>
    %9 = vector.broadcast %8 : vector<16x1xf32> to vector<16x128xf32>
    %10 = arith.mulf %0, %9 : vector<16x128xf32>
    %c0_3 = arith.constant 0 : index
    %c0_4 = arith.constant 0 : index
    %11 = vector.load %arg2[%c0_3, %c0_4] : memref<1x128xf32, #tpu.memory_space<vmem>>, vector<1x128xf32>
    %12 = vector.broadcast %11 : vector<1x128xf32> to vector<16x128xf32>
    %13 = arith.mulf %10, %12 : vector<16x128xf32>
    %c0_5 = arith.constant 0 : index
    %c0_6 = arith.constant 0 : index
    %14 = vector.load %arg3[%c0_5, %c0_6] : memref<16x128xf32, #tpu.memory_space<vmem>>, vector<16x128xf32>
    tpu.vector_store %arg3[%c0_5, %c0_6], %13 {strides = array<i32>} : memref<16x128xf32, #tpu.memory_space<vmem>>, vector<16x128xf32>,
    return
  }
  func.func @transform_0(%arg0: i32) -> (i32, i32) {
    %c0_i32 = arith.constant 0 : i32
    %c0_i32_0 = arith.constant 0 : i32
    return %arg0, %c0_i32 : i32, i32
  }
  func.func @transform_1(%arg0: i32) -> (i32, i32) {
    %c0_i32 = arith.constant 0 : i32
    %c0_i32_0 = arith.constant 0 : i32
    %c0_i32_1 = arith.constant 0 : i32
    return %c0_i32, %c0_i32_0 : i32, i32
  }
  func.func @transform_2(%arg0: i32) -> (i32, i32) {
    %c0_i32 = arith.constant 0 : i32
    %c0_i32_0 = arith.constant 0 : i32
    return %arg0, %c0_i32 : i32, i32
  }
}

module attributes {stable_mosaic.version = 11 : i64} {
  func.func @_matmul_kernel(%arg0: i32, %arg1: i32, %arg2: i32, %arg3: memref<16x128xf32, #tpu.memory_space<vmem>>, %arg4: memref<128x4xbf16, #tpu.memory_space<vmem>>, %arg5: memref<16x4xf32, #tpu.memory_space<vmem>>, %arg6: memref<16x4xf32, #tpu.memory_space<vmem>>) attributes {dimension_semantics = [#tpu.dimension_semantics<parallel>, #tpu.dimension_semantics<parallel>, #tpu.dimension_semantics<arbitrary>], iteration_bounds = array<i64: 1, 1, 1>, scalar_prefetch = 0 : i64, scratch_operands = 1 : i64, tpu.core_type = #tpu.core_type<tc>, window_params = [{transform_indices = @transform_0, window_bounds = array<i64: 16, 128>}, {transform_indices = @transform_1, window_bounds = array<i64: 128, 4>}, {transform_indices = @transform_2, window_bounds = array<i64: 16, 4>}]} {
    %c0_i32 = arith.constant 0 : i32
    %0 = arith.cmpi eq, %arg2, %c0_i32 : i32
    %1 = arith.extui %0 : i1 to i32
    %c0_i32_0 = arith.constant 0 : i32
    %2 = arith.cmpi ne, %1, %c0_i32_0 : i32
    scf.if %2 {
      %cst_10 = arith.constant 0.000000e+00 : f32
      %13 = vector.broadcast %cst_10 : f32 to vector<16x4xf32>
      %c0_11 = arith.constant 0 : index
      %c0_12 = arith.constant 0 : index
      %14 = vector.load %arg6[%c0_11, %c0_12] : memref<16x4xf32, #tpu.memory_space<vmem>>, vector<16x4xf32>
      tpu.vector_store %arg6[%c0_11, %c0_12], %13 {strides = array<i32>} : memref<16x4xf32, #tpu.memory_space<vmem>>, vector<16x4xf32>,
    } else {
    }
    %c0 = arith.constant 0 : index
    %c0_1 = arith.constant 0 : index
    %3 = vector.load %arg6[%c0, %c0_1] : memref<16x4xf32, #tpu.memory_space<vmem>>, vector<16x4xf32>
    %c0_2 = arith.constant 0 : index
    %c0_3 = arith.constant 0 : index
    %4 = vector.load %arg3[%c0_2, %c0_3] : memref<16x128xf32, #tpu.memory_space<vmem>>, vector<16x128xf32>
    %5 = arith.truncf %4 : vector<16x128xf32> to vector<16x128xbf16>
    %c0_4 = arith.constant 0 : index
    %c0_5 = arith.constant 0 : index
    %6 = vector.load %arg4[%c0_4, %c0_5] : memref<128x4xbf16, #tpu.memory_space<vmem>>, vector<128x4xbf16>
    %cst = arith.constant dense<0.000000e+00> : vector<16x4xf32>
    %7 = tpu.matmul %5, %6, %cst {dimension_numbers = #tpu.dot_dimension_numbers<[1], [0], [0], [1], [0, 0, 1, 1], [], []>} : vector<16x128xbf16>, vector<128x4xbf16>, vector<16x4xf32> -> vector<16x4xf32>
    %8 = arith.addf %3, %7 : vector<16x4xf32>
    %c0_6 = arith.constant 0 : index
    %c0_7 = arith.constant 0 : index
    %9 = vector.load %arg6[%c0_6, %c0_7] : memref<16x4xf32, #tpu.memory_space<vmem>>, vector<16x4xf32>
    tpu.vector_store %arg6[%c0_6, %c0_7], %8 {strides = array<i32>} : memref<16x4xf32, #tpu.memory_space<vmem>>, vector<16x4xf32>,
    %c0_i32_8 = arith.constant 0 : i32
    %10 = arith.cmpi eq, %arg2, %c0_i32_8 : i32
    %11 = arith.extui %10 : i1 to i32
    %c0_i32_9 = arith.constant 0 : i32
    %12 = arith.cmpi ne, %11, %c0_i32_9 : i32
    scf.if %12 {
      %c0_10 = arith.constant 0 : index
      %c0_11 = arith.constant 0 : index
      %13 = vector.load %arg6[%c0_10, %c0_11] : memref<16x4xf32, #tpu.memory_space<vmem>>, vector<16x4xf32>
      %c0_12 = arith.constant 0 : index
      %c0_13 = arith.constant 0 : index
      %14 = vector.load %arg5[%c0_12, %c0_13] : memref<16x4xf32, #tpu.memory_space<vmem>>, vector<16x4xf32>
      tpu.vector_store %arg5[%c0_12, %c0_13], %13 {strides = array<i32>} : memref<16x4xf32, #tpu.memory_space<vmem>>, vector<16x4xf32>,
    } else {
    }
    return
  }
  func.func @transform_0(%arg0: i32, %arg1: i32, %arg2: i32) -> (i32, i32) {
    %c0_i32 = arith.constant 0 : i32
    return %arg0, %arg2 : i32, i32
  }
  func.func @transform_1(%arg0: i32, %arg1: i32, %arg2: i32) -> (i32, i32) {
    %c0_i32 = arith.constant 0 : i32
    return %arg2, %arg1 : i32, i32
  }
  func.func @transform_2(%arg0: i32, %arg1: i32, %arg2: i32) -> (i32, i32) {
    %c0_i32 = arith.constant 0 : i32
    return %arg0, %arg1 : i32, i32
  }
}

module attributes {stable_mosaic.version = 11 : i64} {
  func.func @_swiglu_kernel(%arg0: i32, %arg1: i32, %arg2: memref<16x128xf32, #tpu.memory_space<vmem>>, %arg3: memref<1x128xf32, #tpu.memory_space<vmem>>, %arg4: memref<128x64xbf16, #tpu.memory_space<vmem>>, %arg5: memref<128x64xbf16, #tpu.memory_space<vmem>>, %arg6: memref<64x128xbf16, #tpu.memory_space<vmem>>, %arg7: memref<16x128xf32, #tpu.memory_space<vmem>>, %arg8: memref<16x128xbf16, #tpu.memory_space<vmem>>, %arg9: memref<16x128xf32, #tpu.memory_space<vmem>>) attributes {dimension_semantics = [#tpu.dimension_semantics<parallel>, #tpu.dimension_semantics<arbitrary>], iteration_bounds = array<i64: 1, 1>, scalar_prefetch = 0 : i64, scratch_operands = 2 : i64, tpu.core_type = #tpu.core_type<tc>, window_params = [{transform_indices = @transform_0, window_bounds = array<i64: 16, 128>}, {pipeline_mode = #tpu.pipeline_mode<synchronous>, transform_indices = @transform_1, window_bounds = array<i64: 1, 128>}, {transform_indices = @transform_2, window_bounds = array<i64: 128, 64>}, {transform_indices = @transform_3, window_bounds = array<i64: 128, 64>}, {transform_indices = @transform_4, window_bounds = array<i64: 64, 128>}, {transform_indices = @transform_5, window_bounds = array<i64: 16, 128>}]} {
    %c0_i32 = arith.constant 0 : i32
    %0 = arith.cmpi eq, %arg1, %c0_i32 : i32
    %1 = arith.extui %0 : i1 to i32
    %c0_i32_0 = arith.constant 0 : i32
    %2 = arith.cmpi ne, %1, %c0_i32_0 : i32
    scf.if %2 {
      %c0_17 = arith.constant 0 : index
      %c0_18 = arith.constant 0 : index
      %24 = vector.load %arg2[%c0_17, %c0_18] : memref<16x128xf32, #tpu.memory_space<vmem>>, vector<16x128xf32>
      %25 = arith.truncf %24 : vector<16x128xf32> to vector<16x128xbf16>
      %c0_19 = arith.constant 0 : index
      %c0_20 = arith.constant 0 : index
      %26 = vector.load %arg8[%c0_19, %c0_20] : memref<16x128xbf16, #tpu.memory_space<vmem>>, vector<16x128xbf16>
      tpu.vector_store %arg8[%c0_19, %c0_20], %25 {strides = array<i32>} : memref<16x128xbf16, #tpu.memory_space<vmem>>, vector<16x128xbf16>,
      %cst_21 = arith.constant 0.000000e+00 : f32
      %27 = vector.broadcast %cst_21 : f32 to vector<16x128xf32>
      %c0_22 = arith.constant 0 : index
      %c0_23 = arith.constant 0 : index
      %28 = vector.load %arg9[%c0_22, %c0_23] : memref<16x128xf32, #tpu.memory_space<vmem>>, vector<16x128xf32>
      tpu.vector_store %arg9[%c0_22, %c0_23], %27 {strides = array<i32>} : memref<16x128xf32, #tpu.memory_space<vmem>>, vector<16x128xf32>,
    } else {
    }
    %c0 = arith.constant 0 : index
    %c0_1 = arith.constant 0 : index
    %3 = vector.load %arg8[%c0, %c0_1] : memref<16x128xbf16, #tpu.memory_space<vmem>>, vector<16x128xbf16>
    %c0_2 = arith.constant 0 : index
    %c0_3 = arith.constant 0 : index
    %4 = vector.load %arg4[%c0_2, %c0_3] : memref<128x64xbf16, #tpu.memory_space<vmem>>, vector<128x64xbf16>
    %cst = arith.constant dense<0.000000e+00> : vector<16x64xf32>
    %5 = tpu.matmul %3, %4, %cst {dimension_numbers = #tpu.dot_dimension_numbers<[1], [0], [0], [1], [0, 0, 1, 1], [], []>} : vector<16x128xbf16>, vector<128x64xbf16>, vector<16x64xf32> -> vector<16x64xf32>
    %c0_4 = arith.constant 0 : index
    %c0_5 = arith.constant 0 : index
    %6 = vector.load %arg5[%c0_4, %c0_5] : memref<128x64xbf16, #tpu.memory_space<vmem>>, vector<128x64xbf16>
    %cst_6 = arith.constant dense<0.000000e+00> : vector<16x64xf32>
    %7 = tpu.matmul %3, %6, %cst_6 {dimension_numbers = #tpu.dot_dimension_numbers<[1], [0], [0], [1], [0, 0, 1, 1], [], []>} : vector<16x128xbf16>, vector<128x64xbf16>, vector<16x64xf32> -> vector<16x64xf32>
    %8 = arith.negf %5 : vector<16x64xf32>
    %9 = math.exp %8 : vector<16x64xf32>
    %cst_7 = arith.constant 1.000000e+00 : f32
    %10 = vector.broadcast %cst_7 : f32 to vector<16x64xf32>
    %11 = arith.addf %10, %9 : vector<16x64xf32>
    %12 = arith.divf %10, %11 : vector<16x64xf32>
    %13 = arith.mulf %5, %12 : vector<16x64xf32>
    %14 = arith.mulf %13, %7 : vector<16x64xf32>
    %c0_8 = arith.constant 0 : index
    %c0_9 = arith.constant 0 : index
    %15 = vector.load %arg9[%c0_8, %c0_9] : memref<16x128xf32, #tpu.memory_space<vmem>>, vector<16x128xf32>
    %16 = arith.truncf %14 : vector<16x64xf32> to vector<16x64xbf16>
    %c0_10 = arith.constant 0 : index
    %c0_11 = arith.constant 0 : index
    %17 = vector.load %arg6[%c0_10, %c0_11] : memref<64x128xbf16, #tpu.memory_space<vmem>>, vector<64x128xbf16>
    %cst_12 = arith.constant dense<0.000000e+00> : vector<16x128xf32>
    %18 = tpu.matmul %16, %17, %cst_12 {dimension_numbers = #tpu.dot_dimension_numbers<[1], [0], [0], [1], [0, 0, 1, 1], [], []>} : vector<16x64xbf16>, vector<64x128xbf16>, vector<16x128xf32> -> vector<16x128xf32>
    %19 = arith.addf %15, %18 : vector<16x128xf32>
    %c0_13 = arith.constant 0 : index
    %c0_14 = arith.constant 0 : index
    %20 = vector.load %arg9[%c0_13, %c0_14] : memref<16x128xf32, #tpu.memory_space<vmem>>, vector<16x128xf32>
    tpu.vector_store %arg9[%c0_13, %c0_14], %19 {strides = array<i32>} : memref<16x128xf32, #tpu.memory_space<vmem>>, vector<16x128xf32>,
    %c0_i32_15 = arith.constant 0 : i32
    %21 = arith.cmpi eq, %arg1, %c0_i32_15 : i32
    %22 = arith.extui %21 : i1 to i32
    %c0_i32_16 = arith.constant 0 : i32
    %23 = arith.cmpi ne, %22, %c0_i32_16 : i32
    scf.if %23 {
      %c0_17 = arith.constant 0 : index
      %c0_18 = arith.constant 0 : index
      %24 = vector.load %arg9[%c0_17, %c0_18] : memref<16x128xf32, #tpu.memory_space<vmem>>, vector<16x128xf32>
      %c0_19 = arith.constant 0 : index
      %c0_20 = arith.constant 0 : index
      %25 = vector.load %arg7[%c0_19, %c0_20] : memref<16x128xf32, #tpu.memory_space<vmem>>, vector<16x128xf32>
      tpu.vector_store %arg7[%c0_19, %c0_20], %24 {strides = array<i32>} : memref<16x128xf32, #tpu.memory_space<vmem>>, vector<16x128xf32>,
    } else {
    }
    return
  }
  func.func @transform_0(%arg0: i32, %arg1: i32) -> (i32, i32) {
    %c0_i32 = arith.constant 0 : i32
    %c0_i32_0 = arith.constant 0 : i32
    return %arg0, %c0_i32 : i32, i32
  }
  func.func @transform_1(%arg0: i32, %arg1: i32) -> (i32, i32) {
    %c0_i32 = arith.constant 0 : i32
    %c0_i32_0 = arith.constant 0 : i32
    %c0_i32_1 = arith.constant 0 : i32
    return %c0_i32, %c0_i32_0 : i32, i32
  }
  func.func @transform_2(%arg0: i32, %arg1: i32) -> (i32, i32) {
    %c0_i32 = arith.constant 0 : i32
    %c0_i32_0 = arith.constant 0 : i32
    return %c0_i32, %arg1 : i32, i32
  }
  func.func @transform_3(%arg0: i32, %arg1: i32) -> (i32, i32) {
    %c0_i32 = arith.constant 0 : i32
    %c0_i32_0 = arith.constant 0 : i32
    return %c0_i32, %arg1 : i32, i32
  }
  func.func @transform_4(%arg0: i32, %arg1: i32) -> (i32, i32) {
    %c0_i32 = arith.constant 0 : i32
    %c0_i32_0 = arith.constant 0 : i32
    return %arg1, %c0_i32 : i32, i32
  }
  func.func @transform_5(%arg0: i32, %arg1: i32) -> (i32, i32) {
    %c0_i32 = arith.constant 0 : i32
    %c0_i32_0 = arith.constant 0 : i32
    return %arg0, %c0_i32 : i32, i32
  }
}

module attributes {stable_mosaic.version = 11 : i64} {
  func.func @_norm_matmul_kernel(%arg0: i32, %arg1: i32, %arg2: memref<16x128xf32, #tpu.memory_space<vmem>>, %arg3: memref<1x128xf32, #tpu.memory_space<vmem>>, %arg4: memref<128x256xbf16, #tpu.memory_space<vmem>>, %arg5: memref<16x256xf32, #tpu.memory_space<vmem>>) attributes {dimension_semantics = [#tpu.dimension_semantics<parallel>, #tpu.dimension_semantics<parallel>], iteration_bounds = array<i64: 1, 1>, scalar_prefetch = 0 : i64, scratch_operands = 0 : i64, tpu.core_type = #tpu.core_type<tc>, window_params = [{transform_indices = @transform_0, window_bounds = array<i64: 16, 128>}, {pipeline_mode = #tpu.pipeline_mode<synchronous>, transform_indices = @transform_1, window_bounds = array<i64: 1, 128>}, {transform_indices = @transform_2, window_bounds = array<i64: 128, 256>}, {transform_indices = @transform_3, window_bounds = array<i64: 16, 256>}]} {
    %c0 = arith.constant 0 : index
    %c0_0 = arith.constant 0 : index
    %0 = vector.load %arg2[%c0, %c0_0] : memref<16x128xf32, #tpu.memory_space<vmem>>, vector<16x128xf32>
    %1 = arith.mulf %0, %0 : vector<16x128xf32>
    %cst = arith.constant dense<0.000000e+00> : vector<16xf32>
    %2 = vector.multi_reduction <add>, %1, %cst [1] : vector<16x128xf32> to vector<16xf32>
    %3 = vector.shape_cast %2 : vector<16xf32> to vector<16x1xf32>
    %cst_1 = arith.constant 1.280000e+02 : f32
    %4 = vector.broadcast %cst_1 : f32 to vector<16x1xf32>
    %5 = arith.divf %3, %4 : vector<16x1xf32>
    %cst_2 = arith.constant 9.99999997E-7 : f32
    %6 = vector.broadcast %cst_2 : f32 to vector<16x1xf32>
    %7 = arith.addf %5, %6 : vector<16x1xf32>
    %8 = math.rsqrt %7 : vector<16x1xf32>
    %9 = vector.broadcast %8 : vector<16x1xf32> to vector<16x128xf32>
    %10 = arith.mulf %0, %9 : vector<16x128xf32>
    %c0_3 = arith.constant 0 : index
    %c0_4 = arith.constant 0 : index
    %11 = vector.load %arg3[%c0_3, %c0_4] : memref<1x128xf32, #tpu.memory_space<vmem>>, vector<1x128xf32>
    %12 = vector.broadcast %11 : vector<1x128xf32> to vector<16x128xf32>
    %13 = arith.mulf %10, %12 : vector<16x128xf32>
    %14 = arith.truncf %13 : vector<16x128xf32> to vector<16x128xbf16>
    %c0_5 = arith.constant 0 : index
    %c0_6 = arith.constant 0 : index
    %15 = vector.load %arg4[%c0_5, %c0_6] : memref<128x256xbf16, #tpu.memory_space<vmem>>, vector<128x256xbf16>
    %cst_7 = arith.constant dense<0.000000e+00> : vector<16x256xf32>
    %16 = tpu.matmul %14, %15, %cst_7 {dimension_numbers = #tpu.dot_dimension_numbers<[1], [0], [0], [1], [0, 0, 1, 1], [], []>} : vector<16x128xbf16>, vector<128x256xbf16>, vector<16x256xf32> -> vector<16x256xf32>
    %c0_8 = arith.constant 0 : index
    %c0_9 = arith.constant 0 : index
    %17 = vector.load %arg5[%c0_8, %c0_9] : memref<16x256xf32, #tpu.memory_space<vmem>>, vector<16x256xf32>
    tpu.vector_store %arg5[%c0_8, %c0_9], %16 {strides = array<i32>} : memref<16x256xf32, #tpu.memory_space<vmem>>, vector<16x256xf32>,
    return
  }
  func.func @transform_0(%arg0: i32, %arg1: i32) -> (i32, i32) {
    %c0_i32 = arith.constant 0 : i32
    %c0_i32_0 = arith.constant 0 : i32
    return %arg0, %c0_i32 : i32, i32
  }
  func.func @transform_1(%arg0: i32, %arg1: i32) -> (i32, i32) {
    %c0_i32 = arith.constant 0 : i32
    %c0_i32_0 = arith.constant 0 : i32
    %c0_i32_1 = arith.constant 0 : i32
    return %c0_i32, %c0_i32_0 : i32, i32
  }
  func.func @transform_2(%arg0: i32, %arg1: i32) -> (i32, i32) {
    %c0_i32 = arith.constant 0 : i32
    %c0_i32_0 = arith.constant 0 : i32
    return %c0_i32, %arg1 : i32, i32
  }
  func.func @transform_3(%arg0: i32, %arg1: i32) -> (i32, i32) {
    %c0_i32 = arith.constant 0 : i32
    return %arg0, %arg1 : i32, i32
  }
}

module attributes {stable_mosaic.version = 11 : i64} {
  func.func @_moe_kernel(%arg0: i32, %arg1: i32, %arg2: memref<16x128xf32, #tpu.memory_space<vmem>>, %arg3: memref<1x16x1xf32, #tpu.memory_space<vmem>>, %arg4: memref<1x128x64xbf16, #tpu.memory_space<vmem>>, %arg5: memref<1x128x64xbf16, #tpu.memory_space<vmem>>, %arg6: memref<1x64x128xbf16, #tpu.memory_space<vmem>>, %arg7: memref<16x128xf32, #tpu.memory_space<vmem>>, %arg8: memref<16x128xf32, #tpu.memory_space<vmem>>) attributes {dimension_semantics = [#tpu.dimension_semantics<parallel>, #tpu.dimension_semantics<arbitrary>], iteration_bounds = array<i64: 1, 4>, scalar_prefetch = 0 : i64, scratch_operands = 1 : i64, tpu.core_type = #tpu.core_type<tc>, window_params = [{transform_indices = @transform_0, window_bounds = array<i64: 16, 128>}, {transform_indices = @transform_1, window_bounds = array<i64: 1, 16, 1>}, {transform_indices = @transform_2, window_bounds = array<i64: 1, 128, 64>}, {transform_indices = @transform_3, window_bounds = array<i64: 1, 128, 64>}, {transform_indices = @transform_4, window_bounds = array<i64: 1, 64, 128>}, {transform_indices = @transform_5, window_bounds = array<i64: 16, 128>}]} {
    %c0_i32 = arith.constant 0 : i32
    %0 = arith.cmpi eq, %arg1, %c0_i32 : i32
    %1 = arith.extui %0 : i1 to i32
    %c0_i32_0 = arith.constant 0 : i32
    %2 = arith.cmpi ne, %1, %c0_i32_0 : i32
    scf.if %2 {
      %cst_22 = arith.constant 0.000000e+00 : f32
      %32 = vector.broadcast %cst_22 : f32 to vector<16x128xf32>
      %c0_23 = arith.constant 0 : index
      %c0_24 = arith.constant 0 : index
      %33 = vector.load %arg8[%c0_23, %c0_24] : memref<16x128xf32, #tpu.memory_space<vmem>>, vector<16x128xf32>
      tpu.vector_store %arg8[%c0_23, %c0_24], %32 {strides = array<i32>} : memref<16x128xf32, #tpu.memory_space<vmem>>, vector<16x128xf32>,
    } else {
    }
    %c0 = arith.constant 0 : index
    %c0_1 = arith.constant 0 : index
    %3 = vector.load %arg2[%c0, %c0_1] : memref<16x128xf32, #tpu.memory_space<vmem>>, vector<16x128xf32>
    %4 = arith.truncf %3 : vector<16x128xf32> to vector<16x128xbf16>
    %c0_2 = arith.constant 0 : index
    %c0_3 = arith.constant 0 : index
    %c0_4 = arith.constant 0 : index
    %5 = vector.load %arg4[%c0_2, %c0_3, %c0_4] : memref<1x128x64xbf16, #tpu.memory_space<vmem>>, vector<1x128x64xbf16>
    %6 = vector.shape_cast %5 : vector<1x128x64xbf16> to vector<128x64xbf16>
    %cst = arith.constant dense<0.000000e+00> : vector<16x64xf32>
    %7 = tpu.matmul %4, %6, %cst {dimension_numbers = #tpu.dot_dimension_numbers<[1], [0], [0], [1], [0, 0, 1, 1], [], []>} : vector<16x128xbf16>, vector<128x64xbf16>, vector<16x64xf32> -> vector<16x64xf32>
    %c0_5 = arith.constant 0 : index
    %c0_6 = arith.constant 0 : index
    %c0_7 = arith.constant 0 : index
    %8 = vector.load %arg5[%c0_5, %c0_6, %c0_7] : memref<1x128x64xbf16, #tpu.memory_space<vmem>>, vector<1x128x64xbf16>
    %9 = vector.shape_cast %8 : vector<1x128x64xbf16> to vector<128x64xbf16>
    %cst_8 = arith.constant dense<0.000000e+00> : vector<16x64xf32>
    %10 = tpu.matmul %4, %9, %cst_8 {dimension_numbers = #tpu.dot_dimension_numbers<[1], [0], [0], [1], [0, 0, 1, 1], [], []>} : vector<16x128xbf16>, vector<128x64xbf16>, vector<16x64xf32> -> vector<16x64xf32>
    %11 = arith.negf %7 : vector<16x64xf32>
    %12 = math.exp %11 : vector<16x64xf32>
    %cst_9 = arith.constant 1.000000e+00 : f32
    %13 = vector.broadcast %cst_9 : f32 to vector<16x64xf32>
    %14 = arith.addf %13, %12 : vector<16x64xf32>
    %15 = arith.divf %13, %14 : vector<16x64xf32>
    %16 = arith.mulf %7, %15 : vector<16x64xf32>
    %17 = arith.mulf %16, %10 : vector<16x64xf32>
    %18 = arith.truncf %17 : vector<16x64xf32> to vector<16x64xbf16>
    %c0_10 = arith.constant 0 : index
    %c0_11 = arith.constant 0 : index
    %c0_12 = arith.constant 0 : index
    %19 = vector.load %arg6[%c0_10, %c0_11, %c0_12] : memref<1x64x128xbf16, #tpu.memory_space<vmem>>, vector<1x64x128xbf16>
    %20 = vector.shape_cast %19 : vector<1x64x128xbf16> to vector<64x128xbf16>
    %cst_13 = arith.constant dense<0.000000e+00> : vector<16x128xf32>
    %21 = tpu.matmul %18, %20, %cst_13 {dimension_numbers = #tpu.dot_dimension_numbers<[1], [0], [0], [1], [0, 0, 1, 1], [], []>} : vector<16x64xbf16>, vector<64x128xbf16>, vector<16x128xf32> -> vector<16x128xf32>
    %c0_14 = arith.constant 0 : index
    %c0_15 = arith.constant 0 : index
    %22 = vector.load %arg8[%c0_14, %c0_15] : memref<16x128xf32, #tpu.memory_space<vmem>>, vector<16x128xf32>
    %c0_16 = arith.constant 0 : index
    %c0_17 = arith.constant 0 : index
    %c0_18 = arith.constant 0 : index
    %23 = vector.load %arg3[%c0_16, %c0_17, %c0_18] : memref<1x16x1xf32, #tpu.memory_space<vmem>>, vector<1x16x1xf32>
    %24 = vector.shape_cast %23 : vector<1x16x1xf32> to vector<16x1xf32>
    %25 = vector.broadcast %24 : vector<16x1xf32> to vector<16x128xf32>
    %26 = arith.mulf %25, %21 : vector<16x128xf32>
    %27 = arith.addf %22, %26 : vector<16x128xf32>
    %c0_19 = arith.constant 0 : index
    %c0_20 = arith.constant 0 : index
    %28 = vector.load %arg8[%c0_19, %c0_20] : memref<16x128xf32, #tpu.memory_space<vmem>>, vector<16x128xf32>
    tpu.vector_store %arg8[%c0_19, %c0_20], %27 {strides = array<i32>} : memref<16x128xf32, #tpu.memory_space<vmem>>, vector<16x128xf32>,
    %c3_i32 = arith.constant 3 : i32
    %29 = arith.cmpi eq, %arg1, %c3_i32 : i32
    %30 = arith.extui %29 : i1 to i32
    %c0_i32_21 = arith.constant 0 : i32
    %31 = arith.cmpi ne, %30, %c0_i32_21 : i32
    scf.if %31 {
      %c0_22 = arith.constant 0 : index
      %c0_23 = arith.constant 0 : index
      %32 = vector.load %arg8[%c0_22, %c0_23] : memref<16x128xf32, #tpu.memory_space<vmem>>, vector<16x128xf32>
      %c0_24 = arith.constant 0 : index
      %c0_25 = arith.constant 0 : index
      %33 = vector.load %arg7[%c0_24, %c0_25] : memref<16x128xf32, #tpu.memory_space<vmem>>, vector<16x128xf32>
      tpu.vector_store %arg7[%c0_24, %c0_25], %32 {strides = array<i32>} : memref<16x128xf32, #tpu.memory_space<vmem>>, vector<16x128xf32>,
    } else {
    }
    return
  }
  func.func @transform_0(%arg0: i32, %arg1: i32) -> (i32, i32) {
    %c0_i32 = arith.constant 0 : i32
    %c0_i32_0 = arith.constant 0 : i32
    return %arg0, %c0_i32 : i32, i32
  }
  func.func @transform_1(%arg0: i32, %arg1: i32) -> (i32, i32, i32) {
    %c0_i32 = arith.constant 0 : i32
    %c0_i32_0 = arith.constant 0 : i32
    return %arg1, %arg0, %c0_i32 : i32, i32, i32
  }
  func.func @transform_2(%arg0: i32, %arg1: i32) -> (i32, i32, i32) {
    %c0_i32 = arith.constant 0 : i32
    %c0_i32_0 = arith.constant 0 : i32
    %c0_i32_1 = arith.constant 0 : i32
    return %arg1, %c0_i32, %c0_i32_0 : i32, i32, i32
  }
  func.func @transform_3(%arg0: i32, %arg1: i32) -> (i32, i32, i32) {
    %c0_i32 = arith.constant 0 : i32
    %c0_i32_0 = arith.constant 0 : i32
    %c0_i32_1 = arith.constant 0 : i32
    return %arg1, %c0_i32, %c0_i32_0 : i32, i32, i32
  }
  func.func @transform_4(%arg0: i32, %arg1: i32) -> (i32, i32, i32) {
    %c0_i32 = arith.constant 0 : i32
    %c0_i32_0 = arith.constant 0 : i32
    %c0_i32_1 = arith.constant 0 : i32
    return %arg1, %c0_i32, %c0_i32_0 : i32, i32, i32
  }
  func.func @transform_5(%arg0: i32, %arg1: i32) -> (i32, i32) {
    %c0_i32 = arith.constant 0 : i32
    %c0_i32_0 = arith.constant 0 : i32
    return %arg0, %c0_i32 : i32, i32
  }
}

module attributes {stable_mosaic.version = 11 : i64} {
  func.func @_xent_kernel(%arg0: i32, %arg1: memref<16x256xf32, #tpu.memory_space<vmem>>, %arg2: memref<16x1xi32, #tpu.memory_space<vmem>>, %arg3: memref<1x1xf32, #tpu.memory_space<vmem>>, %arg4: memref<1x1xf32, #tpu.memory_space<vmem>>) attributes {dimension_semantics = [#tpu.dimension_semantics<arbitrary>], iteration_bounds = array<i64: 1>, scalar_prefetch = 0 : i64, scratch_operands = 1 : i64, tpu.core_type = #tpu.core_type<tc>, window_params = [{transform_indices = @transform_0, window_bounds = array<i64: 16, 256>}, {transform_indices = @transform_1, window_bounds = array<i64: 16, 1>}, {pipeline_mode = #tpu.pipeline_mode<synchronous>, transform_indices = @transform_2, window_bounds = array<i64: 1, 1>}]} {
    %c0_i32 = arith.constant 0 : i32
    %0 = arith.cmpi eq, %arg0, %c0_i32 : i32
    %1 = arith.extui %0 : i1 to i32
    %c0_i32_0 = arith.constant 0 : i32
    %2 = arith.cmpi ne, %1, %c0_i32_0 : i32
    scf.if %2 {
      %cst_14 = arith.constant 0.000000e+00 : f32
      %33 = vector.broadcast %cst_14 : f32 to vector<1x1xf32>
      %c0_15 = arith.constant 0 : index
      %c0_16 = arith.constant 0 : index
      %34 = vector.load %arg4[%c0_15, %c0_16] : memref<1x1xf32, #tpu.memory_space<vmem>>, vector<1x1xf32>
      tpu.vector_store %arg4[%c0_15, %c0_16], %33 {strides = array<i32>} : memref<1x1xf32, #tpu.memory_space<vmem>>, vector<1x1xf32>,
    } else {
    }
    %c0 = arith.constant 0 : index
    %c0_1 = arith.constant 0 : index
    %3 = vector.load %arg1[%c0, %c0_1] : memref<16x256xf32, #tpu.memory_space<vmem>>, vector<16x256xf32>
    %cst = arith.constant dense<0xFF800000> : vector<16xf32>
    %4 = vector.multi_reduction <maximumf>, %3, %cst [1] : vector<16x256xf32> to vector<16xf32>
    %5 = vector.shape_cast %4 : vector<16xf32> to vector<16x1xf32>
    %6 = vector.broadcast %5 : vector<16x1xf32> to vector<16x256xf32>
    %7 = arith.subf %3, %6 : vector<16x256xf32>
    %8 = math.exp %7 : vector<16x256xf32>
    %cst_2 = arith.constant dense<0.000000e+00> : vector<16xf32>
    %9 = vector.multi_reduction <add>, %8, %cst_2 [1] : vector<16x256xf32> to vector<16xf32>
    %10 = vector.shape_cast %9 : vector<16xf32> to vector<16x1xf32>
    %11 = math.log %10 : vector<16x1xf32>
    %12 = arith.addf %11, %5 : vector<16x1xf32>
    %13 = tpu.iota {dimensions = array<i32: 1>} : vector<16x256xi32>
    %c0_3 = arith.constant 0 : index
    %c0_4 = arith.constant 0 : index
    %14 = vector.load %arg2[%c0_3, %c0_4] : memref<16x1xi32, #tpu.memory_space<vmem>>, vector<16x1xi32>
    %15 = vector.broadcast %14 : vector<16x1xi32> to vector<16x256xi32>
    %16 = arith.cmpi eq, %13, %15 : vector<16x256xi32>
    %cst_5 = arith.constant 0.000000e+00 : f32
    %17 = vector.broadcast %cst_5 : f32 to vector<16x256xf32>
    %18 = arith.select %16, %3, %17 : vector<16x256xi1>, vector<16x256xf32>
    %cst_6 = arith.constant dense<0.000000e+00> : vector<16xf32>
    %19 = vector.multi_reduction <add>, %18, %cst_6 [1] : vector<16x256xf32> to vector<16xf32>
    %20 = vector.shape_cast %19 : vector<16xf32> to vector<16x1xf32>
    %c0_7 = arith.constant 0 : index
    %c0_8 = arith.constant 0 : index
    %21 = vector.load %arg4[%c0_7, %c0_8] : memref<1x1xf32, #tpu.memory_space<vmem>>, vector<1x1xf32>
    %22 = arith.subf %12, %20 : vector<16x1xf32>
    %23 = vector.shape_cast %22 : vector<16x1xf32> to vector<1x16x1xf32>
    %cst_9 = arith.constant dense<0.000000e+00> : vector<1xf32>
    %24 = vector.multi_reduction <add>, %23, %cst_9 [1, 2] : vector<1x16x1xf32> to vector<1xf32>
    %25 = vector.shape_cast %24 : vector<1xf32> to vector<1x1x1xf32>
    %26 = vector.extract %25[0, 0, 0] : f32 from vector<1x1x1xf32>
    %27 = vector.broadcast %26 : f32 to vector<1x1xf32>
    %28 = arith.addf %21, %27 : vector<1x1xf32>
    %c0_10 = arith.constant 0 : index
    %c0_11 = arith.constant 0 : index
    %29 = vector.load %arg4[%c0_10, %c0_11] : memref<1x1xf32, #tpu.memory_space<vmem>>, vector<1x1xf32>
    tpu.vector_store %arg4[%c0_10, %c0_11], %28 {strides = array<i32>} : memref<1x1xf32, #tpu.memory_space<vmem>>, vector<1x1xf32>,
    %c0_i32_12 = arith.constant 0 : i32
    %30 = arith.cmpi eq, %arg0, %c0_i32_12 : i32
    %31 = arith.extui %30 : i1 to i32
    %c0_i32_13 = arith.constant 0 : i32
    %32 = arith.cmpi ne, %31, %c0_i32_13 : i32
    scf.if %32 {
      %c0_14 = arith.constant 0 : index
      %c0_15 = arith.constant 0 : index
      %33 = vector.load %arg4[%c0_14, %c0_15] : memref<1x1xf32, #tpu.memory_space<vmem>>, vector<1x1xf32>
      %cst_16 = arith.constant 1.600000e+01 : f32
      %34 = vector.broadcast %cst_16 : f32 to vector<1x1xf32>
      %35 = arith.divf %33, %34 : vector<1x1xf32>
      %c0_17 = arith.constant 0 : index
      %c0_18 = arith.constant 0 : index
      %36 = vector.load %arg3[%c0_17, %c0_18] : memref<1x1xf32, #tpu.memory_space<vmem>>, vector<1x1xf32>
      tpu.vector_store %arg3[%c0_17, %c0_18], %35 {strides = array<i32>} : memref<1x1xf32, #tpu.memory_space<vmem>>, vector<1x1xf32>,
    } else {
    }
    return
  }
  func.func @transform_0(%arg0: i32) -> (i32, i32) {
    %c0_i32 = arith.constant 0 : i32
    %c0_i32_0 = arith.constant 0 : i32
    return %arg0, %c0_i32 : i32, i32
  }
  func.func @transform_1(%arg0: i32) -> (i32, i32) {
    %c0_i32 = arith.constant 0 : i32
    %c0_i32_0 = arith.constant 0 : i32
    return %arg0, %c0_i32 : i32, i32
  }
  func.func @transform_2(%arg0: i32) -> (i32, i32) {
    %c0_i32 = arith.constant 0 : i32
    %c0_i32_0 = arith.constant 0 : i32
    %c0_i32_1 = arith.constant 0 : i32
    return %c0_i32, %c0_i32_0 : i32, i32
  }
}

</mosaic_0001>

<llo_original>
// kernel: deepseek_forward.15
$region0: #{deepseek_forward.15}
  #allocation0 [shape = 'u32[]', space=smem, size = 0x4, offset = 0x4, fixed_abs, tag = 'smem constant byte address 0x4 - core index']
  #allocation1 [shape = 'u32[144,128]{1,0:T(1,128)}', space=vmem, size = 0x12000, scoped, tag = 'internal scratch']
  %s0 = inlined_call_operand.vmem [shape: f32[16,128], index: 0, kind: input, shape index: {}]
  %s1 = inlined_call_operand.vmem [shape: f32[1,128], index: 1, kind: input, shape index: {}]
  %s2 = inlined_call_operand.vmem [shape: bf16[128,176], index: 2, kind: input, shape index: {}]
  %s3 = inlined_call_operand.vmem [shape: f32[16,176], index: 3, kind: output, shape index: {}]
  %s4 = sld [smem:[#allocation0]]
  $region22: #{deepseek_forward.15} parent=0
    _
  %s6 = ssub.s32 1, %s4
  %s7 = scalar_select 0, %s6, %s4
  // Predicated region
  $region2: #{deepseek_forward.15} parent=0 // pred_check
    _
  $region3: #{deepseek_forward.15} parent=0 // pred_check_branch
    %9 = sbr.rel (0) target = $region5
  $region4: #{deepseek_forward.15} parent=0 // pred_region
    _
  $region5: #{deepseek_forward.15} parent=0 // pred_fallthru
    _
  // Predicated region
  $region6: #{deepseek_forward.15} parent=0 // pred_check
    _
  $region7: #{deepseek_forward.15} parent=0 // pred_check_branch
    %11 = sbr.rel (0) target = $region9
  $region8: #{deepseek_forward.15} parent=0 // pred_region
    _
  $region9: #{deepseek_forward.15} parent=0 // pred_fallthru
    _
  // Predicated region
  $region10: #{deepseek_forward.15} parent=0 // pred_check
    _
  $region11: #{deepseek_forward.15} parent=0 // pred_check_branch
    %13 = sbr.rel (0) target = $region13
  $region12: #{deepseek_forward.15} parent=0 // pred_region
    _
  $region13: #{deepseek_forward.15} parent=0 // pred_fallthru
    _
  %v15 = vld [vmem:[%s0] sm:$0xff]
  %v16 = vld [vmem:[%s0 + $0x8] sm:$0xff]
  %v17 = vmul.f32 %v15, %v15
  %v18 = vmul.f32 %v16, %v16
  %19 = vadd.xlane.f32.xlu0 %v17
  %v20 = vpop.xlane.xlu0 %19
  %21 = vadd.xlane.f32.xlu0 %v18
  %v22 = vpop.xlane.xlu0 %21
  %v23 = vrcp.pop 128.0
  %v24 = vmul.f32 %v20, %v23
  %v25 = vmul.f32 %v22, %v23
  %v26 = vadd.f32 %v24, 1e-06
  %v27 = vadd.f32 %v25, 1e-06
  %v28 = vrsqrt.pop %v26
  %v29 = vrsqrt.pop %v27
  %v30 = vmul.f32 %v15, %v28
  %v31 = vmul.f32 %v16, %v29
  %v32 = vld [vmem:[%s1] sm:$0x1]
  %v34 = vlaneseq
  %v35 = vshrl.u32 %v34, 7
  %v36 = vsub.s32 0, %v35
  %v37 = vrot.slane %v32, %v36
  %v39 = vmul.f32 %v30, %v37
  %v40 = vmul.f32 %v31, %v37
  %v41 = vpack.c.bf16 %v40, %v39
  %v42 = vld [vmem:[%s2] sm:$0xff]
  %v43 = vld [vmem:[%s2 + $0x8] sm:$0xff]
  %v44 = vld [vmem:[%s2 + $0x10] sm:$0xff]
  %v45 = vld [vmem:[%s2 + $0x18] sm:$0xff]
  %v46 = vld [vmem:[%s2 + $0x20] sm:$0xff]
  %v47 = vld [vmem:[%s2 + $0x28] sm:$0xff]
  %v48 = vld [vmem:[%s2 + $0x30] sm:$0xff]
  %v49 = vld [vmem:[%s2 + $0x38] sm:$0xff]
  %v50 = vld [vmem:[%s2 + $0x40] sm:$0xff]
  %v51 = vld [vmem:[%s2 + $0x48] sm:$0xff]
  %v52 = vld [vmem:[%s2 + $0x50] sm:$0xff]
  %v53 = vld [vmem:[%s2 + $0x58] sm:$0xff]
  %v54 = vld [vmem:[%s2 + $0x60] sm:$0xff]
  %v55 = vld [vmem:[%s2 + $0x68] sm:$0xff]
  %v56 = vld [vmem:[%s2 + $0x70] sm:$0xff]
  %v57 = vld [vmem:[%s2 + $0x78] sm:$0xff]
  %v74 = vunpack.c.l.b16 %v42
  %v75 = vunpack.c.h.b16 %v42
  %v76 = vunpack.c.l.b16 %v43
  %v77 = vunpack.c.h.b16 %v43
  %v78 = vunpack.c.l.b16 %v44
  %v79 = vunpack.c.h.b16 %v44
  %v80 = vunpack.c.l.b16 %v45
  %v81 = vunpack.c.h.b16 %v45
  %v82 = vunpack.c.l.b16 %v46
  %v83 = vunpack.c.h.b16 %v46
  %v84 = vunpack.c.l.b16 %v47
  %v85 = vunpack.c.h.b16 %v47
  %v86 = vunpack.c.l.b16 %v48
  %v87 = vunpack.c.h.b16 %v48
  %v88 = vunpack.c.l.b16 %v49
  %v89 = vunpack.c.h.b16 %v49
  %v90 = vunpack.c.l.b16 %v50
  %v91 = vunpack.c.h.b16 %v50
  %v92 = vunpack.c.l.b16 %v51
  %v93 = vunpack.c.h.b16 %v51
  %v94 = vunpack.c.l.b16 %v52
  %v95 = vunpack.c.h.b16 %v52
  %v96 = vunpack.c.l.b16 %v53
  %v97 = vunpack.c.h.b16 %v53
  %v98 = vunpack.c.l.b16 %v54
  %v99 = vunpack.c.h.b16 %v54
  %v100 = vunpack.c.l.b16 %v55
  %v101 = vunpack.c.h.b16 %v55
  %v102 = vunpack.c.l.b16 %v56
  %v103 = vunpack.c.h.b16 %v56
  %v104 = vunpack.c.l.b16 %v57
  %v105 = vunpack.c.h.b16 %v57
  %v106 = vpack.c.b16 %v76, %v74
  %v107 = vpack.c.b16 %v77, %v75
  %v108 = vpack.c.b16 %v80, %v78
  %v109 = vpack.c.b16 %v81, %v79
  %v110 = vpack.c.b16 %v84, %v82
  %v111 = vpack.c.b16 %v85, %v83
  %v112 = vpack.c.b16 %v88, %v86
  %v113 = vpack.c.b16 %v89, %v87
  %v114 = vpack.c.b16 %v92, %v90
  %v115 = vpack.c.b16 %v93, %v91
  %v116 = vpack.c.b16 %v96, %v94
  %v117 = vpack.c.b16 %v97, %v95
  %v118 = vpack.c.b16 %v100, %v98
  %v119 = vpack.c.b16 %v101, %v99
  %v120 = vpack.c.b16 %v104, %v102
  %v121 = vpack.c.b16 %v105, %v103
  %138 = vmatprep.subr.bf16.mxu0 %v121
  %139 = vmatpush1.bf16.msra.mxu0 %v120
  %140 = vmatprep.subr.bf16.mxu0 %v119
  %141 = vmatpush1.bf16.msra.mxu0 %v118
  %142 = vmatprep.subr.bf16.mxu0 %v117
  %143 = vmatpush1.bf16.msra.mxu0 %v116
  %144 = vmatprep.subr.bf16.mxu0 %v115
  %145 = vmatpush1.bf16.msra.mxu0 %v114
  %146 = vmatprep.subr.bf16.mxu0 %v113
  %147 = vmatpush1.bf16.msra.mxu0 %v112
  %148 = vmatprep.subr.bf16.mxu0 %v111
  %149 = vmatpush1.bf16.msra.mxu0 %v110
  %150 = vmatprep.subr.bf16.mxu0 %v109
  %151 = vmatpush1.bf16.msra.mxu0 %v108
  %152 = vmatprep.subr.bf16.mxu0 %v107
  %153 = vmatpush1.bf16.msra.mxu0 %v106
  %154 = vmatprep.subr.bf16.mxu0 0
  %155 = vmatpush2.bf16.msra.mxu0 0
  %156 = vmatprep.subr.bf16.mxu0 0
  %157 = vmatpush2.bf16.msra.mxu0 0
  %158 = vmatprep.subr.bf16.mxu0 0
  %159 = vmatpush2.bf16.msra.mxu0 0
  %160 = vmatprep.subr.bf16.mxu0 0
  %161 = vmatpush2.bf16.msra.mxu0 0
  %162 = vmatprep.subr.bf16.mxu0 0
  %163 = vmatpush2.bf16.msra.mxu0 0
  %164 = vmatprep.subr.bf16.mxu0 0
  %165 = vmatpush2.bf16.msra.mxu0 0
  %166 = vmatprep.subr.bf16.mxu0 0
  %167 = vmatpush2.bf16.msra.mxu0 0
  %168 = vmatprep.subr.bf16.mxu0 0
  %169 = vmatpush2.bf16.msra.mxu0 0
  %170 = vmatprep.mubr.bf16.mxu0 0
  %171 = vmatmul.mubr.bf16.gmra.mxu0 %v41
  %v172 = vpop.f32.mrf.mxu0
  %v173 = vadd.f32 0.0, %v172
  %v174 = vpop.f32.mrf.mxu0
  %v175 = vadd.f32 0.0, %v174
  %v176 = vpop.f32.mrf.mxu0
  %v177 = vadd.f32 0.0, %v176
  %v178 = vpop.f32.mrf.mxu0
  %v179 = vadd.f32 0.0, %v178
  %180 = vdwg.mxu0
  %181 = vst [vmem:[%s3] sm:$0xff] %v173
  %vm182 = vcmask 392192
  %183 = vst.msk [vmem:[%s3 + $0x8] sm:$0xff] %vm182, %v175
  %184 = vst [vmem:[%s3 + $0x10] sm:$0xff] %v177
  %185 = vst.msk [vmem:[%s3 + $0x18] sm:$0xff] %vm182, %v179
  // Predicated region
  $region14: #{deepseek_forward.15} parent=0 // pred_check
    _
  $region15: #{deepseek_forward.15} parent=0 // pred_check_branch
    %187 = sbr.rel (0) target = $region17
  $region16: #{deepseek_forward.15} parent=0 // pred_region
    _
  $region17: #{deepseek_forward.15} parent=0 // pred_fallthru
    _
  // Predicated region
  $region18: #{deepseek_forward.15} parent=0 // pred_check
    _
  $region19: #{deepseek_forward.15} parent=0 // pred_check_branch
    %189 = sbr.rel (0) target = $region21
  $region20: #{deepseek_forward.15} parent=0 // pred_region
    _
  $region21: #{deepseek_forward.15} parent=0 // pred_fallthru
    _

// kernel: deepseek_forward.16
$region0: #{deepseek_forward.16}
  #allocation0 [shape = 'u32[]', space=smem, size = 0x4, offset = 0x4, fixed_abs, tag = 'smem constant byte address 0x4 - core index']
  #allocation1 [shape = 'u32[144,128]{1,0:T(1,128)}', space=vmem, size = 0x12000, scoped, tag = 'internal scratch']
  %s0 = inlined_call_operand.vmem [shape: f32[16,64], index: 0, kind: input, shape index: {}]
  %s1 = inlined_call_operand.vmem [shape: f32[1,64], index: 1, kind: input, shape index: {}]
  %s2 = inlined_call_operand.vmem [shape: bf16[64,128], index: 2, kind: input, shape index: {}]
  %s3 = inlined_call_operand.vmem [shape: f32[16,128], index: 3, kind: output, shape index: {}]
  %s4 = sld [smem:[#allocation0]]
  $region22: #{deepseek_forward.16} parent=0
    _
  %s6 = ssub.s32 1, %s4
  %s7 = scalar_select 0, %s6, %s4
  // Predicated region
  $region2: #{deepseek_forward.16} parent=0 // pred_check
    _
  $region3: #{deepseek_forward.16} parent=0 // pred_check_branch
    %9 = sbr.rel (0) target = $region5
  $region4: #{deepseek_forward.16} parent=0 // pred_region
    _
  $region5: #{deepseek_forward.16} parent=0 // pred_fallthru
    _
  // Predicated region
  $region6: #{deepseek_forward.16} parent=0 // pred_check
    _
  $region7: #{deepseek_forward.16} parent=0 // pred_check_branch
    %11 = sbr.rel (0) target = $region9
  $region8: #{deepseek_forward.16} parent=0 // pred_region
    _
  $region9: #{deepseek_forward.16} parent=0 // pred_fallthru
    _
  // Predicated region
  $region10: #{deepseek_forward.16} parent=0 // pred_check
    _
  $region11: #{deepseek_forward.16} parent=0 // pred_check_branch
    %13 = sbr.rel (0) target = $region13
  $region12: #{deepseek_forward.16} parent=0 // pred_region
    _
  $region13: #{deepseek_forward.16} parent=0 // pred_fallthru
    _
  %v15 = vld [vmem:[%s0] sm:$0xff]
  %v16 = vld [vmem:[%s0 + $0x8] sm:$0xff]
  %v17 = vmul.f32 %v15, %v15
  %v18 = vmul.f32 %v16, %v16
  %vm19 = vcmask 523264
  %v20 = vsel %vm19, %v17, 0.0
  %21 = vadd.xlane.f32.xlu0 %v20
  %v22 = vpop.xlane.xlu0 %21
  %v23 = vsel %vm19, %v18, 0.0
  %24 = vadd.xlane.f32.xlu0 %v23
  %v25 = vpop.xlane.xlu0 %24
  %v26 = vrcp.pop 64.0
  %v27 = vmul.f32 %v22, %v26
  %v28 = vmul.f32 %v25, %v26
  %v29 = vadd.f32 %v27, 1e-06
  %v30 = vadd.f32 %v28, 1e-06
  %v31 = vrsqrt.pop %v29
  %v32 = vrsqrt.pop %v30
  %v33 = vmul.f32 %v15, %v31
  %v34 = vmul.f32 %v16, %v32
  %v35 = vld [vmem:[%s1] sm:$0x1]
  %v37 = vlaneseq
  %v38 = vshrl.u32 %v37, 7
  %v39 = vsub.s32 0, %v38
  %v40 = vrot.slane %v35, %v39
  %v42 = vmul.f32 %v33, %v40
  %v43 = vmul.f32 %v34, %v40
  %v44 = vpack.c.bf16 %v43, %v42
  %v45 = vld [vmem:[%s2] sm:$0xf]
  %v46 = vld [vmem:[%s2 + $0x4] sm:$0xf]
  %v47 = vld [vmem:[%s2 + $0x8] sm:$0xf]
  %v48 = vld [vmem:[%s2 + $0xc] sm:$0xf]
  %v49 = vld [vmem:[%s2 + $0x10] sm:$0xf]
  %v50 = vld [vmem:[%s2 + $0x14] sm:$0xf]
  %v51 = vld [vmem:[%s2 + $0x18] sm:$0xf]
  %v52 = vld [vmem:[%s2 + $0x1c] sm:$0xf]
  %v61 = vunpack.c.l.b16 %v45
  %v62 = vunpack.c.l.b16 %v46
  %v63 = vunpack.c.l.b16 %v47
  %v64 = vunpack.c.l.b16 %v48
  %v65 = vunpack.c.l.b16 %v49
  %v66 = vunpack.c.l.b16 %v50
  %v67 = vunpack.c.l.b16 %v51
  %v68 = vunpack.c.l.b16 %v52
  %v69 = vpack.c.b16 %v62, %v61
  %v70 = vpack.c.b16 %v64, %v63
  %v71 = vpack.c.b16 %v66, %v65
  %v72 = vpack.c.b16 %v68, %v67
  %v78 = vsel %vm19, %v44, 0
  %80 = vmatprep.subr.bf16.mxu0 0
  %81 = vmatpush1.bf16.msra.mxu0 0
  %82 = vmatprep.subr.bf16.mxu0 0
  %83 = vmatpush1.bf16.msra.mxu0 0
  %84 = vmatprep.subr.bf16.mxu0 0
  %85 = vmatpush1.bf16.msra.mxu0 0
  %86 = vmatprep.subr.bf16.mxu0 0
  %87 = vmatpush1.bf16.msra.mxu0 0
  %88 = vmatprep.subr.bf16.mxu0 0
  %89 = vmatpush1.bf16.msra.mxu0 %v72
  %90 = vmatprep.subr.bf16.mxu0 0
  %91 = vmatpush1.bf16.msra.mxu0 %v71
  %92 = vmatprep.subr.bf16.mxu0 0
  %93 = vmatpush1.bf16.msra.mxu0 %v70
  %94 = vmatprep.subr.bf16.mxu0 0
  %95 = vmatpush1.bf16.msra.mxu0 %v69
  %96 = vmatprep.subr.bf16.mxu0 0
  %97 = vmatpush2.bf16.msra.mxu0 0
  %98 = vmatprep.subr.bf16.mxu0 0
  %99 = vmatpush2.bf16.msra.mxu0 0
  %100 = vmatprep.subr.bf16.mxu0 0
  %101 = vmatpush2.bf16.msra.mxu0 0
  %102 = vmatprep.subr.bf16.mxu0 0
  %103 = vmatpush2.bf16.msra.mxu0 0
  %104 = vmatprep.subr.bf16.mxu0 0
  %105 = vmatpush2.bf16.msra.mxu0 0
  %106 = vmatprep.subr.bf16.mxu0 0
  %107 = vmatpush2.bf16.msra.mxu0 0
  %108 = vmatprep.subr.bf16.mxu0 0
  %109 = vmatpush2.bf16.msra.mxu0 0
  %110 = vmatprep.subr.bf16.mxu0 0
  %111 = vmatpush2.bf16.msra.mxu0 0
  %112 = vmatprep.mubr.bf16.mxu0 0
  %113 = vmatmul.mubr.bf16.gmra.mxu0 %v78
  %v114 = vpop.f32.mrf.mxu0
  %v115 = vadd.f32 0.0, %v114
  %v116 = vpop.f32.mrf.mxu0
  %v117 = vpop.f32.mrf.mxu0
  %v118 = vadd.f32 0.0, %v117
  %v119 = vpop.f32.mrf.mxu0
  %120 = vdwg.mxu0
  %121 = vst [vmem:[%s3] sm:$0xff] %v115
  %122 = vst [vmem:[%s3 + $0x8] sm:$0xff] %v118
  // Predicated region
  $region14: #{deepseek_forward.16} parent=0 // pred_check
    _
  $region15: #{deepseek_forward.16} parent=0 // pred_check_branch
    %124 = sbr.rel (0) target = $region17
  $region16: #{deepseek_forward.16} parent=0 // pred_region
    _
  $region17: #{deepseek_forward.16} parent=0 // pred_fallthru
    _
  // Predicated region
  $region18: #{deepseek_forward.16} parent=0 // pred_check
    _
  $region19: #{deepseek_forward.16} parent=0 // pred_check_branch
    %126 = sbr.rel (0) target = $region21
  $region20: #{deepseek_forward.16} parent=0 // pred_region
    _
  $region21: #{deepseek_forward.16} parent=0 // pred_fallthru
    _

// kernel: deepseek_forward.18
$region0: #{deepseek_forward.18}
  #allocation0 [shape = 'u32[]', space=smem, size = 0x4, offset = 0x4, fixed_abs, tag = 'smem constant byte address 0x4 - core index']
  #allocation1 [shape = 'u32[144,128]{1,0:T(1,128)}', space=vmem, size = 0x12000, scoped, tag = 'internal scratch']
  #allocation2 [shape = 'f32[16,128]{1,0:T(8,128)}', space=vmem, size = 0x2000, scoped, tag = 'scratch operand']
  %s0 = inlined_call_operand.vmem [shape: f32[16,64], index: 0, kind: input, shape index: {}]
  %s1 = inlined_call_operand.vmem [shape: bf16[64,128], index: 1, kind: input, shape index: {}]
  %s2 = inlined_call_operand.vmem [shape: f32[16,128], index: 2, kind: output, shape index: {}]
  %s3 = sld [smem:[#allocation0]]
  $region26: #{deepseek_forward.18} parent=0
    _
  %s5 = ssub.s32 1, %s3
  %s6 = scalar_select 0, %s5, %s3
  // Predicated region
  $region2: #{deepseek_forward.18} parent=0 // pred_check
    _
  $region3: #{deepseek_forward.18} parent=0 // pred_check_branch
    %8 = sbr.rel (0) target = $region5
  $region4: #{deepseek_forward.18} parent=0 // pred_region
    _
  $region5: #{deepseek_forward.18} parent=0 // pred_fallthru
    _
  // Predicated region
  $region6: #{deepseek_forward.18} parent=0 // pred_check
    _
  $region7: #{deepseek_forward.18} parent=0 // pred_check_branch
    %10 = sbr.rel (0) target = $region9
  $region8: #{deepseek_forward.18} parent=0 // pred_region
    _
  $region9: #{deepseek_forward.18} parent=0 // pred_fallthru
    _
  %p12 = scmp.eq.s32.totalorder 0, 0
  // Predicated region
  $region10: #{deepseek_forward.18} parent=0 // pred_check
    %p13 = pneg %p12
  $region11: #{deepseek_forward.18} parent=0 // pred_check_branch
    %15 = sbr.rel (%p13) target = $region13
  $region12: #{deepseek_forward.18} parent=0 // pred_region
    %16 = vst [vmem:[#allocation2] sm:$0xff] 0.0
    %17 = vst [vmem:[#allocation2 + $0x8] sm:$0xff] 0.0
  $region13: #{deepseek_forward.18} parent=0 // pred_fallthru
    _
  %v18 = vld [vmem:[#allocation2] sm:$0xff]
  %v19 = vld [vmem:[#allocation2 + $0x8] sm:$0xff]
  %v20 = vld [vmem:[%s0] sm:$0xff]
  %v21 = vld [vmem:[%s0 + $0x8] sm:$0xff]
  %v22 = vpack.c.bf16 %v21, %v20
  %v23 = vld [vmem:[%s1] sm:$0xf]
  %v24 = vld [vmem:[%s1 + $0x4] sm:$0xf]
  %v25 = vld [vmem:[%s1 + $0x8] sm:$0xf]
  %v26 = vld [vmem:[%s1 + $0xc] sm:$0xf]
  %v27 = vld [vmem:[%s1 + $0x10] sm:$0xf]
  %v28 = vld [vmem:[%s1 + $0x14] sm:$0xf]
  %v29 = vld [vmem:[%s1 + $0x18] sm:$0xf]
  %v30 = vld [vmem:[%s1 + $0x1c] sm:$0xf]
  %v39 = vunpack.c.l.b16 %v23
  %v40 = vunpack.c.l.b16 %v24
  %v41 = vunpack.c.l.b16 %v25
  %v42 = vunpack.c.l.b16 %v26
  %v43 = vunpack.c.l.b16 %v27
  %v44 = vunpack.c.l.b16 %v28
  %v45 = vunpack.c.l.b16 %v29
  %v46 = vunpack.c.l.b16 %v30
  %v47 = vpack.c.b16 %v40, %v39
  %v48 = vpack.c.b16 %v42, %v41
  %v49 = vpack.c.b16 %v44, %v43
  %v50 = vpack.c.b16 %v46, %v45
  %vm55 = vcmask 523264
  %v57 = vsel %vm55, %v22, 0
  %59 = vmatprep.subr.bf16.mxu0 0
  %60 = vmatpush1.bf16.msra.mxu0 0
  %61 = vmatprep.subr.bf16.mxu0 0
  %62 = vmatpush1.bf16.msra.mxu0 0
  %63 = vmatprep.subr.bf16.mxu0 0
  %64 = vmatpush1.bf16.msra.mxu0 0
  %65 = vmatprep.subr.bf16.mxu0 0
  %66 = vmatpush1.bf16.msra.mxu0 0
  %67 = vmatprep.subr.bf16.mxu0 0
  %68 = vmatpush1.bf16.msra.mxu0 %v50
  %69 = vmatprep.subr.bf16.mxu0 0
  %70 = vmatpush1.bf16.msra.mxu0 %v49
  %71 = vmatprep.subr.bf16.mxu0 0
  %72 = vmatpush1.bf16.msra.mxu0 %v48
  %73 = vmatprep.subr.bf16.mxu0 0
  %74 = vmatpush1.bf16.msra.mxu0 %v47
  %75 = vmatprep.subr.bf16.mxu0 0
  %76 = vmatpush2.bf16.msra.mxu0 0
  %77 = vmatprep.subr.bf16.mxu0 0
  %78 = vmatpush2.bf16.msra.mxu0 0
  %79 = vmatprep.subr.bf16.mxu0 0
  %80 = vmatpush2.bf16.msra.mxu0 0
  %81 = vmatprep.subr.bf16.mxu0 0
  %82 = vmatpush2.bf16.msra.mxu0 0
  %83 = vmatprep.subr.bf16.mxu0 0
  %84 = vmatpush2.bf16.msra.mxu0 0
  %85 = vmatprep.subr.bf16.mxu0 0
  %86 = vmatpush2.bf16.msra.mxu0 0
  %87 = vmatprep.subr.bf16.mxu0 0
  %88 = vmatpush2.bf16.msra.mxu0 0
  %89 = vmatprep.subr.bf16.mxu0 0
  %90 = vmatpush2.bf16.msra.mxu0 0
  %91 = vmatprep.mubr.bf16.mxu0 0
  %92 = vmatmul.mubr.bf16.gmra.mxu0 %v57
  %v93 = vpop.f32.mrf.mxu0
  %v94 = vadd.f32 0.0, %v93
  %v95 = vpop.f32.mrf.mxu0
  %v96 = vpop.f32.mrf.mxu0
  %v97 = vadd.f32 0.0, %v96
  %v98 = vpop.f32.mrf.mxu0
  %99 = vdwg.mxu0
  %v100 = vadd.f32 %v18, %v94
  %v101 = vadd.f32 %v19, %v97
  %102 = vst [vmem:[#allocation2] sm:$0xff] %v100
  %103 = vst [vmem:[#allocation2 + $0x8] sm:$0xff] %v101
  // Predicated region
  $region14: #{deepseek_forward.18} parent=0 // pred_check
    %p104 = pneg %p12
  $region15: #{deepseek_forward.18} parent=0 // pred_check_branch
    %106 = sbr.rel (%p104) target = $region17
  $region16: #{deepseek_forward.18} parent=0 // pred_region
    %v107 = vld [vmem:[#allocation2] sm:$0xff]
    %v108 = vld [vmem:[#allocation2 + $0x8] sm:$0xff]
    %109 = vst [vmem:[%s2] sm:$0xff] %v107
    %110 = vst [vmem:[%s2 + $0x8] sm:$0xff] %v108
  $region17: #{deepseek_forward.18} parent=0 // pred_fallthru
    _
  // Predicated region
  $region18: #{deepseek_forward.18} parent=0 // pred_check
    _
  $region19: #{deepseek_forward.18} parent=0 // pred_check_branch
    %112 = sbr.rel (0) target = $region21
  $region20: #{deepseek_forward.18} parent=0 // pred_region
    _
  $region21: #{deepseek_forward.18} parent=0 // pred_fallthru
    _
  // Predicated region
  $region22: #{deepseek_forward.18} parent=0 // pred_check
    _
  $region23: #{deepseek_forward.18} parent=0 // pred_check_branch
    %114 = sbr.rel (0) target = $region25
  $region24: #{deepseek_forward.18} parent=0 // pred_region
    _
  $region25: #{deepseek_forward.18} parent=0 // pred_fallthru
    _

// kernel: deepseek_forward.17
$region0: #{deepseek_forward.17}
  #allocation0 [shape = 'u32[]', space=smem, size = 0x4, offset = 0x4, fixed_abs, tag = 'smem constant byte address 0x4 - core index']
  #allocation1 [shape = 'u32[144,128]{1,0:T(1,128)}', space=vmem, size = 0x12000, scoped, tag = 'internal scratch']
  %s0 = inlined_call_operand.vmem [shape: f32[2,2,8,32], index: 0, kind: input, shape index: {}]
  %s1 = inlined_call_operand.vmem [shape: f32[2,2,8,16], index: 1, kind: input, shape index: {}]
  %s2 = inlined_call_operand.vmem [shape: f32[2,2,8,32], index: 2, kind: input, shape index: {}]
  %s3 = inlined_call_operand.vmem [shape: f32[2,1,8,16], index: 3, kind: input, shape index: {}]
  %s4 = inlined_call_operand.vmem [shape: f32[2,2,8,32], index: 4, kind: input, shape index: {}]
  %s5 = inlined_call_operand.vmem [shape: f32[2,8,64], index: 5, kind: output, shape index: {}]
  %s6 = sld [smem:[#allocation0]]
  $region53: #{deepseek_forward.17} parent=0
    _
  %s8 = ssub.s32 1, %s6
  %s9 = scalar_select 0, %s8, %s6
  loop: start=0, step=1, limit=4
  $region2: #{deepseek_forward.17} parent=0 // loop_pre_header
    _
  $region3: #{deepseek_forward.17} parent=0 // loop_header
    %s11 = sphi 0, %s15
    %p12 = scmp.ge.s32.totalorder %s11, 4
    %s21 = sphi 0, %s23
    %s24 = sphi 0, %s21
    %s25 = sphi 0, %s24
    %s41 = sphi 0, %s25
    %s47 = sphi 0, %s49
    %s50 = sphi 0, %s47
    %s51 = sphi 0, %s50
    %s67 = sphi 0, %s51
    %s73 = sphi 0, %s75
    %s76 = sphi 0, %s73
    %s77 = sphi 0, %s76
    %s93 = sphi 0, %s77
    %s99 = sphi 0, %s101
    %s102 = sphi 0, %s99
    %s103 = sphi 0, %s102
    %s119 = sphi 0, %s103
    %s125 = sphi 0, %s127
    %s128 = sphi 0, %s125
    %s129 = sphi 0, %s128
    %s145 = sphi 0, %s129
    %s151 = sphi 0, %s153
    %s154 = sphi 0, %s151
    %s155 = sphi 0, %s154
    %s171 = sphi 0, %s155
  $region4: #{deepseek_forward.17} parent=0 // loop_header_branch
    %14 = sbr.rel (%p12) target = $region8
  $region5: #{deepseek_forward.17} parent=0 // loop_body
    %s16 = ssub.s32 %s11, 1
    %s17 = ssub.s32 %s11, 2
    %s18 = sadd.s32 %s11, 1
    %s19 = ssub.s32 %s11, %s18
    %p20 = scmp.eq.s32.totalorder %s19, 0
    %s22 = sadd.s32 %s21, 1
    %s23 = scalar_select %p20, %s21, %s22
    %p26 = pneg %p20
    %p27 = scmp.eq.s32.totalorder %s11, 1
    %p28 = por %p26, %p27
    %p29 = scmp.ne.s32.totalorder %s21, %s24
    %p30 = scmp.eq.s32.totalorder %s11, 0
    %p31 = por %p29, %p30
    %p32 = scmp.ne.s32.totalorder %s21, %s24
    %p33 = scmp.eq.s32.totalorder %s16, 1
    %p34 = por %p32, %p33
    %p35 = scmp.ne.s32.totalorder %s24, %s25
    %p36 = scmp.eq.s32.totalorder %s16, 0
    %p37 = por %p35, %p36
    %p38 = scmp.ne.s32.totalorder %s24, %s25
    %p39 = scmp.eq.s32.totalorder %s17, 1
    %p40 = por %p38, %p39
    %p42 = scmp.ne.s32.totalorder %s25, %s41
    %p43 = scmp.eq.s32.totalorder %s17, 0
    %p44 = por %p42, %p43
    %s45 = ssub.s32 %s11, %s18
    %p46 = scmp.eq.s32.totalorder %s45, 0
    %s48 = sadd.s32 %s47, 1
    %s49 = scalar_select %p46, %s47, %s48
    %p52 = pneg %p46
    %p53 = scmp.eq.s32.totalorder %s11, 1
    %p54 = por %p52, %p53
    %p55 = scmp.ne.s32.totalorder %s47, %s50
    %p56 = scmp.eq.s32.totalorder %s11, 0
    %p57 = por %p55, %p56
    %p58 = scmp.ne.s32.totalorder %s47, %s50
    %p59 = scmp.eq.s32.totalorder %s16, 1
    %p60 = por %p58, %p59
    %p61 = scmp.ne.s32.totalorder %s50, %s51
    %p62 = scmp.eq.s32.totalorder %s16, 0
    %p63 = por %p61, %p62
    %p64 = scmp.ne.s32.totalorder %s50, %s51
    %p65 = scmp.eq.s32.totalorder %s17, 1
    %p66 = por %p64, %p65
    %p68 = scmp.ne.s32.totalorder %s51, %s67
    %p69 = scmp.eq.s32.totalorder %s17, 0
    %p70 = por %p68, %p69
    %s71 = ssub.s32 %s11, %s18
    %p72 = scmp.eq.s32.totalorder %s71, 0
    %s74 = sadd.s32 %s73, 1
    %s75 = scalar_select %p72, %s73, %s74
    %p78 = pneg %p72
    %p79 = scmp.eq.s32.totalorder %s11, 1
    %p80 = por %p78, %p79
    %p81 = scmp.ne.s32.totalorder %s73, %s76
    %p82 = scmp.eq.s32.totalorder %s11, 0
    %p83 = por %p81, %p82
    %p84 = scmp.ne.s32.totalorder %s73, %s76
    %p85 = scmp.eq.s32.totalorder %s16, 1
    %p86 = por %p84, %p85
    %p87 = scmp.ne.s32.totalorder %s76, %s77
    %p88 = scmp.eq.s32.totalorder %s16, 0
    %p89 = por %p87, %p88
    %p90 = scmp.ne.s32.totalorder %s76, %s77
    %p91 = scmp.eq.s32.totalorder %s17, 1
    %p92 = por %p90, %p91
    %p94 = scmp.ne.s32.totalorder %s77, %s93
    %p95 = scmp.eq.s32.totalorder %s17, 0
    %p96 = por %p94, %p95
    %s97 = ssub.s32 %s11, %s18
    %p98 = scmp.eq.s32.totalorder %s97, 0
    %s100 = sadd.s32 %s99, 1
    %s101 = scalar_select %p98, %s99, %s100
    %p104 = pneg %p98
    %p105 = scmp.eq.s32.totalorder %s11, 1
    %p106 = por %p104, %p105
    %p107 = scmp.ne.s32.totalorder %s99, %s102
    %p108 = scmp.eq.s32.totalorder %s11, 0
    %p109 = por %p107, %p108
    %p110 = scmp.ne.s32.totalorder %s99, %s102
    %p111 = scmp.eq.s32.totalorder %s16, 1
    %p112 = por %p110, %p111
    %p113 = scmp.ne.s32.totalorder %s102, %s103
    %p114 = scmp.eq.s32.totalorder %s16, 0
    %p115 = por %p113, %p114
    %p116 = scmp.ne.s32.totalorder %s102, %s103
    %p117 = scmp.eq.s32.totalorder %s17, 1
    %p118 = por %p116, %p117
    %p120 = scmp.ne.s32.totalorder %s103, %s119
    %p121 = scmp.eq.s32.totalorder %s17, 0
    %p122 = por %p120, %p121
    %s123 = ssub.s32 %s11, %s18
    %p124 = scmp.eq.s32.totalorder %s123, 0
    %s126 = sadd.s32 %s125, 1
    %s127 = scalar_select %p124, %s125, %s126
    %p130 = pneg %p124
    %p131 = scmp.eq.s32.totalorder %s11, 1
    %p132 = por %p130, %p131
    %p133 = scmp.ne.s32.totalorder %s125, %s128
    %p134 = scmp.eq.s32.totalorder %s11, 0
    %p135 = por %p133, %p134
    %p136 = scmp.ne.s32.totalorder %s125, %s128
    %p137 = scmp.eq.s32.totalorder %s16, 1
    %p138 = por %p136, %p137
    %p139 = scmp.ne.s32.totalorder %s128, %s129
    %p140 = scmp.eq.s32.totalorder %s16, 0
    %p141 = por %p139, %p140
    %p142 = scmp.ne.s32.totalorder %s128, %s129
    %p143 = scmp.eq.s32.totalorder %s17, 1
    %p144 = por %p142, %p143
    %p146 = scmp.ne.s32.totalorder %s129, %s145
    %p147 = scmp.eq.s32.totalorder %s17, 0
    %p148 = por %p146, %p147
    %s149 = ssub.s32 %s11, %s18
    %p150 = scmp.eq.s32.totalorder %s149, 0
    %s152 = sadd.s32 %s151, 1
    %s153 = scalar_select %p150, %s151, %s152
    %p156 = pneg %p150
    %p157 = scmp.eq.s32.totalorder %s11, 1
    %p158 = por %p156, %p157
    %p159 = scmp.ne.s32.totalorder %s151, %s154
    %p160 = scmp.eq.s32.totalorder %s11, 0
    %p161 = por %p159, %p160
    %p162 = scmp.ne.s32.totalorder %s151, %s154
    %p163 = scmp.eq.s32.totalorder %s16, 1
    %p164 = por %p162, %p163
    %p165 = scmp.ne.s32.totalorder %s154, %s155
    %p166 = scmp.eq.s32.totalorder %s16, 0
    %p167 = por %p165, %p166
    %p168 = scmp.ne.s32.totalorder %s154, %s155
    %p169 = scmp.eq.s32.totalorder %s17, 1
    %p170 = por %p168, %p169
    %p172 = scmp.ne.s32.totalorder %s155, %s171
    %p173 = scmp.eq.s32.totalorder %s17, 0
    %p174 = por %p172, %p173
    %p175 = scmp.le.s32.totalorder 1, %s11
    %p176 = scmp.lt.s32.totalorder %s11, 3
    %p177 = pnand %p175, %p176
    %p178 = pneg %p177
    // Predicated region
    $region9: #{deepseek_forward.17} parent=5 // pred_check
      _
    $region10: #{deepseek_forward.17} parent=5 // pred_check_branch
      %180 = sbr.rel (%p177) target = $region12
    $region11: #{deepseek_forward.17} parent=5 // pred_region
      %s181 = ssub.s32 %s11, 1
    $region12: #{deepseek_forward.17} parent=5 // pred_fallthru
      _
    %p182 = scmp.lt.s32.totalorder %s11, 2
    // Predicated region
    $region13: #{deepseek_forward.17} parent=5 // pred_check
      %p183 = pneg %p182
    $region14: #{deepseek_forward.17} parent=5 // pred_check_branch
      %185 = sbr.rel (%p183) target = $region16
    $region15: #{deepseek_forward.17} parent=5 // pred_region
      // Predicated region
      $region17: #{deepseek_forward.17} parent=15 // pred_check
        %p186 = pneg %p31
      $region18: #{deepseek_forward.17} parent=15 // pred_check_branch
        %188 = sbr.rel (%p186) target = $region20
      $region19: #{deepseek_forward.17} parent=15 // pred_region
        %p189 = scmp.lt.s32.totalorder %s11, 1
        %s190 = scalar_select %p189, %s11, 1
        %s191 = smul.addr %s190, 2
        %s192 = smul.addr %s191, 8
        %s193 = scalar_lea.vmem %s0, %s192
      $region20: #{deepseek_forward.17} parent=15 // pred_fallthru
        _
      // Predicated region
      $region21: #{deepseek_forward.17} parent=15 // pred_check
        %p194 = pneg %p57
      $region22: #{deepseek_forward.17} parent=15 // pred_check_branch
        %196 = sbr.rel (%p194) target = $region24
      $region23: #{deepseek_forward.17} parent=15 // pred_region
        %p197 = scmp.lt.s32.totalorder %s11, 1
        %s198 = scalar_select %p197, %s11, 1
        %s199 = smul.addr %s198, 2
        %s200 = smul.addr %s199, 8
        %s201 = scalar_lea.vmem %s1, %s200
      $region24: #{deepseek_forward.17} parent=15 // pred_fallthru
        _
      // Predicated region
      $region25: #{deepseek_forward.17} parent=15 // pred_check
        %p202 = pneg %p83
      $region26: #{deepseek_forward.17} parent=15 // pred_check_branch
        %204 = sbr.rel (%p202) target = $region28
      $region27: #{deepseek_forward.17} parent=15 // pred_region
        %p205 = scmp.lt.s32.totalorder %s11, 1
        %s206 = scalar_select %p205, %s11, 1
        %s207 = smul.addr %s206, 2
        %s208 = smul.addr %s207, 8
        %s209 = scalar_lea.vmem %s2, %s208
      $region28: #{deepseek_forward.17} parent=15 // pred_fallthru
        _
      // Predicated region
      $region29: #{deepseek_forward.17} parent=15 // pred_check
        %p210 = pneg %p109
      $region30: #{deepseek_forward.17} parent=15 // pred_check_branch
        %212 = sbr.rel (%p210) target = $region32
      $region31: #{deepseek_forward.17} parent=15 // pred_region
        %p213 = scmp.lt.s32.totalorder %s11, 1
        %s214 = scalar_select %p213, %s11, 1
        %s215 = smul.addr %s214, 8
        %s216 = scalar_lea.vmem %s3, %s215
      $region32: #{deepseek_forward.17} parent=15 // pred_fallthru
        _
      // Predicated region
      $region33: #{deepseek_forward.17} parent=15 // pred_check
        %p217 = pneg %p135
      $region34: #{deepseek_forward.17} parent=15 // pred_check_branch
        %219 = sbr.rel (%p217) target = $region36
      $region35: #{deepseek_forward.17} parent=15 // pred_region
        %p220 = scmp.lt.s32.totalorder %s11, 1
        %s221 = scalar_select %p220, %s11, 1
        %s222 = smul.addr %s221, 2
        %s223 = smul.addr %s222, 8
        %s224 = scalar_lea.vmem %s4, %s223
      $region36: #{deepseek_forward.17} parent=15 // pred_fallthru
        _
    $region16: #{deepseek_forward.17} parent=5 // pred_fallthru
      _
    %p225 = scmp.le.s32.totalorder 1, %s11
    %p226 = scmp.lt.s32.totalorder %s11, 3
    %p227 = pnand %p225, %p226
    %p228 = pneg %p227
    // Predicated region
    $region37: #{deepseek_forward.17} parent=5 // pred_check
      _
    $region38: #{deepseek_forward.17} parent=5 // pred_check_branch
      %230 = sbr.rel (%p227) target = $region40
    $region39: #{deepseek_forward.17} parent=5 // pred_region
      %s231 = ssub.s32 %s11, 1
      %p232 = scmp.lt.s32.totalorder %s16, 1
      %s233 = scalar_select %p232, %s16, 1
      %s234 = smul.addr %s233, 2
      %s235 = smul.addr %s234, 8
      %s236 = scalar_lea.vmem %s0, %s235
      %p237 = pneg %p37
      %p238 = pneg %p34
      %p239 = scmp.lt.s32.totalorder %s16, 1
      %s240 = scalar_select %p239, %s16, 1
      %s241 = smul.addr %s240, 2
      %s242 = smul.addr %s241, 8
      %s243 = scalar_lea.vmem %s1, %s242
      %p244 = pneg %p63
      %p245 = pneg %p60
      %p246 = scmp.lt.s32.totalorder %s16, 1
      %s247 = scalar_select %p246, %s16, 1
      %s248 = smul.addr %s247, 2
      %s249 = smul.addr %s248, 8
      %s250 = scalar_lea.vmem %s2, %s249
      %p251 = pneg %p89
      %p252 = pneg %p86
      %p253 = scmp.lt.s32.totalorder %s16, 1
      %s254 = scalar_select %p253, %s16, 1
      %s255 = smul.addr %s254, 8
      %s256 = scalar_lea.vmem %s3, %s255
      %p257 = pneg %p115
      %p258 = pneg %p112
      %p259 = scmp.lt.s32.totalorder %s16, 1
      %s260 = scalar_select %p259, %s16, 1
      %s261 = smul.addr %s260, 2
      %s262 = smul.addr %s261, 8
      %s263 = scalar_lea.vmem %s4, %s262
      %p264 = pneg %p141
      %p265 = pneg %p138
      %p266 = pneg %p167
      %p267 = pneg %p164
      %p268 = scmp.lt.s32.totalorder %s16, 1
      %s269 = scalar_select %p268, %s16, 1
      %s270 = smul.addr %s269, 8
      %s271 = scalar_lea.vmem %s5, %s270
      %p272 = scmp.lt.s32.totalorder %s16, 1
      %s273 = scalar_select %p272, %s16, 1
      %s274 = smul.addr %s273, 2
      %s275 = smul.addr %s274, 8
      %s276 = scalar_lea.vmem %s0, %s275
      %p277 = scmp.lt.s32.totalorder %s16, 1
      %s278 = scalar_select %p277, %s16, 1
      %s279 = smul.addr %s278, 2
      %s280 = smul.addr %s279, 8
      %s281 = scalar_lea.vmem %s1, %s280
      %p282 = scmp.lt.s32.totalorder %s16, 1
      %s283 = scalar_select %p282, %s16, 1
      %s284 = smul.addr %s283, 2
      %s285 = smul.addr %s284, 8
      %s286 = scalar_lea.vmem %s2, %s285
      %p287 = scmp.lt.s32.totalorder %s16, 1
      %s288 = scalar_select %p287, %s16, 1
      %s289 = smul.addr %s288, 8
      %s290 = scalar_lea.vmem %s3, %s289
      %p291 = scmp.lt.s32.totalorder %s16, 1
      %s292 = scalar_select %p291, %s16, 1
      %s293 = smul.addr %s292, 2
      %s294 = smul.addr %s293, 8
      %s295 = scalar_lea.vmem %s4, %s294
      %p296 = scmp.lt.s32.totalorder %s16, 1
      %s297 = scalar_select %p296, %s16, 1
      %s298 = smul.addr %s297, 8
      %s299 = scalar_lea.vmem %s5, %s298
      %v301 = vld [vmem:[%s290] sm:$0xff]
      %v302 = vpack.c.bf16 %v301, %v301
      %v303 = vlaneseq
      %v304 = vshrl.u32 %v303, 7
      %v305 = vlaneseq
      %v306 = vand.u32 %v305, 127
      %vm307 = vcmp.le.s32.totalorder %v306, %v304
      %v308 = vld [vmem:[%s276] sm:$0xff]
      %v309 = vpack.c.bf16 %v308, %v308
      %v310 = vld [vmem:[%s281] sm:$0xff]
      %v311 = vpack.c.bf16 %v310, %v310
      %v312 = vld [vmem:[%s286] sm:$0xff]
      %v313 = vpack.c.bf16 %v312, %v312
      %v314 = vld [vmem:[%s295] sm:$0xff]
      %v315 = vpack.c.bf16 %v314, %v314
      %vm316 = vcmask 130048
      %v318 = vsel %vm316, %v311, 0
      %v321 = vsel %vm316, %v302, 0
      %323 = vmatprep.subr.bf16.mxu0 0
      %324 = vmatpush1.bf16.xpose.msra.mxu0 0
      %325 = vmatprep.subr.bf16.mxu0 0
      %326 = vmatpush1.bf16.xpose.msra.mxu0 0
      %327 = vmatprep.subr.bf16.mxu0 0
      %328 = vmatpush1.bf16.xpose.msra.mxu0 0
      %329 = vmatprep.subr.bf16.mxu0 0
      %330 = vmatpush1.bf16.xpose.msra.mxu0 0
      %331 = vmatprep.subr.bf16.mxu0 0
      %332 = vmatpush1.bf16.xpose.msra.mxu0 0
      %333 = vmatprep.subr.bf16.mxu0 0
      %334 = vmatpush1.bf16.xpose.msra.mxu0 0
      %335 = vmatprep.subr.bf16.mxu0 0
      %336 = vmatpush1.bf16.xpose.msra.mxu0 0
      %337 = vmatprep.subr.bf16.mxu0 0
      %338 = vmatpush1.bf16.xpose.msra.mxu0 %v321
      %339 = vmatprep.subr.bf16.mxu0 0
      %340 = vmatpush2.bf16.xpose.msra.mxu0 0
      %341 = vmatprep.subr.bf16.mxu0 0
      %342 = vmatpush2.bf16.xpose.msra.mxu0 0
      %343 = vmatprep.subr.bf16.mxu0 0
      %344 = vmatpush2.bf16.xpose.msra.mxu0 0
      %345 = vmatprep.subr.bf16.mxu0 0
      %346 = vmatpush2.bf16.xpose.msra.mxu0 0
      %347 = vmatprep.subr.bf16.mxu0 0
      %348 = vmatpush2.bf16.xpose.msra.mxu0 0
      %349 = vmatprep.subr.bf16.mxu0 0
      %350 = vmatpush2.bf16.xpose.msra.mxu0 0
      %351 = vmatprep.subr.bf16.mxu0 0
      %352 = vmatpush2.bf16.xpose.msra.mxu0 0
      %353 = vmatprep.subr.bf16.mxu0 0
      %354 = vmatpush2.bf16.xpose.msra.mxu0 0
      %355 = vmatprep.mubr.bf16.mxu0 0
      %356 = vmatmul.mubr.bf16.gmra.mxu0 %v318
      %v357 = vpop.f32.mrf.mxu0
      %v358 = vadd.f32 0.0, %v357
      %v359 = vpop.f32.mrf.mxu0
      %v360 = vpop.f32.mrf.mxu0
      %v361 = vpop.f32.mrf.mxu0
      %362 = vdwg.mxu0
      %vm363 = vcmask 261120
      %v365 = vsel %vm363, %v309, 0
      %v368 = vsel %vm363, %v313, 0
      %370 = vmatprep.subr.bf16.mxu0 0
      %371 = vmatpush1.bf16.xpose.msra.mxu0 0
      %372 = vmatprep.subr.bf16.mxu0 0
      %373 = vmatpush1.bf16.xpose.msra.mxu0 0
      %374 = vmatprep.subr.bf16.mxu0 0
      %375 = vmatpush1.bf16.xpose.msra.mxu0 0
      %376 = vmatprep.subr.bf16.mxu0 0
      %377 = vmatpush1.bf16.xpose.msra.mxu0 0
      %378 = vmatprep.subr.bf16.mxu0 0
      %379 = vmatpush1.bf16.xpose.msra.mxu0 0
      %380 = vmatprep.subr.bf16.mxu0 0
      %381 = vmatpush1.bf16.xpose.msra.mxu0 0
      %382 = vmatprep.subr.bf16.mxu0 0
      %383 = vmatpush1.bf16.xpose.msra.mxu0 0
      %384 = vmatprep.subr.bf16.mxu0 0
      %385 = vmatpush1.bf16.xpose.msra.mxu0 %v368
      %386 = vmatprep.subr.bf16.mxu0 0
      %387 = vmatpush2.bf16.xpose.msra.mxu0 0
      %388 = vmatprep.subr.bf16.mxu0 0
      %389 = vmatpush2.bf16.xpose.msra.mxu0 0
      %390 = vmatprep.subr.bf16.mxu0 0
      %391 = vmatpush2.bf16.xpose.msra.mxu0 0
      %392 = vmatprep.subr.bf16.mxu0 0
      %393 = vmatpush2.bf16.xpose.msra.mxu0 0
      %394 = vmatprep.subr.bf16.mxu0 0
      %395 = vmatpush2.bf16.xpose.msra.mxu0 0
      %396 = vmatprep.subr.bf16.mxu0 0
      %397 = vmatpush2.bf16.xpose.msra.mxu0 0
      %398 = vmatprep.subr.bf16.mxu0 0
      %399 = vmatpush2.bf16.xpose.msra.mxu0 0
      %400 = vmatprep.subr.bf16.mxu0 0
      %401 = vmatpush2.bf16.xpose.msra.mxu0 0
      %402 = vmatprep.mubr.bf16.mxu0 0
      %403 = vmatmul.mubr.bf16.gmra.mxu0 %v365
      %v404 = vpop.f32.mrf.mxu0
      %v405 = vadd.f32 %v358, %v404
      %v406 = vpop.f32.mrf.mxu0
      %v407 = vpop.f32.mrf.mxu0
      %v408 = vpop.f32.mrf.mxu0
      %409 = vdwg.mxu0
      %v410 = vmul.f32 %v405, 0.14433756
      %v411 = vsel %vm307, %v410, -1e+30
      %vm412 = vcmask 64512
      %v413 = vsel %vm412, %v411, -inf
      %414 = vmax.xlane.f32.xlu0 %v413
      %v415 = vpop.xlane.xlu0 %414
      %v416 = vsub.f32 %v411, %v415
      %v417 = vmul.f32 %v416, 1.442695
      %v418 = vpow.pop %v417
      %v419 = vsel %vm412, %v418, 0.0
      %420 = vadd.xlane.f32.xlu0 %v419
      %v421 = vpop.xlane.xlu0 %420
      %v422 = vpack.c.bf16 %v418, %v418
      %v424 = vsel %vm412, %v422, 0
      %vm426 = vcmask 1043456
      %v428 = vsel %vm426, %v315, 0
      %430 = vmatprep.subr.bf16.mxu0 0
      %431 = vmatpush1.bf16.msra.mxu0 0
      %432 = vmatprep.subr.bf16.mxu0 0
      %433 = vmatpush1.bf16.msra.mxu0 0
      %434 = vmatprep.subr.bf16.mxu0 0
      %435 = vmatpush1.bf16.msra.mxu0 0
      %436 = vmatprep.subr.bf16.mxu0 0
      %437 = vmatpush1.bf16.msra.mxu0 0
      %438 = vmatprep.subr.bf16.mxu0 0
      %439 = vmatpush1.bf16.msra.mxu0 0
      %440 = vmatprep.subr.bf16.mxu0 0
      %441 = vmatpush1.bf16.msra.mxu0 0
      %442 = vmatprep.subr.bf16.mxu0 0
      %443 = vmatpush1.bf16.msra.mxu0 0
      %444 = vmatprep.subr.bf16.mxu0 0
      %445 = vmatpush1.bf16.msra.mxu0 %v428
      %446 = vmatprep.subr.bf16.mxu0 0
      %447 = vmatpush2.bf16.msra.mxu0 0
      %448 = vmatprep.subr.bf16.mxu0 0
      %449 = vmatpush2.bf16.msra.mxu0 0
      %450 = vmatprep.subr.bf16.mxu0 0
      %451 = vmatpush2.bf16.msra.mxu0 0
      %452 = vmatprep.subr.bf16.mxu0 0
      %453 = vmatpush2.bf16.msra.mxu0 0
      %454 = vmatprep.subr.bf16.mxu0 0
      %455 = vmatpush2.bf16.msra.mxu0 0
      %456 = vmatprep.subr.bf16.mxu0 0
      %457 = vmatpush2.bf16.msra.mxu0 0
      %458 = vmatprep.subr.bf16.mxu0 0
      %459 = vmatpush2.bf16.msra.mxu0 0
      %460 = vmatprep.subr.bf16.mxu0 0
      %461 = vmatpush2.bf16.msra.mxu0 0
      %462 = vmatprep.mubr.bf16.mxu0 0
      %463 = vmatmul.mubr.bf16.gmra.mxu0 %v424
      %v464 = vpop.f32.mrf.mxu0
      %v465 = vadd.f32 0.0, %v464
      %v466 = vpop.f32.mrf.mxu0
      %v467 = vpop.f32.mrf.mxu0
      %v468 = vpop.f32.mrf.mxu0
      %469 = vdwg.mxu0
      %v470 = vrcp.pop %v421
      %v471 = vmul.f32 %v465, %v470
      %472 = vst.msk [vmem:[%s299] sm:$0xff] %vm363, %v471
      %s473 = scalar_lea.vmem %s276, 8
      %v474 = vld [vmem:[%s473] sm:$0xff]
      %v475 = vpack.c.bf16 %v474, %v474
      %s476 = scalar_lea.vmem %s281, 8
      %v477 = vld [vmem:[%s476] sm:$0xff]
      %v478 = vpack.c.bf16 %v477, %v477
      %s479 = scalar_lea.vmem %s286, 8
      %v480 = vld [vmem:[%s479] sm:$0xff]
      %v481 = vpack.c.bf16 %v480, %v480
      %s482 = scalar_lea.vmem %s295, 8
      %v483 = vld [vmem:[%s482] sm:$0xff]
      %v484 = vpack.c.bf16 %v483, %v483
      %v486 = vsel %vm316, %v478, 0
      %488 = vmatprep.subr.bf16.mxu0 0
      %489 = vmatpush1.bf16.xpose.msra.mxu0 0
      %490 = vmatprep.subr.bf16.mxu0 0
      %491 = vmatpush1.bf16.xpose.msra.mxu0 0
      %492 = vmatprep.subr.bf16.mxu0 0
      %493 = vmatpush1.bf16.xpose.msra.mxu0 0
      %494 = vmatprep.subr.bf16.mxu0 0
      %495 = vmatpush1.bf16.xpose.msra.mxu0 0
      %496 = vmatprep.subr.bf16.mxu0 0
      %497 = vmatpush1.bf16.xpose.msra.mxu0 0
      %498 = vmatprep.subr.bf16.mxu0 0
      %499 = vmatpush1.bf16.xpose.msra.mxu0 0
      %500 = vmatprep.subr.bf16.mxu0 0
      %501 = vmatpush1.bf16.xpose.msra.mxu0 0
      %502 = vmatprep.subr.bf16.mxu0 0
      %503 = vmatpush1.bf16.xpose.msra.mxu0 %v321
      %504 = vmatprep.subr.bf16.mxu0 0
      %505 = vmatpush2.bf16.xpose.msra.mxu0 0
      %506 = vmatprep.subr.bf16.mxu0 0
      %507 = vmatpush2.bf16.xpose.msra.mxu0 0
      %508 = vmatprep.subr.bf16.mxu0 0
      %509 = vmatpush2.bf16.xpose.msra.mxu0 0
      %510 = vmatprep.subr.bf16.mxu0 0
      %511 = vmatpush2.bf16.xpose.msra.mxu0 0
      %512 = vmatprep.subr.bf16.mxu0 0
      %513 = vmatpush2.bf16.xpose.msra.mxu0 0
      %514 = vmatprep.subr.bf16.mxu0 0
      %515 = vmatpush2.bf16.xpose.msra.mxu0 0
      %516 = vmatprep.subr.bf16.mxu0 0
      %517 = vmatpush2.bf16.xpose.msra.mxu0 0
      %518 = vmatprep.subr.bf16.mxu0 0
      %519 = vmatpush2.bf16.xpose.msra.mxu0 0
      %520 = vmatprep.mubr.bf16.mxu0 0
      %521 = vmatmul.mubr.bf16.gmra.mxu0 %v486
      %v522 = vpop.f32.mrf.mxu0
      %v523 = vadd.f32 0.0, %v522
      %v524 = vpop.f32.mrf.mxu0
      %v525 = vpop.f32.mrf.mxu0
      %v526 = vpop.f32.mrf.mxu0
      %527 = vdwg.mxu0
      %v529 = vsel %vm363, %v475, 0
      %v532 = vsel %vm363, %v481, 0
      %534 = vmatprep.subr.bf16.mxu0 0
      %535 = vmatpush1.bf16.xpose.msra.mxu0 0
      %536 = vmatprep.subr.bf16.mxu0 0
      %537 = vmatpush1.bf16.xpose.msra.mxu0 0
      %538 = vmatprep.subr.bf16.mxu0 0
      %539 = vmatpush1.bf16.xpose.msra.mxu0 0
      %540 = vmatprep.subr.bf16.mxu0 0
      %541 = vmatpush1.bf16.xpose.msra.mxu0 0
      %542 = vmatprep.subr.bf16.mxu0 0
      %543 = vmatpush1.bf16.xpose.msra.mxu0 0
      %544 = vmatprep.subr.bf16.mxu0 0
      %545 = vmatpush1.bf16.xpose.msra.mxu0 0
      %546 = vmatprep.subr.bf16.mxu0 0
      %547 = vmatpush1.bf16.xpose.msra.mxu0 0
      %548 = vmatprep.subr.bf16.mxu0 0
      %549 = vmatpush1.bf16.xpose.msra.mxu0 %v532
      %550 = vmatprep.subr.bf16.mxu0 0
      %551 = vmatpush2.bf16.xpose.msra.mxu0 0
      %552 = vmatprep.subr.bf16.mxu0 0
      %553 = vmatpush2.bf16.xpose.msra.mxu0 0
      %554 = vmatprep.subr.bf16.mxu0 0
      %555 = vmatpush2.bf16.xpose.msra.mxu0 0
      %556 = vmatprep.subr.bf16.mxu0 0
      %557 = vmatpush2.bf16.xpose.msra.mxu0 0
      %558 = vmatprep.subr.bf16.mxu0 0
      %559 = vmatpush2.bf16.xpose.msra.mxu0 0
      %560 = vmatprep.subr.bf16.mxu0 0
      %561 = vmatpush2.bf16.xpose.msra.mxu0 0
      %562 = vmatprep.subr.bf16.mxu0 0
      %563 = vmatpush2.bf16.xpose.msra.mxu0 0
      %564 = vmatprep.subr.bf16.mxu0 0
      %565 = vmatpush2.bf16.xpose.msra.mxu0 0
      %566 = vmatprep.mubr.bf16.mxu0 0
      %567 = vmatmul.mubr.bf16.gmra.mxu0 %v529
      %v568 = vpop.f32.mrf.mxu0
      %v569 = vadd.f32 %v523, %v568
      %v570 = vpop.f32.mrf.mxu0
      %v571 = vpop.f32.mrf.mxu0
      %v572 = vpop.f32.mrf.mxu0
      %573 = vdwg.mxu0
      %v574 = vmul.f32 %v569, 0.14433756
      %v575 = vsel %vm307, %v574, -1e+30
      %v576 = vsel %vm412, %v575, -inf
      %577 = vmax.xlane.f32.xlu0 %v576
      %v578 = vpop.xlane.xlu0 %577
      %v579 = vsub.f32 %v575, %v578
      %v580 = vmul.f32 %v579, 1.442695
      %v581 = vpow.pop %v580
      %v582 = vsel %vm412, %v581, 0.0
      %583 = vadd.xlane.f32.xlu0 %v582
      %v584 = vpop.xlane.xlu0 %583
      %v585 = vpack.c.bf16 %v581, %v581
      %v587 = vsel %vm412, %v585, 0
      %v590 = vsel %vm426, %v484, 0
      %592 = vmatprep.subr.bf16.mxu0 0
      %593 = vmatpush1.bf16.msra.mxu0 0
      %594 = vmatprep.subr.bf16.mxu0 0
      %595 = vmatpush1.bf16.msra.mxu0 0
      %596 = vmatprep.subr.bf16.mxu0 0
      %597 = vmatpush1.bf16.msra.mxu0 0
      %598 = vmatprep.subr.bf16.mxu0 0
      %599 = vmatpush1.bf16.msra.mxu0 0
      %600 = vmatprep.subr.bf16.mxu0 0
      %601 = vmatpush1.bf16.msra.mxu0 0
      %602 = vmatprep.subr.bf16.mxu0 0
      %603 = vmatpush1.bf16.msra.mxu0 0
      %604 = vmatprep.subr.bf16.mxu0 0
      %605 = vmatpush1.bf16.msra.mxu0 0
      %606 = vmatprep.subr.bf16.mxu0 0
      %607 = vmatpush1.bf16.msra.mxu0 %v590
      %608 = vmatprep.subr.bf16.mxu0 0
      %609 = vmatpush2.bf16.msra.mxu0 0
      %610 = vmatprep.subr.bf16.mxu0 0
      %611 = vmatpush2.bf16.msra.mxu0 0
      %612 = vmatprep.subr.bf16.mxu0 0
      %613 = vmatpush2.bf16.msra.mxu0 0
      %614 = vmatprep.subr.bf16.mxu0 0
      %615 = vmatpush2.bf16.msra.mxu0 0
      %616 = vmatprep.subr.bf16.mxu0 0
      %617 = vmatpush2.bf16.msra.mxu0 0
      %618 = vmatprep.subr.bf16.mxu0 0
      %619 = vmatpush2.bf16.msra.mxu0 0
      %620 = vmatprep.subr.bf16.mxu0 0
      %621 = vmatpush2.bf16.msra.mxu0 0
      %622 = vmatprep.subr.bf16.mxu0 0
      %623 = vmatpush2.bf16.msra.mxu0 0
      %624 = vmatprep.mubr.bf16.mxu0 0
      %625 = vmatmul.mubr.bf16.gmra.mxu0 %v587
      %v626 = vpop.f32.mrf.mxu0
      %v627 = vadd.f32 0.0, %v626
      %v628 = vpop.f32.mrf.mxu0
      %v629 = vpop.f32.mrf.mxu0
      %v630 = vpop.f32.mrf.mxu0
      %631 = vdwg.mxu0
      %v632 = vrcp.pop %v584
      %v633 = vmul.f32 %v627, %v632
      %635 = vrot.lane.b32.xlu0 %v633, 32
      %v636 = vpop.permute.xlu0 %635
      %vm638 = vcmask 523520
      %639 = vst.msk [vmem:[%s299] sm:$0xff] %vm638, %v636
      %p640 = scmp.lt.s32.totalorder %s16, 1
      %s641 = scalar_select %p640, %s16, 1
      %s642 = smul.addr %s641, 8
      %s643 = scalar_lea.vmem %s5, %s642
      // Predicated region
      $region41: #{deepseek_forward.17} parent=39 // pred_check
        %p644 = pneg %p164
      $region42: #{deepseek_forward.17} parent=39 // pred_check_branch
        %646 = sbr.rel (%p644) target = $region44
      $region43: #{deepseek_forward.17} parent=39 // pred_region
        _
      $region44: #{deepseek_forward.17} parent=39 // pred_fallthru
        _
    $region40: #{deepseek_forward.17} parent=5 // pred_fallthru
      _
    %p647 = scmp.le.s32.totalorder 2, %s11
    // Predicated region
    $region45: #{deepseek_forward.17} parent=5 // pred_check
      %p648 = pneg %p647
    $region46: #{deepseek_forward.17} parent=5 // pred_check_branch
      %650 = sbr.rel (%p648) target = $region48
    $region47: #{deepseek_forward.17} parent=5 // pred_region
      %s651 = ssub.s32 %s11, 2
      // Predicated region
      $region49: #{deepseek_forward.17} parent=47 // pred_check
        %p652 = pneg %p170
      $region50: #{deepseek_forward.17} parent=47 // pred_check_branch
        %654 = sbr.rel (%p652) target = $region52
      $region51: #{deepseek_forward.17} parent=47 // pred_region
        %p655 = scmp.lt.s32.totalorder %s17, 1
        %s656 = scalar_select %p655, %s17, 1
        %s657 = smul.addr %s656, 8
        %s658 = scalar_lea.vmem %s5, %s657
      $region52: #{deepseek_forward.17} parent=47 // pred_fallthru
        _
    $region48: #{deepseek_forward.17} parent=5 // pred_fallthru
      _
  $region6: #{deepseek_forward.17} parent=0 // loop_footer
    %s15 = sadd.s32 1, %s11
  $region7: #{deepseek_forward.17} parent=0 // loop_footer_branch
    %10 = sbr.rel target = $region3
  $region8: #{deepseek_forward.17} parent=0 // loop_exit
    _

// kernel: deepseek_forward.24
$region0: #{deepseek_forward.24}
  #allocation0 [shape = 'u32[]', space=smem, size = 0x4, offset = 0x4, fixed_abs, tag = 'smem constant byte address 0x4 - core index']
  #allocation1 [shape = 'u32[144,128]{1,0:T(1,128)}', space=vmem, size = 0x12000, scoped, tag = 'internal scratch']
  %s0 = inlined_call_operand.vmem [shape: f32[16,128], index: 0, kind: input, shape index: {}]
  %s1 = inlined_call_operand.vmem [shape: f32[1,128], index: 1, kind: input, shape index: {}]
  %s2 = inlined_call_operand.vmem [shape: f32[16,128], index: 2, kind: output, shape index: {}]
  %s3 = sld [smem:[#allocation0]]
  $region18: #{deepseek_forward.24} parent=0
    _
  %s5 = ssub.s32 1, %s3
  %s6 = scalar_select 0, %s5, %s3
  // Predicated region
  $region2: #{deepseek_forward.24} parent=0 // pred_check
    _
  $region3: #{deepseek_forward.24} parent=0 // pred_check_branch
    %8 = sbr.rel (0) target = $region5
  $region4: #{deepseek_forward.24} parent=0 // pred_region
    _
  $region5: #{deepseek_forward.24} parent=0 // pred_fallthru
    _
  // Predicated region
  $region6: #{deepseek_forward.24} parent=0 // pred_check
    _
  $region7: #{deepseek_forward.24} parent=0 // pred_check_branch
    %10 = sbr.rel (0) target = $region9
  $region8: #{deepseek_forward.24} parent=0 // pred_region
    _
  $region9: #{deepseek_forward.24} parent=0 // pred_fallthru
    _
  %v11 = vld [vmem:[%s0] sm:$0xff]
  %v12 = vld [vmem:[%s0 + $0x8] sm:$0xff]
  %v13 = vmul.f32 %v11, %v11
  %v14 = vmul.f32 %v12, %v12
  %15 = vadd.xlane.f32.xlu0 %v13
  %v16 = vpop.xlane.xlu0 %15
  %17 = vadd.xlane.f32.xlu0 %v14
  %v18 = vpop.xlane.xlu0 %17
  %v19 = vrcp.pop 128.0
  %v20 = vmul.f32 %v16, %v19
  %v21 = vmul.f32 %v18, %v19
  %v22 = vadd.f32 %v20, 1e-06
  %v23 = vadd.f32 %v21, 1e-06
  %v24 = vrsqrt.pop %v22
  %v25 = vrsqrt.pop %v23
  %v26 = vmul.f32 %v11, %v24
  %v27 = vmul.f32 %v12, %v25
  %v28 = vld [vmem:[%s1] sm:$0x1]
  %v30 = vlaneseq
  %v31 = vshrl.u32 %v30, 7
  %v32 = vsub.s32 0, %v31
  %v33 = vrot.slane %v28, %v32
  %v35 = vmul.f32 %v26, %v33
  %v36 = vmul.f32 %v27, %v33
  %37 = vst [vmem:[%s2] sm:$0xff] %v35
  %38 = vst [vmem:[%s2 + $0x8] sm:$0xff] %v36
  // Predicated region
  $region10: #{deepseek_forward.24} parent=0 // pred_check
    _
  $region11: #{deepseek_forward.24} parent=0 // pred_check_branch
    %40 = sbr.rel (0) target = $region13
  $region12: #{deepseek_forward.24} parent=0 // pred_region
    _
  $region13: #{deepseek_forward.24} parent=0 // pred_fallthru
    _
  // Predicated region
  $region14: #{deepseek_forward.24} parent=0 // pred_check
    _
  $region15: #{deepseek_forward.24} parent=0 // pred_check_branch
    %42 = sbr.rel (0) target = $region17
  $region16: #{deepseek_forward.24} parent=0 // pred_region
    _
  $region17: #{deepseek_forward.24} parent=0 // pred_fallthru
    _

// kernel: deepseek_forward.19
$region0: #{deepseek_forward.19}
  #allocation0 [shape = 'u32[]', space=smem, size = 0x4, offset = 0x4, fixed_abs, tag = 'smem constant byte address 0x4 - core index']
  #allocation1 [shape = 'u32[144,128]{1,0:T(1,128)}', space=vmem, size = 0x12000, scoped, tag = 'internal scratch']
  #allocation2 [shape = 'bf16[16,128]{1,0:T(8,128)(2,1)}', space=vmem, size = 0x1000, scoped, tag = 'scratch operand']
  #allocation3 [shape = 'f32[16,128]{1,0:T(8,128)}', space=vmem, size = 0x2000, scoped, tag = 'scratch operand']
  %s0 = inlined_call_operand.vmem [shape: f32[16,128], index: 0, kind: input, shape index: {}]
  %s1 = inlined_call_operand.vmem [shape: f32[1,128], index: 1, kind: input, shape index: {}]
  %s2 = inlined_call_operand.vmem [shape: bf16[128,256], index: 2, kind: input, shape index: {}]
  %s3 = inlined_call_operand.vmem [shape: bf16[128,256], index: 3, kind: input, shape index: {}]
  %s4 = inlined_call_operand.vmem [shape: bf16[256,128], index: 4, kind: input, shape index: {}]
  %s5 = inlined_call_operand.vmem [shape: f32[16,128], index: 5, kind: output, shape index: {}]
  %s6 = sld [smem:[#allocation0]]
  $region38: #{deepseek_forward.19} parent=0
    _
  %s8 = ssub.s32 1, %s6
  %s9 = scalar_select 0, %s8, %s6
  // Predicated region
  $region2: #{deepseek_forward.19} parent=0 // pred_check
    _
  $region3: #{deepseek_forward.19} parent=0 // pred_check_branch
    %11 = sbr.rel (0) target = $region5
  $region4: #{deepseek_forward.19} parent=0 // pred_region
    _
  $region5: #{deepseek_forward.19} parent=0 // pred_fallthru
    _
  // Predicated region
  $region6: #{deepseek_forward.19} parent=0 // pred_check
    _
  $region7: #{deepseek_forward.19} parent=0 // pred_check_branch
    %13 = sbr.rel (0) target = $region9
  $region8: #{deepseek_forward.19} parent=0 // pred_region
    _
  $region9: #{deepseek_forward.19} parent=0 // pred_fallthru
    _
  // Predicated region
  $region10: #{deepseek_forward.19} parent=0 // pred_check
    _
  $region11: #{deepseek_forward.19} parent=0 // pred_check_branch
    %15 = sbr.rel (0) target = $region13
  $region12: #{deepseek_forward.19} parent=0 // pred_region
    _
  $region13: #{deepseek_forward.19} parent=0 // pred_fallthru
    _
  // Predicated region
  $region14: #{deepseek_forward.19} parent=0 // pred_check
    _
  $region15: #{deepseek_forward.19} parent=0 // pred_check_branch
    %17 = sbr.rel (0) target = $region17
  $region16: #{deepseek_forward.19} parent=0 // pred_region
    _
  $region17: #{deepseek_forward.19} parent=0 // pred_fallthru
    _
  // Predicated region
  $region18: #{deepseek_forward.19} parent=0 // pred_check
    _
  $region19: #{deepseek_forward.19} parent=0 // pred_check_branch
    %19 = sbr.rel (0) target = $region21
  $region20: #{deepseek_forward.19} parent=0 // pred_region
    _
  $region21: #{deepseek_forward.19} parent=0 // pred_fallthru
    _
  %p21 = scmp.eq.s32.totalorder 0, 0
  // Predicated region
  $region22: #{deepseek_forward.19} parent=0 // pred_check
    %p22 = pneg %p21
  $region23: #{deepseek_forward.19} parent=0 // pred_check_branch
    %24 = sbr.rel (%p22) target = $region25
  $region24: #{deepseek_forward.19} parent=0 // pred_region
    %v25 = vld [vmem:[%s0] sm:$0xff]
    %v26 = vld [vmem:[%s0 + $0x8] sm:$0xff]
    %v27 = vmul.f32 %v25, %v25
    %v28 = vmul.f32 %v26, %v26
    %29 = vadd.xlane.f32.xlu0 %v27
    %v30 = vpop.xlane.xlu0 %29
    %31 = vadd.xlane.f32.xlu0 %v28
    %v32 = vpop.xlane.xlu0 %31
    %v33 = vrcp.pop 128.0
    %v34 = vmul.f32 %v30, %v33
    %v35 = vmul.f32 %v32, %v33
    %v36 = vadd.f32 %v34, 1e-06
    %v37 = vadd.f32 %v35, 1e-06
    %v38 = vrsqrt.pop %v36
    %v39 = vrsqrt.pop %v37
    %v40 = vmul.f32 %v25, %v38
    %v41 = vmul.f32 %v26, %v39
    %v42 = vld [vmem:[%s1] sm:$0x1]
    %v44 = vlaneseq
    %v45 = vshrl.u32 %v44, 7
    %v46 = vsub.s32 0, %v45
    %v47 = vrot.slane %v42, %v46
    %v49 = vmul.f32 %v40, %v47
    %v50 = vmul.f32 %v41, %v47
    %v51 = vpack.c.bf16 %v50, %v49
    %v53 = vunpack.c.l.b16 %v51
    %v54 = vunpack.c.h.b16 %v51
    %v55 = vpack.c.b16 %v53, %v53
    %v56 = vpack.c.b16 %v54, %v54
    %59 = vst [vmem:[#allocation2] sm:$0xf] %v55
    %60 = vst [vmem:[#allocation2 + $0x4] sm:$0xf] %v56
    %61 = vst [vmem:[#allocation3] sm:$0xff] 0.0
    %62 = vst [vmem:[#allocation3 + $0x8] sm:$0xff] 0.0
  $region25: #{deepseek_forward.19} parent=0 // pred_fallthru
    _
  %v63 = vld [vmem:[#allocation2] sm:$0xf]
  %v64 = vld [vmem:[#allocation2 + $0x4] sm:$0xf]
  %v65 = vld [vmem:[%s2] sm:$0xff]
  %v66 = vld [vmem:[%s2 + $0x8] sm:$0xff]
  %v67 = vld [vmem:[%s2 + $0x10] sm:$0xff]
  %v68 = vld [vmem:[%s2 + $0x18] sm:$0xff]
  %v69 = vld [vmem:[%s2 + $0x20] sm:$0xff]
  %v70 = vld [vmem:[%s2 + $0x28] sm:$0xff]
  %v71 = vld [vmem:[%s2 + $0x30] sm:$0xff]
  %v72 = vld [vmem:[%s2 + $0x38] sm:$0xff]
  %v73 = vld [vmem:[%s2 + $0x40] sm:$0xff]
  %v74 = vld [vmem:[%s2 + $0x48] sm:$0xff]
  %v75 = vld [vmem:[%s2 + $0x50] sm:$0xff]
  %v76 = vld [vmem:[%s2 + $0x58] sm:$0xff]
  %v77 = vld [vmem:[%s2 + $0x60] sm:$0xff]
  %v78 = vld [vmem:[%s2 + $0x68] sm:$0xff]
  %v79 = vld [vmem:[%s2 + $0x70] sm:$0xff]
  %v80 = vld [vmem:[%s2 + $0x78] sm:$0xff]
  %v83 = vunpack.c.l.b16 %v63
  %v84 = vunpack.c.l.b16 %v64
  %v85 = vpack.c.b16 %v84, %v83
  %v103 = vunpack.c.l.b16 %v65
  %v104 = vunpack.c.h.b16 %v65
  %v105 = vunpack.c.l.b16 %v66
  %v106 = vunpack.c.h.b16 %v66
  %v107 = vunpack.c.l.b16 %v67
  %v108 = vunpack.c.h.b16 %v67
  %v109 = vunpack.c.l.b16 %v68
  %v110 = vunpack.c.h.b16 %v68
  %v111 = vunpack.c.l.b16 %v69
  %v112 = vunpack.c.h.b16 %v69
  %v113 = vunpack.c.l.b16 %v70
  %v114 = vunpack.c.h.b16 %v70
  %v115 = vunpack.c.l.b16 %v71
  %v116 = vunpack.c.h.b16 %v71
  %v117 = vunpack.c.l.b16 %v72
  %v118 = vunpack.c.h.b16 %v72
  %v119 = vunpack.c.l.b16 %v73
  %v120 = vunpack.c.h.b16 %v73
  %v121 = vunpack.c.l.b16 %v74
  %v122 = vunpack.c.h.b16 %v74
  %v123 = vunpack.c.l.b16 %v75
  %v124 = vunpack.c.h.b16 %v75
  %v125 = vunpack.c.l.b16 %v76
  %v126 = vunpack.c.h.b16 %v76
  %v127 = vunpack.c.l.b16 %v77
  %v128 = vunpack.c.h.b16 %v77
  %v129 = vunpack.c.l.b16 %v78
  %v130 = vunpack.c.h.b16 %v78
  %v131 = vunpack.c.l.b16 %v79
  %v132 = vunpack.c.h.b16 %v79
  %v133 = vunpack.c.l.b16 %v80
  %v134 = vunpack.c.h.b16 %v80
  %v135 = vpack.c.b16 %v105, %v103
  %v136 = vpack.c.b16 %v106, %v104
  %v137 = vpack.c.b16 %v109, %v107
  %v138 = vpack.c.b16 %v110, %v108
  %v139 = vpack.c.b16 %v113, %v111
  %v140 = vpack.c.b16 %v114, %v112
  %v141 = vpack.c.b16 %v117, %v115
  %v142 = vpack.c.b16 %v118, %v116
  %v143 = vpack.c.b16 %v121, %v119
  %v144 = vpack.c.b16 %v122, %v120
  %v145 = vpack.c.b16 %v125, %v123
  %v146 = vpack.c.b16 %v126, %v124
  %v147 = vpack.c.b16 %v129, %v127
  %v148 = vpack.c.b16 %v130, %v128
  %v149 = vpack.c.b16 %v133, %v131
  %v150 = vpack.c.b16 %v134, %v132
  %167 = vmatprep.subr.bf16.mxu0 %v150
  %168 = vmatpush1.bf16.msra.mxu0 %v149
  %169 = vmatprep.subr.bf16.mxu0 %v148
  %170 = vmatpush1.bf16.msra.mxu0 %v147
  %171 = vmatprep.subr.bf16.mxu0 %v146
  %172 = vmatpush1.bf16.msra.mxu0 %v145
  %173 = vmatprep.subr.bf16.mxu0 %v144
  %174 = vmatpush1.bf16.msra.mxu0 %v143
  %175 = vmatprep.subr.bf16.mxu0 %v142
  %176 = vmatpush1.bf16.msra.mxu0 %v141
  %177 = vmatprep.subr.bf16.mxu0 %v140
  %178 = vmatpush1.bf16.msra.mxu0 %v139
  %179 = vmatprep.subr.bf16.mxu0 %v138
  %180 = vmatpush1.bf16.msra.mxu0 %v137
  %181 = vmatprep.subr.bf16.mxu0 %v136
  %182 = vmatpush1.bf16.msra.mxu0 %v135
  %183 = vmatprep.subr.bf16.mxu0 0
  %184 = vmatpush2.bf16.msra.mxu0 0
  %185 = vmatprep.subr.bf16.mxu0 0
  %186 = vmatpush2.bf16.msra.mxu0 0
  %187 = vmatprep.subr.bf16.mxu0 0
  %188 = vmatpush2.bf16.msra.mxu0 0
  %189 = vmatprep.subr.bf16.mxu0 0
  %190 = vmatpush2.bf16.msra.mxu0 0
  %191 = vmatprep.subr.bf16.mxu0 0
  %192 = vmatpush2.bf16.msra.mxu0 0
  %193 = vmatprep.subr.bf16.mxu0 0
  %194 = vmatpush2.bf16.msra.mxu0 0
  %195 = vmatprep.subr.bf16.mxu0 0
  %196 = vmatpush2.bf16.msra.mxu0 0
  %197 = vmatprep.subr.bf16.mxu0 0
  %198 = vmatpush2.bf16.msra.mxu0 0
  %199 = vmatprep.mubr.bf16.mxu0 0
  %200 = vmatmul.mubr.bf16.gmra.mxu0 %v85
  %v201 = vpop.f32.mrf.mxu0
  %v202 = vadd.f32 0.0, %v201
  %v203 = vpop.f32.mrf.mxu0
  %v204 = vadd.f32 0.0, %v203
  %v205 = vpop.f32.mrf.mxu0
  %v206 = vadd.f32 0.0, %v205
  %v207 = vpop.f32.mrf.mxu0
  %v208 = vadd.f32 0.0, %v207
  %209 = vdwg.mxu0
  %v210 = vld [vmem:[%s3] sm:$0xff]
  %v211 = vld [vmem:[%s3 + $0x8] sm:$0xff]
  %v212 = vld [vmem:[%s3 + $0x10] sm:$0xff]
  %v213 = vld [vmem:[%s3 + $0x18] sm:$0xff]
  %v214 = vld [vmem:[%s3 + $0x20] sm:$0xff]
  %v215 = vld [vmem:[%s3 + $0x28] sm:$0xff]
  %v216 = vld [vmem:[%s3 + $0x30] sm:$0xff]
  %v217 = vld [vmem:[%s3 + $0x38] sm:$0xff]
  %v218 = vld [vmem:[%s3 + $0x40] sm:$0xff]
  %v219 = vld [vmem:[%s3 + $0x48] sm:$0xff]
  %v220 = vld [vmem:[%s3 + $0x50] sm:$0xff]
  %v221 = vld [vmem:[%s3 + $0x58] sm:$0xff]
  %v222 = vld [vmem:[%s3 + $0x60] sm:$0xff]
  %v223 = vld [vmem:[%s3 + $0x68] sm:$0xff]
  %v224 = vld [vmem:[%s3 + $0x70] sm:$0xff]
  %v225 = vld [vmem:[%s3 + $0x78] sm:$0xff]
  %v242 = vunpack.c.l.b16 %v210
  %v243 = vunpack.c.h.b16 %v210
  %v244 = vunpack.c.l.b16 %v211
  %v245 = vunpack.c.h.b16 %v211
  %v246 = vunpack.c.l.b16 %v212
  %v247 = vunpack.c.h.b16 %v212
  %v248 = vunpack.c.l.b16 %v213
  %v249 = vunpack.c.h.b16 %v213
  %v250 = vunpack.c.l.b16 %v214
  %v251 = vunpack.c.h.b16 %v214
  %v252 = vunpack.c.l.b16 %v215
  %v253 = vunpack.c.h.b16 %v215
  %v254 = vunpack.c.l.b16 %v216
  %v255 = vunpack.c.h.b16 %v216
  %v256 = vunpack.c.l.b16 %v217
  %v257 = vunpack.c.h.b16 %v217
  %v258 = vunpack.c.l.b16 %v218
  %v259 = vunpack.c.h.b16 %v218
  %v260 = vunpack.c.l.b16 %v219
  %v261 = vunpack.c.h.b16 %v219
  %v262 = vunpack.c.l.b16 %v220
  %v263 = vunpack.c.h.b16 %v220
  %v264 = vunpack.c.l.b16 %v221
  %v265 = vunpack.c.h.b16 %v221
  %v266 = vunpack.c.l.b16 %v222
  %v267 = vunpack.c.h.b16 %v222
  %v268 = vunpack.c.l.b16 %v223
  %v269 = vunpack.c.h.b16 %v223
  %v270 = vunpack.c.l.b16 %v224
  %v271 = vunpack.c.h.b16 %v224
  %v272 = vunpack.c.l.b16 %v225
  %v273 = vunpack.c.h.b16 %v225
  %v274 = vpack.c.b16 %v244, %v242
  %v275 = vpack.c.b16 %v245, %v243
  %v276 = vpack.c.b16 %v248, %v246
  %v277 = vpack.c.b16 %v249, %v247
  %v278 = vpack.c.b16 %v252, %v250
  %v279 = vpack.c.b16 %v253, %v251
  %v280 = vpack.c.b16 %v256, %v254
  %v281 = vpack.c.b16 %v257, %v255
  %v282 = vpack.c.b16 %v260, %v258
  %v283 = vpack.c.b16 %v261, %v259
  %v284 = vpack.c.b16 %v264, %v262
  %v285 = vpack.c.b16 %v265, %v263
  %v286 = vpack.c.b16 %v268, %v266
  %v287 = vpack.c.b16 %v269, %v267
  %v288 = vpack.c.b16 %v272, %v270
  %v289 = vpack.c.b16 %v273, %v271
  %306 = vmatprep.subr.bf16.mxu0 %v289
  %307 = vmatpush1.bf16.msra.mxu0 %v288
  %308 = vmatprep.subr.bf16.mxu0 %v287
  %309 = vmatpush1.bf16.msra.mxu0 %v286
  %310 = vmatprep.subr.bf16.mxu0 %v285
  %311 = vmatpush1.bf16.msra.mxu0 %v284
  %312 = vmatprep.subr.bf16.mxu0 %v283
  %313 = vmatpush1.bf16.msra.mxu0 %v282
  %314 = vmatprep.subr.bf16.mxu0 %v281
  %315 = vmatpush1.bf16.msra.mxu0 %v280
  %316 = vmatprep.subr.bf16.mxu0 %v279
  %317 = vmatpush1.bf16.msra.mxu0 %v278
  %318 = vmatprep.subr.bf16.mxu0 %v277
  %319 = vmatpush1.bf16.msra.mxu0 %v276
  %320 = vmatprep.subr.bf16.mxu0 %v275
  %321 = vmatpush1.bf16.msra.mxu0 %v274
  %322 = vmatprep.subr.bf16.mxu0 0
  %323 = vmatpush2.bf16.msra.mxu0 0
  %324 = vmatprep.subr.bf16.mxu0 0
  %325 = vmatpush2.bf16.msra.mxu0 0
  %326 = vmatprep.subr.bf16.mxu0 0
  %327 = vmatpush2.bf16.msra.mxu0 0
  %328 = vmatprep.subr.bf16.mxu0 0
  %329 = vmatpush2.bf16.msra.mxu0 0
  %330 = vmatprep.subr.bf16.mxu0 0
  %331 = vmatpush2.bf16.msra.mxu0 0
  %332 = vmatprep.subr.bf16.mxu0 0
  %333 = vmatpush2.bf16.msra.mxu0 0
  %334 = vmatprep.subr.bf16.mxu0 0
  %335 = vmatpush2.bf16.msra.mxu0 0
  %336 = vmatprep.subr.bf16.mxu0 0
  %337 = vmatpush2.bf16.msra.mxu0 0
  %338 = vmatprep.mubr.bf16.mxu0 0
  %339 = vmatmul.mubr.bf16.gmra.mxu0 %v85
  %v340 = vpop.f32.mrf.mxu0
  %v341 = vadd.f32 0.0, %v340
  %v342 = vpop.f32.mrf.mxu0
  %v343 = vadd.f32 0.0, %v342
  %v344 = vpop.f32.mrf.mxu0
  %v345 = vadd.f32 0.0, %v344
  %v346 = vpop.f32.mrf.mxu0
  %v347 = vadd.f32 0.0, %v346
  %348 = vdwg.mxu0
  %v349 = vxor.u32 %v202, 2147483648
  %v350 = vxor.u32 %v204, 2147483648
  %v351 = vxor.u32 %v206, 2147483648
  %v352 = vxor.u32 %v208, 2147483648
  %v353 = vmul.f32 %v349, 1.442695
  %v354 = vpow.pop %v353
  %v355 = vmul.f32 %v350, 1.442695
  %v356 = vpow.pop %v355
  %v357 = vmul.f32 %v351, 1.442695
  %v358 = vpow.pop %v357
  %v359 = vmul.f32 %v352, 1.442695
  %v360 = vpow.pop %v359
  %v361 = vadd.f32 %v354, 1.0
  %v362 = vadd.f32 %v356, 1.0
  %v363 = vadd.f32 %v358, 1.0
  %v364 = vadd.f32 %v360, 1.0
  %v365 = vrcp.pop %v361
  %v366 = vmul.f32 1.0, %v365
  %v367 = vrcp.pop %v362
  %v368 = vmul.f32 1.0, %v367
  %v369 = vrcp.pop %v363
  %v370 = vmul.f32 1.0, %v369
  %v371 = vrcp.pop %v364
  %v372 = vmul.f32 1.0, %v371
  %v373 = vmul.f32 %v202, %v366
  %v374 = vmul.f32 %v204, %v368
  %v375 = vmul.f32 %v206, %v370
  %v376 = vmul.f32 %v208, %v372
  %v377 = vmul.f32 %v373, %v341
  %v378 = vmul.f32 %v374, %v343
  %v379 = vmul.f32 %v375, %v345
  %v380 = vmul.f32 %v376, %v347
  %v381 = vld [vmem:[#allocation3] sm:$0xff]
  %v382 = vld [vmem:[#allocation3 + $0x8] sm:$0xff]
  %v383 = vpack.c.bf16 %v379, %v377
  %v384 = vpack.c.bf16 %v380, %v378
  %v385 = vld [vmem:[%s4] sm:$0xf]
  %v386 = vld [vmem:[%s4 + $0x4] sm:$0xf]
  %v387 = vld [vmem:[%s4 + $0x8] sm:$0xf]
  %v388 = vld [vmem:[%s4 + $0xc] sm:$0xf]
  %v389 = vld [vmem:[%s4 + $0x10] sm:$0xf]
  %v390 = vld [vmem:[%s4 + $0x14] sm:$0xf]
  %v391 = vld [vmem:[%s4 + $0x18] sm:$0xf]
  %v392 = vld [vmem:[%s4 + $0x1c] sm:$0xf]
  %v393 = vld [vmem:[%s4 + $0x20] sm:$0xf]
  %v394 = vld [vmem:[%s4 + $0x24] sm:$0xf]
  %v395 = vld [vmem:[%s4 + $0x28] sm:$0xf]
  %v396 = vld [vmem:[%s4 + $0x2c] sm:$0xf]
  %v397 = vld [vmem:[%s4 + $0x30] sm:$0xf]
  %v398 = vld [vmem:[%s4 + $0x34] sm:$0xf]
  %v399 = vld [vmem:[%s4 + $0x38] sm:$0xf]
  %v400 = vld [vmem:[%s4 + $0x3c] sm:$0xf]
  %v401 = vld [vmem:[%s4 + $0x40] sm:$0xf]
  %v402 = vld [vmem:[%s4 + $0x44] sm:$0xf]
  %v403 = vld [vmem:[%s4 + $0x48] sm:$0xf]
  %v404 = vld [vmem:[%s4 + $0x4c] sm:$0xf]
  %v405 = vld [vmem:[%s4 + $0x50] sm:$0xf]
  %v406 = vld [vmem:[%s4 + $0x54] sm:$0xf]
  %v407 = vld [vmem:[%s4 + $0x58] sm:$0xf]
  %v408 = vld [vmem:[%s4 + $0x5c] sm:$0xf]
  %v409 = vld [vmem:[%s4 + $0x60] sm:$0xf]
  %v410 = vld [vmem:[%s4 + $0x64] sm:$0xf]
  %v411 = vld [vmem:[%s4 + $0x68] sm:$0xf]
  %v412 = vld [vmem:[%s4 + $0x6c] sm:$0xf]
  %v413 = vld [vmem:[%s4 + $0x70] sm:$0xf]
  %v414 = vld [vmem:[%s4 + $0x74] sm:$0xf]
  %v415 = vld [vmem:[%s4 + $0x78] sm:$0xf]
  %v416 = vld [vmem:[%s4 + $0x7c] sm:$0xf]
  %v449 = vunpack.c.l.b16 %v385
  %v450 = vunpack.c.l.b16 %v386
  %v451 = vunpack.c.l.b16 %v387
  %v452 = vunpack.c.l.b16 %v388
  %v453 = vunpack.c.l.b16 %v389
  %v454 = vunpack.c.l.b16 %v390
  %v455 = vunpack.c.l.b16 %v391
  %v456 = vunpack.c.l.b16 %v392
  %v457 = vunpack.c.l.b16 %v393
  %v458 = vunpack.c.l.b16 %v394
  %v459 = vunpack.c.l.b16 %v395
  %v460 = vunpack.c.l.b16 %v396
  %v461 = vunpack.c.l.b16 %v397
  %v462 = vunpack.c.l.b16 %v398
  %v463 = vunpack.c.l.b16 %v399
  %v464 = vunpack.c.l.b16 %v400
  %v465 = vunpack.c.l.b16 %v401
  %v466 = vunpack.c.l.b16 %v402
  %v467 = vunpack.c.l.b16 %v403
  %v468 = vunpack.c.l.b16 %v404
  %v469 = vunpack.c.l.b16 %v405
  %v470 = vunpack.c.l.b16 %v406
  %v471 = vunpack.c.l.b16 %v407
  %v472 = vunpack.c.l.b16 %v408
  %v473 = vunpack.c.l.b16 %v409
  %v474 = vunpack.c.l.b16 %v410
  %v475 = vunpack.c.l.b16 %v411
  %v476 = vunpack.c.l.b16 %v412
  %v477 = vunpack.c.l.b16 %v413
  %v478 = vunpack.c.l.b16 %v414
  %v479 = vunpack.c.l.b16 %v415
  %v480 = vunpack.c.l.b16 %v416
  %v481 = vpack.c.b16 %v450, %v449
  %v482 = vpack.c.b16 %v452, %v451
  %v483 = vpack.c.b16 %v454, %v453
  %v484 = vpack.c.b16 %v456, %v455
  %v485 = vpack.c.b16 %v458, %v457
  %v486 = vpack.c.b16 %v460, %v459
  %v487 = vpack.c.b16 %v462, %v461
  %v488 = vpack.c.b16 %v464, %v463
  %v489 = vpack.c.b16 %v466, %v465
  %v490 = vpack.c.b16 %v468, %v467
  %v491 = vpack.c.b16 %v470, %v469
  %v492 = vpack.c.b16 %v472, %v471
  %v493 = vpack.c.b16 %v474, %v473
  %v494 = vpack.c.b16 %v476, %v475
  %v495 = vpack.c.b16 %v478, %v477
  %v496 = vpack.c.b16 %v480, %v479
  %513 = vmatprep.subr.bf16.mxu0 0
  %514 = vmatpush1.bf16.msra.mxu0 %v488
  %515 = vmatprep.subr.bf16.mxu0 0
  %516 = vmatpush1.bf16.msra.mxu0 %v487
  %517 = vmatprep.subr.bf16.mxu0 0
  %518 = vmatpush1.bf16.msra.mxu0 %v486
  %519 = vmatprep.subr.bf16.mxu0 0
  %520 = vmatpush1.bf16.msra.mxu0 %v485
  %521 = vmatprep.subr.bf16.mxu0 0
  %522 = vmatpush1.bf16.msra.mxu0 %v484
  %523 = vmatprep.subr.bf16.mxu0 0
  %524 = vmatpush1.bf16.msra.mxu0 %v483
  %525 = vmatprep.subr.bf16.mxu0 0
  %526 = vmatpush1.bf16.msra.mxu0 %v482
  %527 = vmatprep.subr.bf16.mxu0 0
  %528 = vmatpush1.bf16.msra.mxu0 %v481
  %529 = vmatprep.subr.bf16.mxu0 0
  %530 = vmatpush2.bf16.msra.mxu0 %v496
  %531 = vmatprep.subr.bf16.mxu0 0
  %532 = vmatpush2.bf16.msra.mxu0 %v495
  %533 = vmatprep.subr.bf16.mxu0 0
  %534 = vmatpush2.bf16.msra.mxu0 %v494
  %535 = vmatprep.subr.bf16.mxu0 0
  %536 = vmatpush2.bf16.msra.mxu0 %v493
  %537 = vmatprep.subr.bf16.mxu0 0
  %538 = vmatpush2.bf16.msra.mxu0 %v492
  %539 = vmatprep.subr.bf16.mxu0 0
  %540 = vmatpush2.bf16.msra.mxu0 %v491
  %541 = vmatprep.subr.bf16.mxu0 0
  %542 = vmatpush2.bf16.msra.mxu0 %v490
  %543 = vmatprep.subr.bf16.mxu0 0
  %544 = vmatpush2.bf16.msra.mxu0 %v489
  %545 = vmatprep.mubr.bf16.mxu0 %v384
  %546 = vmatmul.mubr.bf16.gmra.mxu0 %v383
  %v547 = vpop.f32.mrf.mxu0
  %v548 = vadd.f32 0.0, %v547
  %v549 = vpop.f32.mrf.mxu0
  %v550 = vpop.f32.mrf.mxu0
  %v551 = vadd.f32 0.0, %v550
  %v552 = vpop.f32.mrf.mxu0
  %553 = vdwg.mxu0
  %v554 = vadd.f32 %v381, %v548
  %v555 = vadd.f32 %v382, %v551
  %556 = vst [vmem:[#allocation3] sm:$0xff] %v554
  %557 = vst [vmem:[#allocation3 + $0x8] sm:$0xff] %v555
  // Predicated region
  $region26: #{deepseek_forward.19} parent=0 // pred_check
    %p558 = pneg %p21
  $region27: #{deepseek_forward.19} parent=0 // pred_check_branch
    %560 = sbr.rel (%p558) target = $region29
  $region28: #{deepseek_forward.19} parent=0 // pred_region
    %v561 = vld [vmem:[#allocation3] sm:$0xff]
    %v562 = vld [vmem:[#allocation3 + $0x8] sm:$0xff]
    %563 = vst [vmem:[%s5] sm:$0xff] %v561
    %564 = vst [vmem:[%s5 + $0x8] sm:$0xff] %v562
  $region29: #{deepseek_forward.19} parent=0 // pred_fallthru
    _
  // Predicated region
  $region30: #{deepseek_forward.19} parent=0 // pred_check
    _
  $region31: #{deepseek_forward.19} parent=0 // pred_check_branch
    %566 = sbr.rel (0) target = $region33
  $region32: #{deepseek_forward.19} parent=0 // pred_region
    _
  $region33: #{deepseek_forward.19} parent=0 // pred_fallthru
    _
  // Predicated region
  $region34: #{deepseek_forward.19} parent=0 // pred_check
    _
  $region35: #{deepseek_forward.19} parent=0 // pred_check_branch
    %568 = sbr.rel (0) target = $region37
  $region36: #{deepseek_forward.19} parent=0 // pred_region
    _
  $region37: #{deepseek_forward.19} parent=0 // pred_fallthru
    _

// kernel: deepseek_forward.25
$region0: #{deepseek_forward.25}
  #allocation0 [shape = 'u32[]', space=smem, size = 0x4, offset = 0x4, fixed_abs, tag = 'smem constant byte address 0x4 - core index']
  #allocation1 [shape = 'u32[144,128]{1,0:T(1,128)}', space=vmem, size = 0x12000, scoped, tag = 'internal scratch']
  #allocation2 [shape = 'f32[16,4]{1,0:T(8,128)}', space=vmem, size = 0x2000, scoped, tag = 'scratch operand']
  %s0 = inlined_call_operand.vmem [shape: f32[16,128], index: 0, kind: input, shape index: {}]
  %s1 = inlined_call_operand.vmem [shape: bf16[128,4], index: 1, kind: input, shape index: {}]
  %s2 = inlined_call_operand.vmem [shape: f32[16,4], index: 2, kind: output, shape index: {}]
  %s3 = sld [smem:[#allocation0]]
  $region26: #{deepseek_forward.25} parent=0
    _
  %s5 = ssub.s32 1, %s3
  %s6 = scalar_select 0, %s5, %s3
  // Predicated region
  $region2: #{deepseek_forward.25} parent=0 // pred_check
    _
  $region3: #{deepseek_forward.25} parent=0 // pred_check_branch
    %8 = sbr.rel (0) target = $region5
  $region4: #{deepseek_forward.25} parent=0 // pred_region
    _
  $region5: #{deepseek_forward.25} parent=0 // pred_fallthru
    _
  // Predicated region
  $region6: #{deepseek_forward.25} parent=0 // pred_check
    _
  $region7: #{deepseek_forward.25} parent=0 // pred_check_branch
    %10 = sbr.rel (0) target = $region9
  $region8: #{deepseek_forward.25} parent=0 // pred_region
    _
  $region9: #{deepseek_forward.25} parent=0 // pred_fallthru
    _
  %p12 = scmp.eq.s32.totalorder 0, 0
  // Predicated region
  $region10: #{deepseek_forward.25} parent=0 // pred_check
    %p13 = pneg %p12
  $region11: #{deepseek_forward.25} parent=0 // pred_check_branch
    %15 = sbr.rel (%p13) target = $region13
  $region12: #{deepseek_forward.25} parent=0 // pred_region
    %vm16 = vcmask 31744
    %17 = vst.msk [vmem:[#allocation2] sm:$0xff] %vm16, 0.0
    %18 = vst.msk [vmem:[#allocation2 + $0x8] sm:$0xff] %vm16, 0.0
  $region13: #{deepseek_forward.25} parent=0 // pred_fallthru
    _
  %v19 = vld [vmem:[#allocation2] sm:$0xff]
  %v20 = vld [vmem:[#allocation2 + $0x8] sm:$0xff]
  %v21 = vld [vmem:[%s0] sm:$0xff]
  %v22 = vld [vmem:[%s0 + $0x8] sm:$0xff]
  %v23 = vpack.c.bf16 %v22, %v21
  %v24 = vld [vmem:[%s1] sm:$0xf]
  %v25 = vld [vmem:[%s1 + $0x4] sm:$0xf]
  %v26 = vld [vmem:[%s1 + $0x8] sm:$0xf]
  %v27 = vld [vmem:[%s1 + $0xc] sm:$0xf]
  %v28 = vld [vmem:[%s1 + $0x10] sm:$0xf]
  %v29 = vld [vmem:[%s1 + $0x14] sm:$0xf]
  %v30 = vld [vmem:[%s1 + $0x18] sm:$0xf]
  %v31 = vld [vmem:[%s1 + $0x1c] sm:$0xf]
  %v32 = vld [vmem:[%s1 + $0x20] sm:$0xf]
  %v33 = vld [vmem:[%s1 + $0x24] sm:$0xf]
  %v34 = vld [vmem:[%s1 + $0x28] sm:$0xf]
  %v35 = vld [vmem:[%s1 + $0x2c] sm:$0xf]
  %v36 = vld [vmem:[%s1 + $0x30] sm:$0xf]
  %v37 = vld [vmem:[%s1 + $0x34] sm:$0xf]
  %v38 = vld [vmem:[%s1 + $0x38] sm:$0xf]
  %v39 = vld [vmem:[%s1 + $0x3c] sm:$0xf]
  %v56 = vunpack.c.l.b16 %v24
  %v57 = vunpack.c.l.b16 %v25
  %v58 = vunpack.c.l.b16 %v26
  %v59 = vunpack.c.l.b16 %v27
  %v60 = vunpack.c.l.b16 %v28
  %v61 = vunpack.c.l.b16 %v29
  %v62 = vunpack.c.l.b16 %v30
  %v63 = vunpack.c.l.b16 %v31
  %v64 = vunpack.c.l.b16 %v32
  %v65 = vunpack.c.l.b16 %v33
  %v66 = vunpack.c.l.b16 %v34
  %v67 = vunpack.c.l.b16 %v35
  %v68 = vunpack.c.l.b16 %v36
  %v69 = vunpack.c.l.b16 %v37
  %v70 = vunpack.c.l.b16 %v38
  %v71 = vunpack.c.l.b16 %v39
  %v72 = vpack.c.b16 %v57, %v56
  %v73 = vpack.c.b16 %v59, %v58
  %v74 = vpack.c.b16 %v61, %v60
  %v75 = vpack.c.b16 %v63, %v62
  %v76 = vpack.c.b16 %v65, %v64
  %v77 = vpack.c.b16 %v67, %v66
  %v78 = vpack.c.b16 %v69, %v68
  %v79 = vpack.c.b16 %v71, %v70
  %88 = vmatprep.subr.bf16.mxu0 0
  %89 = vmatpush1.bf16.msra.mxu0 %v79
  %90 = vmatprep.subr.bf16.mxu0 0
  %91 = vmatpush1.bf16.msra.mxu0 %v78
  %92 = vmatprep.subr.bf16.mxu0 0
  %93 = vmatpush1.bf16.msra.mxu0 %v77
  %94 = vmatprep.subr.bf16.mxu0 0
  %95 = vmatpush1.bf16.msra.mxu0 %v76
  %96 = vmatprep.subr.bf16.mxu0 0
  %97 = vmatpush1.bf16.msra.mxu0 %v75
  %98 = vmatprep.subr.bf16.mxu0 0
  %99 = vmatpush1.bf16.msra.mxu0 %v74
  %100 = vmatprep.subr.bf16.mxu0 0
  %101 = vmatpush1.bf16.msra.mxu0 %v73
  %102 = vmatprep.subr.bf16.mxu0 0
  %103 = vmatpush1.bf16.msra.mxu0 %v72
  %104 = vmatprep.subr.bf16.mxu0 0
  %105 = vmatpush2.bf16.msra.mxu0 0
  %106 = vmatprep.subr.bf16.mxu0 0
  %107 = vmatpush2.bf16.msra.mxu0 0
  %108 = vmatprep.subr.bf16.mxu0 0
  %109 = vmatpush2.bf16.msra.mxu0 0
  %110 = vmatprep.subr.bf16.mxu0 0
  %111 = vmatpush2.bf16.msra.mxu0 0
  %112 = vmatprep.subr.bf16.mxu0 0
  %113 = vmatpush2.bf16.msra.mxu0 0
  %114 = vmatprep.subr.bf16.mxu0 0
  %115 = vmatpush2.bf16.msra.mxu0 0
  %116 = vmatprep.subr.bf16.mxu0 0
  %117 = vmatpush2.bf16.msra.mxu0 0
  %118 = vmatprep.subr.bf16.mxu0 0
  %119 = vmatpush2.bf16.msra.mxu0 0
  %120 = vmatprep.mubr.bf16.mxu0 0
  %121 = vmatmul.mubr.bf16.gmra.mxu0 %v23
  %v122 = vpop.f32.mrf.mxu0
  %v123 = vadd.f32 0.0, %v122
  %v124 = vpop.f32.mrf.mxu0
  %v125 = vpop.f32.mrf.mxu0
  %v126 = vadd.f32 0.0, %v125
  %v127 = vpop.f32.mrf.mxu0
  %128 = vdwg.mxu0
  %v129 = vadd.f32 %v19, %v123
  %v130 = vadd.f32 %v20, %v126
  %vm131 = vcmask 31744
  %132 = vst.msk [vmem:[#allocation2] sm:$0xff] %vm131, %v129
  %133 = vst.msk [vmem:[#allocation2 + $0x8] sm:$0xff] %vm131, %v130
  // Predicated region
  $region14: #{deepseek_forward.25} parent=0 // pred_check
    %p134 = pneg %p12
  $region15: #{deepseek_forward.25} parent=0 // pred_check_branch
    %136 = sbr.rel (%p134) target = $region17
  $region16: #{deepseek_forward.25} parent=0 // pred_region
    %v137 = vld [vmem:[#allocation2] sm:$0xff]
    %v138 = vld [vmem:[#allocation2 + $0x8] sm:$0xff]
    %139 = vst.msk [vmem:[%s2] sm:$0xff] %vm131, %v137
    %140 = vst.msk [vmem:[%s2 + $0x8] sm:$0xff] %vm131, %v138
  $region17: #{deepseek_forward.25} parent=0 // pred_fallthru
    _
  // Predicated region
  $region18: #{deepseek_forward.25} parent=0 // pred_check
    _
  $region19: #{deepseek_forward.25} parent=0 // pred_check_branch
    %142 = sbr.rel (0) target = $region21
  $region20: #{deepseek_forward.25} parent=0 // pred_region
    _
  $region21: #{deepseek_forward.25} parent=0 // pred_fallthru
    _
  // Predicated region
  $region22: #{deepseek_forward.25} parent=0 // pred_check
    _
  $region23: #{deepseek_forward.25} parent=0 // pred_check_branch
    %144 = sbr.rel (0) target = $region25
  $region24: #{deepseek_forward.25} parent=0 // pred_region
    _
  $region25: #{deepseek_forward.25} parent=0 // pred_fallthru
    _

// kernel: deepseek_forward.28
$region0: #{deepseek_forward.28}
  #allocation0 [shape = 'u32[]', space=smem, size = 0x4, offset = 0x4, fixed_abs, tag = 'smem constant byte address 0x4 - core index']
  #allocation1 [shape = 'u32[144,128]{1,0:T(1,128)}', space=vmem, size = 0x12000, scoped, tag = 'internal scratch']
  %s0 = inlined_call_operand.vmem [shape: f32[16,128], index: 0, kind: input, shape index: {}]
  %s1 = inlined_call_operand.vmem [shape: f32[1,128], index: 1, kind: input, shape index: {}]
  %s2 = inlined_call_operand.vmem [shape: bf16[128,256], index: 2, kind: input, shape index: {}]
  %s3 = inlined_call_operand.vmem [shape: f32[16,256], index: 3, kind: output, shape index: {}]
  %s4 = sld [smem:[#allocation0]]
  $region22: #{deepseek_forward.28} parent=0
    _
  %s6 = ssub.s32 1, %s4
  %s7 = scalar_select 0, %s6, %s4
  // Predicated region
  $region2: #{deepseek_forward.28} parent=0 // pred_check
    _
  $region3: #{deepseek_forward.28} parent=0 // pred_check_branch
    %9 = sbr.rel (0) target = $region5
  $region4: #{deepseek_forward.28} parent=0 // pred_region
    _
  $region5: #{deepseek_forward.28} parent=0 // pred_fallthru
    _
  // Predicated region
  $region6: #{deepseek_forward.28} parent=0 // pred_check
    _
  $region7: #{deepseek_forward.28} parent=0 // pred_check_branch
    %11 = sbr.rel (0) target = $region9
  $region8: #{deepseek_forward.28} parent=0 // pred_region
    _
  $region9: #{deepseek_forward.28} parent=0 // pred_fallthru
    _
  // Predicated region
  $region10: #{deepseek_forward.28} parent=0 // pred_check
    _
  $region11: #{deepseek_forward.28} parent=0 // pred_check_branch
    %13 = sbr.rel (0) target = $region13
  $region12: #{deepseek_forward.28} parent=0 // pred_region
    _
  $region13: #{deepseek_forward.28} parent=0 // pred_fallthru
    _
  %v15 = vld [vmem:[%s0] sm:$0xff]
  %v16 = vld [vmem:[%s0 + $0x8] sm:$0xff]
  %v17 = vmul.f32 %v15, %v15
  %v18 = vmul.f32 %v16, %v16
  %19 = vadd.xlane.f32.xlu0 %v17
  %v20 = vpop.xlane.xlu0 %19
  %21 = vadd.xlane.f32.xlu0 %v18
  %v22 = vpop.xlane.xlu0 %21
  %v23 = vrcp.pop 128.0
  %v24 = vmul.f32 %v20, %v23
  %v25 = vmul.f32 %v22, %v23
  %v26 = vadd.f32 %v24, 1e-06
  %v27 = vadd.f32 %v25, 1e-06
  %v28 = vrsqrt.pop %v26
  %v29 = vrsqrt.pop %v27
  %v30 = vmul.f32 %v15, %v28
  %v31 = vmul.f32 %v16, %v29
  %v32 = vld [vmem:[%s1] sm:$0x1]
  %v34 = vlaneseq
  %v35 = vshrl.u32 %v34, 7
  %v36 = vsub.s32 0, %v35
  %v37 = vrot.slane %v32, %v36
  %v39 = vmul.f32 %v30, %v37
  %v40 = vmul.f32 %v31, %v37
  %v41 = vpack.c.bf16 %v40, %v39
  %v42 = vld [vmem:[%s2] sm:$0xff]
  %v43 = vld [vmem:[%s2 + $0x8] sm:$0xff]
  %v44 = vld [vmem:[%s2 + $0x10] sm:$0xff]
  %v45 = vld [vmem:[%s2 + $0x18] sm:$0xff]
  %v46 = vld [vmem:[%s2 + $0x20] sm:$0xff]
  %v47 = vld [vmem:[%s2 + $0x28] sm:$0xff]
  %v48 = vld [vmem:[%s2 + $0x30] sm:$0xff]
  %v49 = vld [vmem:[%s2 + $0x38] sm:$0xff]
  %v50 = vld [vmem:[%s2 + $0x40] sm:$0xff]
  %v51 = vld [vmem:[%s2 + $0x48] sm:$0xff]
  %v52 = vld [vmem:[%s2 + $0x50] sm:$0xff]
  %v53 = vld [vmem:[%s2 + $0x58] sm:$0xff]
  %v54 = vld [vmem:[%s2 + $0x60] sm:$0xff]
  %v55 = vld [vmem:[%s2 + $0x68] sm:$0xff]
  %v56 = vld [vmem:[%s2 + $0x70] sm:$0xff]
  %v57 = vld [vmem:[%s2 + $0x78] sm:$0xff]
  %v74 = vunpack.c.l.b16 %v42
  %v75 = vunpack.c.h.b16 %v42
  %v76 = vunpack.c.l.b16 %v43
  %v77 = vunpack.c.h.b16 %v43
  %v78 = vunpack.c.l.b16 %v44
  %v79 = vunpack.c.h.b16 %v44
  %v80 = vunpack.c.l.b16 %v45
  %v81 = vunpack.c.h.b16 %v45
  %v82 = vunpack.c.l.b16 %v46
  %v83 = vunpack.c.h.b16 %v46
  %v84 = vunpack.c.l.b16 %v47
  %v85 = vunpack.c.h.b16 %v47
  %v86 = vunpack.c.l.b16 %v48
  %v87 = vunpack.c.h.b16 %v48
  %v88 = vunpack.c.l.b16 %v49
  %v89 = vunpack.c.h.b16 %v49
  %v90 = vunpack.c.l.b16 %v50
  %v91 = vunpack.c.h.b16 %v50
  %v92 = vunpack.c.l.b16 %v51
  %v93 = vunpack.c.h.b16 %v51
  %v94 = vunpack.c.l.b16 %v52
  %v95 = vunpack.c.h.b16 %v52
  %v96 = vunpack.c.l.b16 %v53
  %v97 = vunpack.c.h.b16 %v53
  %v98 = vunpack.c.l.b16 %v54
  %v99 = vunpack.c.h.b16 %v54
  %v100 = vunpack.c.l.b16 %v55
  %v101 = vunpack.c.h.b16 %v55
  %v102 = vunpack.c.l.b16 %v56
  %v103 = vunpack.c.h.b16 %v56
  %v104 = vunpack.c.l.b16 %v57
  %v105 = vunpack.c.h.b16 %v57
  %v106 = vpack.c.b16 %v76, %v74
  %v107 = vpack.c.b16 %v77, %v75
  %v108 = vpack.c.b16 %v80, %v78
  %v109 = vpack.c.b16 %v81, %v79
  %v110 = vpack.c.b16 %v84, %v82
  %v111 = vpack.c.b16 %v85, %v83
  %v112 = vpack.c.b16 %v88, %v86
  %v113 = vpack.c.b16 %v89, %v87
  %v114 = vpack.c.b16 %v92, %v90
  %v115 = vpack.c.b16 %v93, %v91
  %v116 = vpack.c.b16 %v96, %v94
  %v117 = vpack.c.b16 %v97, %v95
  %v118 = vpack.c.b16 %v100, %v98
  %v119 = vpack.c.b16 %v101, %v99
  %v120 = vpack.c.b16 %v104, %v102
  %v121 = vpack.c.b16 %v105, %v103
  %138 = vmatprep.subr.bf16.mxu0 %v121
  %139 = vmatpush1.bf16.msra.mxu0 %v120
  %140 = vmatprep.subr.bf16.mxu0 %v119
  %141 = vmatpush1.bf16.msra.mxu0 %v118
  %142 = vmatprep.subr.bf16.mxu0 %v117
  %143 = vmatpush1.bf16.msra.mxu0 %v116
  %144 = vmatprep.subr.bf16.mxu0 %v115
  %145 = vmatpush1.bf16.msra.mxu0 %v114
  %146 = vmatprep.subr.bf16.mxu0 %v113
  %147 = vmatpush1.bf16.msra.mxu0 %v112
  %148 = vmatprep.subr.bf16.mxu0 %v111
  %149 = vmatpush1.bf16.msra.mxu0 %v110
  %150 = vmatprep.subr.bf16.mxu0 %v109
  %151 = vmatpush1.bf16.msra.mxu0 %v108
  %152 = vmatprep.subr.bf16.mxu0 %v107
  %153 = vmatpush1.bf16.msra.mxu0 %v106
  %154 = vmatprep.subr.bf16.mxu0 0
  %155 = vmatpush2.bf16.msra.mxu0 0
  %156 = vmatprep.subr.bf16.mxu0 0
  %157 = vmatpush2.bf16.msra.mxu0 0
  %158 = vmatprep.subr.bf16.mxu0 0
  %159 = vmatpush2.bf16.msra.mxu0 0
  %160 = vmatprep.subr.bf16.mxu0 0
  %161 = vmatpush2.bf16.msra.mxu0 0
  %162 = vmatprep.subr.bf16.mxu0 0
  %163 = vmatpush2.bf16.msra.mxu0 0
  %164 = vmatprep.subr.bf16.mxu0 0
  %165 = vmatpush2.bf16.msra.mxu0 0
  %166 = vmatprep.subr.bf16.mxu0 0
  %167 = vmatpush2.bf16.msra.mxu0 0
  %168 = vmatprep.subr.bf16.mxu0 0
  %169 = vmatpush2.bf16.msra.mxu0 0
  %170 = vmatprep.mubr.bf16.mxu0 0
  %171 = vmatmul.mubr.bf16.gmra.mxu0 %v41
  %v172 = vpop.f32.mrf.mxu0
  %v173 = vadd.f32 0.0, %v172
  %v174 = vpop.f32.mrf.mxu0
  %v175 = vadd.f32 0.0, %v174
  %v176 = vpop.f32.mrf.mxu0
  %v177 = vadd.f32 0.0, %v176
  %v178 = vpop.f32.mrf.mxu0
  %v179 = vadd.f32 0.0, %v178
  %180 = vdwg.mxu0
  %181 = vst [vmem:[%s3] sm:$0xff] %v173
  %182 = vst [vmem:[%s3 + $0x8] sm:$0xff] %v175
  %183 = vst [vmem:[%s3 + $0x10] sm:$0xff] %v177
  %184 = vst [vmem:[%s3 + $0x18] sm:$0xff] %v179
  // Predicated region
  $region14: #{deepseek_forward.28} parent=0 // pred_check
    _
  $region15: #{deepseek_forward.28} parent=0 // pred_check_branch
    %186 = sbr.rel (0) target = $region17
  $region16: #{deepseek_forward.28} parent=0 // pred_region
    _
  $region17: #{deepseek_forward.28} parent=0 // pred_fallthru
    _
  // Predicated region
  $region18: #{deepseek_forward.28} parent=0 // pred_check
    _
  $region19: #{deepseek_forward.28} parent=0 // pred_check_branch
    %188 = sbr.rel (0) target = $region21
  $region20: #{deepseek_forward.28} parent=0 // pred_region
    _
  $region21: #{deepseek_forward.28} parent=0 // pred_fallthru
    _

// kernel: deepseek_forward.27
$region0: #{deepseek_forward.27}
  #allocation0 [shape = 'u32[]', space=smem, size = 0x4, offset = 0x4, fixed_abs, tag = 'smem constant byte address 0x4 - core index']
  #allocation1 [shape = 'u32[144,128]{1,0:T(1,128)}', space=vmem, size = 0x12000, scoped, tag = 'internal scratch']
  #allocation2 [shape = 'bf16[16,128]{1,0:T(8,128)(2,1)}', space=vmem, size = 0x1000, scoped, tag = 'scratch operand']
  #allocation3 [shape = 'f32[16,128]{1,0:T(8,128)}', space=vmem, size = 0x2000, scoped, tag = 'scratch operand']
  %s0 = inlined_call_operand.vmem [shape: f32[16,128], index: 0, kind: input, shape index: {}]
  %s1 = inlined_call_operand.vmem [shape: f32[1,128], index: 1, kind: input, shape index: {}]
  %s2 = inlined_call_operand.vmem [shape: bf16[128,64], index: 2, kind: input, shape index: {}]
  %s3 = inlined_call_operand.vmem [shape: bf16[128,64], index: 3, kind: input, shape index: {}]
  %s4 = inlined_call_operand.vmem [shape: bf16[64,128], index: 4, kind: input, shape index: {}]
  %s5 = inlined_call_operand.vmem [shape: f32[16,128], index: 5, kind: output, shape index: {}]
  %s6 = sld [smem:[#allocation0]]
  $region38: #{deepseek_forward.27} parent=0
    _
  %s8 = ssub.s32 1, %s6
  %s9 = scalar_select 0, %s8, %s6
  // Predicated region
  $region2: #{deepseek_forward.27} parent=0 // pred_check
    _
  $region3: #{deepseek_forward.27} parent=0 // pred_check_branch
    %11 = sbr.rel (0) target = $region5
  $region4: #{deepseek_forward.27} parent=0 // pred_region
    _
  $region5: #{deepseek_forward.27} parent=0 // pred_fallthru
    _
  // Predicated region
  $region6: #{deepseek_forward.27} parent=0 // pred_check
    _
  $region7: #{deepseek_forward.27} parent=0 // pred_check_branch
    %13 = sbr.rel (0) target = $region9
  $region8: #{deepseek_forward.27} parent=0 // pred_region
    _
  $region9: #{deepseek_forward.27} parent=0 // pred_fallthru
    _
  // Predicated region
  $region10: #{deepseek_forward.27} parent=0 // pred_check
    _
  $region11: #{deepseek_forward.27} parent=0 // pred_check_branch
    %15 = sbr.rel (0) target = $region13
  $region12: #{deepseek_forward.27} parent=0 // pred_region
    _
  $region13: #{deepseek_forward.27} parent=0 // pred_fallthru
    _
  // Predicated region
  $region14: #{deepseek_forward.27} parent=0 // pred_check
    _
  $region15: #{deepseek_forward.27} parent=0 // pred_check_branch
    %17 = sbr.rel (0) target = $region17
  $region16: #{deepseek_forward.27} parent=0 // pred_region
    _
  $region17: #{deepseek_forward.27} parent=0 // pred_fallthru
    _
  // Predicated region
  $region18: #{deepseek_forward.27} parent=0 // pred_check
    _
  $region19: #{deepseek_forward.27} parent=0 // pred_check_branch
    %19 = sbr.rel (0) target = $region21
  $region20: #{deepseek_forward.27} parent=0 // pred_region
    _
  $region21: #{deepseek_forward.27} parent=0 // pred_fallthru
    _
  %p21 = scmp.eq.s32.totalorder 0, 0
  // Predicated region
  $region22: #{deepseek_forward.27} parent=0 // pred_check
    %p22 = pneg %p21
  $region23: #{deepseek_forward.27} parent=0 // pred_check_branch
    %24 = sbr.rel (%p22) target = $region25
  $region24: #{deepseek_forward.27} parent=0 // pred_region
    %v25 = vld [vmem:[%s0] sm:$0xff]
    %v26 = vld [vmem:[%s0 + $0x8] sm:$0xff]
    %v27 = vpack.c.bf16 %v26, %v25
    %v29 = vunpack.c.l.b16 %v27
    %v30 = vunpack.c.h.b16 %v27
    %v31 = vpack.c.b16 %v29, %v29
    %v32 = vpack.c.b16 %v30, %v30
    %35 = vst [vmem:[#allocation2] sm:$0xf] %v31
    %36 = vst [vmem:[#allocation2 + $0x4] sm:$0xf] %v32
    %37 = vst [vmem:[#allocation3] sm:$0xff] 0.0
    %38 = vst [vmem:[#allocation3 + $0x8] sm:$0xff] 0.0
  $region25: #{deepseek_forward.27} parent=0 // pred_fallthru
    _
  %v39 = vld [vmem:[#allocation2] sm:$0xf]
  %v40 = vld [vmem:[#allocation2 + $0x4] sm:$0xf]
  %v41 = vld [vmem:[%s2] sm:$0xf]
  %v42 = vld [vmem:[%s2 + $0x4] sm:$0xf]
  %v43 = vld [vmem:[%s2 + $0x8] sm:$0xf]
  %v44 = vld [vmem:[%s2 + $0xc] sm:$0xf]
  %v45 = vld [vmem:[%s2 + $0x10] sm:$0xf]
  %v46 = vld [vmem:[%s2 + $0x14] sm:$0xf]
  %v47 = vld [vmem:[%s2 + $0x18] sm:$0xf]
  %v48 = vld [vmem:[%s2 + $0x1c] sm:$0xf]
  %v49 = vld [vmem:[%s2 + $0x20] sm:$0xf]
  %v50 = vld [vmem:[%s2 + $0x24] sm:$0xf]
  %v51 = vld [vmem:[%s2 + $0x28] sm:$0xf]
  %v52 = vld [vmem:[%s2 + $0x2c] sm:$0xf]
  %v53 = vld [vmem:[%s2 + $0x30] sm:$0xf]
  %v54 = vld [vmem:[%s2 + $0x34] sm:$0xf]
  %v55 = vld [vmem:[%s2 + $0x38] sm:$0xf]
  %v56 = vld [vmem:[%s2 + $0x3c] sm:$0xf]
  %v59 = vunpack.c.l.b16 %v39
  %v60 = vunpack.c.l.b16 %v40
  %v61 = vpack.c.b16 %v60, %v59
  %v79 = vunpack.c.l.b16 %v41
  %v80 = vunpack.c.l.b16 %v42
  %v81 = vunpack.c.l.b16 %v43
  %v82 = vunpack.c.l.b16 %v44
  %v83 = vunpack.c.l.b16 %v45
  %v84 = vunpack.c.l.b16 %v46
  %v85 = vunpack.c.l.b16 %v47
  %v86 = vunpack.c.l.b16 %v48
  %v87 = vunpack.c.l.b16 %v49
  %v88 = vunpack.c.l.b16 %v50
  %v89 = vunpack.c.l.b16 %v51
  %v90 = vunpack.c.l.b16 %v52
  %v91 = vunpack.c.l.b16 %v53
  %v92 = vunpack.c.l.b16 %v54
  %v93 = vunpack.c.l.b16 %v55
  %v94 = vunpack.c.l.b16 %v56
  %v95 = vpack.c.b16 %v80, %v79
  %v96 = vpack.c.b16 %v82, %v81
  %v97 = vpack.c.b16 %v84, %v83
  %v98 = vpack.c.b16 %v86, %v85
  %v99 = vpack.c.b16 %v88, %v87
  %v100 = vpack.c.b16 %v90, %v89
  %v101 = vpack.c.b16 %v92, %v91
  %v102 = vpack.c.b16 %v94, %v93
  %111 = vmatprep.subr.bf16.mxu0 0
  %112 = vmatpush1.bf16.msra.mxu0 %v102
  %113 = vmatprep.subr.bf16.mxu0 0
  %114 = vmatpush1.bf16.msra.mxu0 %v101
  %115 = vmatprep.subr.bf16.mxu0 0
  %116 = vmatpush1.bf16.msra.mxu0 %v100
  %117 = vmatprep.subr.bf16.mxu0 0
  %118 = vmatpush1.bf16.msra.mxu0 %v99
  %119 = vmatprep.subr.bf16.mxu0 0
  %120 = vmatpush1.bf16.msra.mxu0 %v98
  %121 = vmatprep.subr.bf16.mxu0 0
  %122 = vmatpush1.bf16.msra.mxu0 %v97
  %123 = vmatprep.subr.bf16.mxu0 0
  %124 = vmatpush1.bf16.msra.mxu0 %v96
  %125 = vmatprep.subr.bf16.mxu0 0
  %126 = vmatpush1.bf16.msra.mxu0 %v95
  %127 = vmatprep.subr.bf16.mxu0 0
  %128 = vmatpush2.bf16.msra.mxu0 0
  %129 = vmatprep.subr.bf16.mxu0 0
  %130 = vmatpush2.bf16.msra.mxu0 0
  %131 = vmatprep.subr.bf16.mxu0 0
  %132 = vmatpush2.bf16.msra.mxu0 0
  %133 = vmatprep.subr.bf16.mxu0 0
  %134 = vmatpush2.bf16.msra.mxu0 0
  %135 = vmatprep.subr.bf16.mxu0 0
  %136 = vmatpush2.bf16.msra.mxu0 0
  %137 = vmatprep.subr.bf16.mxu0 0
  %138 = vmatpush2.bf16.msra.mxu0 0
  %139 = vmatprep.subr.bf16.mxu0 0
  %140 = vmatpush2.bf16.msra.mxu0 0
  %141 = vmatprep.subr.bf16.mxu0 0
  %142 = vmatpush2.bf16.msra.mxu0 0
  %143 = vmatprep.mubr.bf16.mxu0 0
  %144 = vmatmul.mubr.bf16.gmra.mxu0 %v61
  %v145 = vpop.f32.mrf.mxu0
  %v146 = vadd.f32 0.0, %v145
  %v147 = vpop.f32.mrf.mxu0
  %v148 = vpop.f32.mrf.mxu0
  %v149 = vadd.f32 0.0, %v148
  %v150 = vpop.f32.mrf.mxu0
  %151 = vdwg.mxu0
  %v152 = vld [vmem:[%s3] sm:$0xf]
  %v153 = vld [vmem:[%s3 + $0x4] sm:$0xf]
  %v154 = vld [vmem:[%s3 + $0x8] sm:$0xf]
  %v155 = vld [vmem:[%s3 + $0xc] sm:$0xf]
  %v156 = vld [vmem:[%s3 + $0x10] sm:$0xf]
  %v157 = vld [vmem:[%s3 + $0x14] sm:$0xf]
  %v158 = vld [vmem:[%s3 + $0x18] sm:$0xf]
  %v159 = vld [vmem:[%s3 + $0x1c] sm:$0xf]
  %v160 = vld [vmem:[%s3 + $0x20] sm:$0xf]
  %v161 = vld [vmem:[%s3 + $0x24] sm:$0xf]
  %v162 = vld [vmem:[%s3 + $0x28] sm:$0xf]
  %v163 = vld [vmem:[%s3 + $0x2c] sm:$0xf]
  %v164 = vld [vmem:[%s3 + $0x30] sm:$0xf]
  %v165 = vld [vmem:[%s3 + $0x34] sm:$0xf]
  %v166 = vld [vmem:[%s3 + $0x38] sm:$0xf]
  %v167 = vld [vmem:[%s3 + $0x3c] sm:$0xf]
  %v184 = vunpack.c.l.b16 %v152
  %v185 = vunpack.c.l.b16 %v153
  %v186 = vunpack.c.l.b16 %v154
  %v187 = vunpack.c.l.b16 %v155
  %v188 = vunpack.c.l.b16 %v156
  %v189 = vunpack.c.l.b16 %v157
  %v190 = vunpack.c.l.b16 %v158
  %v191 = vunpack.c.l.b16 %v159
  %v192 = vunpack.c.l.b16 %v160
  %v193 = vunpack.c.l.b16 %v161
  %v194 = vunpack.c.l.b16 %v162
  %v195 = vunpack.c.l.b16 %v163
  %v196 = vunpack.c.l.b16 %v164
  %v197 = vunpack.c.l.b16 %v165
  %v198 = vunpack.c.l.b16 %v166
  %v199 = vunpack.c.l.b16 %v167
  %v200 = vpack.c.b16 %v185, %v184
  %v201 = vpack.c.b16 %v187, %v186
  %v202 = vpack.c.b16 %v189, %v188
  %v203 = vpack.c.b16 %v191, %v190
  %v204 = vpack.c.b16 %v193, %v192
  %v205 = vpack.c.b16 %v195, %v194
  %v206 = vpack.c.b16 %v197, %v196
  %v207 = vpack.c.b16 %v199, %v198
  %216 = vmatprep.subr.bf16.mxu0 0
  %217 = vmatpush1.bf16.msra.mxu0 %v207
  %218 = vmatprep.subr.bf16.mxu0 0
  %219 = vmatpush1.bf16.msra.mxu0 %v206
  %220 = vmatprep.subr.bf16.mxu0 0
  %221 = vmatpush1.bf16.msra.mxu0 %v205
  %222 = vmatprep.subr.bf16.mxu0 0
  %223 = vmatpush1.bf16.msra.mxu0 %v204
  %224 = vmatprep.subr.bf16.mxu0 0
  %225 = vmatpush1.bf16.msra.mxu0 %v203
  %226 = vmatprep.subr.bf16.mxu0 0
  %227 = vmatpush1.bf16.msra.mxu0 %v202
  %228 = vmatprep.subr.bf16.mxu0 0
  %229 = vmatpush1.bf16.msra.mxu0 %v201
  %230 = vmatprep.subr.bf16.mxu0 0
  %231 = vmatpush1.bf16.msra.mxu0 %v200
  %232 = vmatprep.subr.bf16.mxu0 0
  %233 = vmatpush2.bf16.msra.mxu0 0
  %234 = vmatprep.subr.bf16.mxu0 0
  %235 = vmatpush2.bf16.msra.mxu0 0
  %236 = vmatprep.subr.bf16.mxu0 0
  %237 = vmatpush2.bf16.msra.mxu0 0
  %238 = vmatprep.subr.bf16.mxu0 0
  %239 = vmatpush2.bf16.msra.mxu0 0
  %240 = vmatprep.subr.bf16.mxu0 0
  %241 = vmatpush2.bf16.msra.mxu0 0
  %242 = vmatprep.subr.bf16.mxu0 0
  %243 = vmatpush2.bf16.msra.mxu0 0
  %244 = vmatprep.subr.bf16.mxu0 0
  %245 = vmatpush2.bf16.msra.mxu0 0
  %246 = vmatprep.subr.bf16.mxu0 0
  %247 = vmatpush2.bf16.msra.mxu0 0
  %248 = vmatprep.mubr.bf16.mxu0 0
  %249 = vmatmul.mubr.bf16.gmra.mxu0 %v61
  %v250 = vpop.f32.mrf.mxu0
  %v251 = vadd.f32 0.0, %v250
  %v252 = vpop.f32.mrf.mxu0
  %v253 = vpop.f32.mrf.mxu0
  %v254 = vadd.f32 0.0, %v253
  %v255 = vpop.f32.mrf.mxu0
  %256 = vdwg.mxu0
  %v257 = vxor.u32 %v146, 2147483648
  %v258 = vxor.u32 %v149, 2147483648
  %v259 = vmul.f32 %v257, 1.442695
  %v260 = vpow.pop %v259
  %v261 = vmul.f32 %v258, 1.442695
  %v262 = vpow.pop %v261
  %v263 = vadd.f32 %v260, 1.0
  %v264 = vadd.f32 %v262, 1.0
  %v265 = vrcp.pop %v263
  %v266 = vmul.f32 1.0, %v265
  %v267 = vrcp.pop %v264
  %v268 = vmul.f32 1.0, %v267
  %v269 = vmul.f32 %v146, %v266
  %v270 = vmul.f32 %v149, %v268
  %v271 = vmul.f32 %v269, %v251
  %v272 = vmul.f32 %v270, %v254
  %v273 = vld [vmem:[#allocation3] sm:$0xff]
  %v274 = vld [vmem:[#allocation3 + $0x8] sm:$0xff]
  %v275 = vpack.c.bf16 %v272, %v271
  %v276 = vld [vmem:[%s4] sm:$0xf]
  %v277 = vld [vmem:[%s4 + $0x4] sm:$0xf]
  %v278 = vld [vmem:[%s4 + $0x8] sm:$0xf]
  %v279 = vld [vmem:[%s4 + $0xc] sm:$0xf]
  %v280 = vld [vmem:[%s4 + $0x10] sm:$0xf]
  %v281 = vld [vmem:[%s4 + $0x14] sm:$0xf]
  %v282 = vld [vmem:[%s4 + $0x18] sm:$0xf]
  %v283 = vld [vmem:[%s4 + $0x1c] sm:$0xf]
  %v292 = vunpack.c.l.b16 %v276
  %v293 = vunpack.c.l.b16 %v277
  %v294 = vunpack.c.l.b16 %v278
  %v295 = vunpack.c.l.b16 %v279
  %v296 = vunpack.c.l.b16 %v280
  %v297 = vunpack.c.l.b16 %v281
  %v298 = vunpack.c.l.b16 %v282
  %v299 = vunpack.c.l.b16 %v283
  %v300 = vpack.c.b16 %v293, %v292
  %v301 = vpack.c.b16 %v295, %v294
  %v302 = vpack.c.b16 %v297, %v296
  %v303 = vpack.c.b16 %v299, %v298
  %vm308 = vcmask 523264
  %v310 = vsel %vm308, %v275, 0
  %312 = vmatprep.subr.bf16.mxu0 0
  %313 = vmatpush1.bf16.msra.mxu0 0
  %314 = vmatprep.subr.bf16.mxu0 0
  %315 = vmatpush1.bf16.msra.mxu0 0
  %316 = vmatprep.subr.bf16.mxu0 0
  %317 = vmatpush1.bf16.msra.mxu0 0
  %318 = vmatprep.subr.bf16.mxu0 0
  %319 = vmatpush1.bf16.msra.mxu0 0
  %320 = vmatprep.subr.bf16.mxu0 0
  %321 = vmatpush1.bf16.msra.mxu0 %v303
  %322 = vmatprep.subr.bf16.mxu0 0
  %323 = vmatpush1.bf16.msra.mxu0 %v302
  %324 = vmatprep.subr.bf16.mxu0 0
  %325 = vmatpush1.bf16.msra.mxu0 %v301
  %326 = vmatprep.subr.bf16.mxu0 0
  %327 = vmatpush1.bf16.msra.mxu0 %v300
  %328 = vmatprep.subr.bf16.mxu0 0
  %329 = vmatpush2.bf16.msra.mxu0 0
  %330 = vmatprep.subr.bf16.mxu0 0
  %331 = vmatpush2.bf16.msra.mxu0 0
  %332 = vmatprep.subr.bf16.mxu0 0
  %333 = vmatpush2.bf16.msra.mxu0 0
  %334 = vmatprep.subr.bf16.mxu0 0
  %335 = vmatpush2.bf16.msra.mxu0 0
  %336 = vmatprep.subr.bf16.mxu0 0
  %337 = vmatpush2.bf16.msra.mxu0 0
  %338 = vmatprep.subr.bf16.mxu0 0
  %339 = vmatpush2.bf16.msra.mxu0 0
  %340 = vmatprep.subr.bf16.mxu0 0
  %341 = vmatpush2.bf16.msra.mxu0 0
  %342 = vmatprep.subr.bf16.mxu0 0
  %343 = vmatpush2.bf16.msra.mxu0 0
  %344 = vmatprep.mubr.bf16.mxu0 0
  %345 = vmatmul.mubr.bf16.gmra.mxu0 %v310
  %v346 = vpop.f32.mrf.mxu0
  %v347 = vadd.f32 0.0, %v346
  %v348 = vpop.f32.mrf.mxu0
  %v349 = vpop.f32.mrf.mxu0
  %v350 = vadd.f32 0.0, %v349
  %v351 = vpop.f32.mrf.mxu0
  %352 = vdwg.mxu0
  %v353 = vadd.f32 %v273, %v347
  %v354 = vadd.f32 %v274, %v350
  %355 = vst [vmem:[#allocation3] sm:$0xff] %v353
  %356 = vst [vmem:[#allocation3 + $0x8] sm:$0xff] %v354
  // Predicated region
  $region26: #{deepseek_forward.27} parent=0 // pred_check
    %p357 = pneg %p21
  $region27: #{deepseek_forward.27} parent=0 // pred_check_branch
    %359 = sbr.rel (%p357) target = $region29
  $region28: #{deepseek_forward.27} parent=0 // pred_region
    %v360 = vld [vmem:[#allocation3] sm:$0xff]
    %v361 = vld [vmem:[#allocation3 + $0x8] sm:$0xff]
    %362 = vst [vmem:[%s5] sm:$0xff] %v360
    %363 = vst [vmem:[%s5 + $0x8] sm:$0xff] %v361
  $region29: #{deepseek_forward.27} parent=0 // pred_fallthru
    _
  // Predicated region
  $region30: #{deepseek_forward.27} parent=0 // pred_check
    _
  $region31: #{deepseek_forward.27} parent=0 // pred_check_branch
    %365 = sbr.rel (0) target = $region33
  $region32: #{deepseek_forward.27} parent=0 // pred_region
    _
  $region33: #{deepseek_forward.27} parent=0 // pred_fallthru
    _
  // Predicated region
  $region34: #{deepseek_forward.27} parent=0 // pred_check
    _
  $region35: #{deepseek_forward.27} parent=0 // pred_check_branch
    %367 = sbr.rel (0) target = $region37
  $region36: #{deepseek_forward.27} parent=0 // pred_region
    _
  $region37: #{deepseek_forward.27} parent=0 // pred_fallthru
    _

// kernel: deepseek_forward.26
$region0: #{deepseek_forward.26}
  #allocation0 [shape = 'u32[]', space=smem, size = 0x4, offset = 0x4, fixed_abs, tag = 'smem constant byte address 0x4 - core index']
  #allocation1 [shape = 'u32[144,128]{1,0:T(1,128)}', space=vmem, size = 0x12000, scoped, tag = 'internal scratch']
  #allocation2 [shape = 'f32[16,128]{1,0:T(8,128)}', space=vmem, size = 0x2000, scoped, tag = 'scratch operand']
  %s0 = inlined_call_operand.vmem [shape: f32[16,128], index: 0, kind: input, shape index: {}]
  %s1 = inlined_call_operand.vmem [shape: f32[4,16,1], index: 1, kind: input, shape index: {}]
  %s2 = inlined_call_operand.vmem [shape: bf16[4,128,64], index: 2, kind: input, shape index: {}]
  %s3 = inlined_call_operand.vmem [shape: bf16[4,128,64], index: 3, kind: input, shape index: {}]
  %s4 = inlined_call_operand.vmem [shape: bf16[4,64,128], index: 4, kind: input, shape index: {}]
  %s5 = inlined_call_operand.vmem [shape: f32[16,128], index: 5, kind: output, shape index: {}]
  %s6 = sld [smem:[#allocation0]]
  $region61: #{deepseek_forward.26} parent=0
    _
  %s8 = ssub.s32 1, %s6
  %s9 = scalar_select 0, %s8, %s6
  loop: start=0, step=1, limit=6
  $region2: #{deepseek_forward.26} parent=0 // loop_pre_header
    _
  $region3: #{deepseek_forward.26} parent=0 // loop_header
    %s11 = sphi 0, %s15
    %p12 = scmp.ge.s32.totalorder %s11, 6
    %s18 = sphi 0, %s30
    %s19 = sphi 0, %s26
    %s20 = sphi 0, %s18
    %s21 = sphi 0, %s19
    %s22 = sphi 0, %s20
    %s23 = sphi 0, %s21
    %s33 = sphi 0, %s35
    %s36 = sphi 0, %s33
    %s37 = sphi 0, %s36
    %s53 = sphi 0, %s37
    %s61 = sphi 0, %s63
    %s64 = sphi 0, %s61
    %s65 = sphi 0, %s64
    %s81 = sphi 0, %s65
    %s87 = sphi 0, %s89
    %s90 = sphi 0, %s87
    %s91 = sphi 0, %s90
    %s107 = sphi 0, %s91
    %s113 = sphi 0, %s115
    %s116 = sphi 0, %s113
    %s117 = sphi 0, %s116
    %s133 = sphi 0, %s117
    %s139 = sphi 0, %s141
    %s142 = sphi 0, %s139
    %s143 = sphi 0, %s142
    %s159 = sphi 0, %s143
    %s165 = sphi 0, %s167
    %s168 = sphi 0, %s165
    %s169 = sphi 0, %s168
    %s185 = sphi 0, %s169
  $region4: #{deepseek_forward.26} parent=0 // loop_header_branch
    %14 = sbr.rel (%p12) target = $region8
  $region5: #{deepseek_forward.26} parent=0 // loop_body
    %s16 = ssub.s32 %s11, 1
    %s17 = ssub.s32 %s11, 2
    %s24 = sadd.s32 1, %s19
    %p25 = scmp.ge.s32.totalorder %s24, 4
    %s26 = scalar_select %p25, 0, %s24
    %s27 = sadd.s32 1, %s18
    %s28 = scalar_select %p25, %s27, %s18
    %p29 = scmp.ge.s32.totalorder %s28, 1
    %s30 = scalar_select %p29, 0, %s28
    %s31 = ssub.s32 %s18, %s30
    %p32 = scmp.eq.s32.totalorder %s31, 0
    %s34 = sadd.s32 %s33, 1
    %s35 = scalar_select %p32, %s33, %s34
    %p38 = pneg %p32
    %p39 = scmp.eq.s32.totalorder %s11, 3
    %p40 = por %p38, %p39
    %p41 = scmp.ne.s32.totalorder %s33, %s36
    %p42 = scmp.eq.s32.totalorder %s11, 0
    %p43 = por %p41, %p42
    %p44 = scmp.ne.s32.totalorder %s33, %s36
    %p45 = scmp.eq.s32.totalorder %s16, 3
    %p46 = por %p44, %p45
    %p47 = scmp.ne.s32.totalorder %s36, %s37
    %p48 = scmp.eq.s32.totalorder %s16, 0
    %p49 = por %p47, %p48
    %p50 = scmp.ne.s32.totalorder %s36, %s37
    %p51 = scmp.eq.s32.totalorder %s17, 3
    %p52 = por %p50, %p51
    %p54 = scmp.ne.s32.totalorder %s37, %s53
    %p55 = scmp.eq.s32.totalorder %s17, 0
    %p56 = por %p54, %p55
    %s57 = ssub.s32 %s19, %s26
    %s58 = ssub.s32 %s18, %s30
    %s59 = sor.u32 %s57, %s58
    %p60 = scmp.eq.s32.totalorder %s59, 0
    %s62 = sadd.s32 %s61, 1
    %s63 = scalar_select %p60, %s61, %s62
    %p66 = pneg %p60
    %p67 = scmp.eq.s32.totalorder %s11, 3
    %p68 = por %p66, %p67
    %p69 = scmp.ne.s32.totalorder %s61, %s64
    %p70 = scmp.eq.s32.totalorder %s11, 0
    %p71 = por %p69, %p70
    %p72 = scmp.ne.s32.totalorder %s61, %s64
    %p73 = scmp.eq.s32.totalorder %s16, 3
    %p74 = por %p72, %p73
    %p75 = scmp.ne.s32.totalorder %s64, %s65
    %p76 = scmp.eq.s32.totalorder %s16, 0
    %p77 = por %p75, %p76
    %p78 = scmp.ne.s32.totalorder %s64, %s65
    %p79 = scmp.eq.s32.totalorder %s17, 3
    %p80 = por %p78, %p79
    %p82 = scmp.ne.s32.totalorder %s65, %s81
    %p83 = scmp.eq.s32.totalorder %s17, 0
    %p84 = por %p82, %p83
    %s85 = ssub.s32 %s19, %s26
    %p86 = scmp.eq.s32.totalorder %s85, 0
    %s88 = sadd.s32 %s87, 1
    %s89 = scalar_select %p86, %s87, %s88
    %p92 = pneg %p86
    %p93 = scmp.eq.s32.totalorder %s11, 3
    %p94 = por %p92, %p93
    %p95 = scmp.ne.s32.totalorder %s87, %s90
    %p96 = scmp.eq.s32.totalorder %s11, 0
    %p97 = por %p95, %p96
    %p98 = scmp.ne.s32.totalorder %s87, %s90
    %p99 = scmp.eq.s32.totalorder %s16, 3
    %p100 = por %p98, %p99
    %p101 = scmp.ne.s32.totalorder %s90, %s91
    %p102 = scmp.eq.s32.totalorder %s16, 0
    %p103 = por %p101, %p102
    %p104 = scmp.ne.s32.totalorder %s90, %s91
    %p105 = scmp.eq.s32.totalorder %s17, 3
    %p106 = por %p104, %p105
    %p108 = scmp.ne.s32.totalorder %s91, %s107
    %p109 = scmp.eq.s32.totalorder %s17, 0
    %p110 = por %p108, %p109
    %s111 = ssub.s32 %s19, %s26
    %p112 = scmp.eq.s32.totalorder %s111, 0
    %s114 = sadd.s32 %s113, 1
    %s115 = scalar_select %p112, %s113, %s114
    %p118 = pneg %p112
    %p119 = scmp.eq.s32.totalorder %s11, 3
    %p120 = por %p118, %p119
    %p121 = scmp.ne.s32.totalorder %s113, %s116
    %p122 = scmp.eq.s32.totalorder %s11, 0
    %p123 = por %p121, %p122
    %p124 = scmp.ne.s32.totalorder %s113, %s116
    %p125 = scmp.eq.s32.totalorder %s16, 3
    %p126 = por %p124, %p125
    %p127 = scmp.ne.s32.totalorder %s116, %s117
    %p128 = scmp.eq.s32.totalorder %s16, 0
    %p129 = por %p127, %p128
    %p130 = scmp.ne.s32.totalorder %s116, %s117
    %p131 = scmp.eq.s32.totalorder %s17, 3
    %p132 = por %p130, %p131
    %p134 = scmp.ne.s32.totalorder %s117, %s133
    %p135 = scmp.eq.s32.totalorder %s17, 0
    %p136 = por %p134, %p135
    %s137 = ssub.s32 %s19, %s26
    %p138 = scmp.eq.s32.totalorder %s137, 0
    %s140 = sadd.s32 %s139, 1
    %s141 = scalar_select %p138, %s139, %s140
    %p144 = pneg %p138
    %p145 = scmp.eq.s32.totalorder %s11, 3
    %p146 = por %p144, %p145
    %p147 = scmp.ne.s32.totalorder %s139, %s142
    %p148 = scmp.eq.s32.totalorder %s11, 0
    %p149 = por %p147, %p148
    %p150 = scmp.ne.s32.totalorder %s139, %s142
    %p151 = scmp.eq.s32.totalorder %s16, 3
    %p152 = por %p150, %p151
    %p153 = scmp.ne.s32.totalorder %s142, %s143
    %p154 = scmp.eq.s32.totalorder %s16, 0
    %p155 = por %p153, %p154
    %p156 = scmp.ne.s32.totalorder %s142, %s143
    %p157 = scmp.eq.s32.totalorder %s17, 3
    %p158 = por %p156, %p157
    %p160 = scmp.ne.s32.totalorder %s143, %s159
    %p161 = scmp.eq.s32.totalorder %s17, 0
    %p162 = por %p160, %p161
    %s163 = ssub.s32 %s18, %s30
    %p164 = scmp.eq.s32.totalorder %s163, 0
    %s166 = sadd.s32 %s165, 1
    %s167 = scalar_select %p164, %s165, %s166
    %p170 = pneg %p164
    %p171 = scmp.eq.s32.totalorder %s11, 3
    %p172 = por %p170, %p171
    %p173 = scmp.ne.s32.totalorder %s165, %s168
    %p174 = scmp.eq.s32.totalorder %s11, 0
    %p175 = por %p173, %p174
    %p176 = scmp.ne.s32.totalorder %s165, %s168
    %p177 = scmp.eq.s32.totalorder %s16, 3
    %p178 = por %p176, %p177
    %p179 = scmp.ne.s32.totalorder %s168, %s169
    %p180 = scmp.eq.s32.totalorder %s16, 0
    %p181 = por %p179, %p180
    %p182 = scmp.ne.s32.totalorder %s168, %s169
    %p183 = scmp.eq.s32.totalorder %s17, 3
    %p184 = por %p182, %p183
    %p186 = scmp.ne.s32.totalorder %s169, %s185
    %p187 = scmp.eq.s32.totalorder %s17, 0
    %p188 = por %p186, %p187
    %p189 = scmp.le.s32.totalorder 1, %s11
    %p190 = scmp.lt.s32.totalorder %s11, 5
    %p191 = pnand %p189, %p190
    %p192 = pneg %p191
    // Predicated region
    $region9: #{deepseek_forward.26} parent=5 // pred_check
      _
    $region10: #{deepseek_forward.26} parent=5 // pred_check_branch
      %194 = sbr.rel (%p191) target = $region12
    $region11: #{deepseek_forward.26} parent=5 // pred_region
      %s195 = ssub.s32 %s11, 1
      // Predicated region
      $region13: #{deepseek_forward.26} parent=11 // pred_check
        %p196 = pneg %p49
      $region14: #{deepseek_forward.26} parent=11 // pred_check_branch
        %198 = sbr.rel (%p196) target = $region16
      $region15: #{deepseek_forward.26} parent=11 // pred_region
        %s199 = smul.u32 2, %s20
        %p200 = scmp.lt.s32.totalorder %s199, 1
        %s201 = scalar_select %p200, %s199, 1
        %s202 = smul.addr %s201, 8
        %s203 = scalar_lea.vmem %s0, %s202
        %s204 = smul.u32 2, %s20
      $region16: #{deepseek_forward.26} parent=11 // pred_fallthru
        _
    $region12: #{deepseek_forward.26} parent=5 // pred_fallthru
      _
    %p205 = scmp.lt.s32.totalorder %s11, 4
    // Predicated region
    $region17: #{deepseek_forward.26} parent=5 // pred_check
      %p206 = pneg %p205
    $region18: #{deepseek_forward.26} parent=5 // pred_check_branch
      %208 = sbr.rel (%p206) target = $region20
    $region19: #{deepseek_forward.26} parent=5 // pred_region
      // Predicated region
      $region21: #{deepseek_forward.26} parent=19 // pred_check
        %p209 = pneg %p71
      $region22: #{deepseek_forward.26} parent=19 // pred_check_branch
        %211 = sbr.rel (%p209) target = $region24
      $region23: #{deepseek_forward.26} parent=19 // pred_region
        %s212 = smul.u32 2, %s18
        %p213 = scmp.lt.s32.totalorder %s19, 3
        %s214 = scalar_select %p213, %s19, 3
        %p215 = scmp.lt.s32.totalorder %s212, 1
        %s216 = scalar_select %p215, %s212, 1
        %s217 = smul.addr %s214, 2
        %s218 = sadd.s32 %s216, %s217
        %s219 = smul.addr %s218, 8
        %s220 = scalar_lea.vmem %s1, %s219
        %s221 = smul.u32 2, %s18
      $region24: #{deepseek_forward.26} parent=19 // pred_fallthru
        _
      // Predicated region
      $region25: #{deepseek_forward.26} parent=19 // pred_check
        %p222 = pneg %p97
      $region26: #{deepseek_forward.26} parent=19 // pred_check_branch
        %224 = sbr.rel (%p222) target = $region28
      $region27: #{deepseek_forward.26} parent=19 // pred_region
        %p225 = scmp.lt.s32.totalorder %s19, 3
        %s226 = scalar_select %p225, %s19, 3
        %s227 = smul.addr %s226, 16
        %s228 = smul.addr %s227, 4
        %s229 = scalar_lea.vmem %s2, %s228
      $region28: #{deepseek_forward.26} parent=19 // pred_fallthru
        _
      // Predicated region
      $region29: #{deepseek_forward.26} parent=19 // pred_check
        %p230 = pneg %p123
      $region30: #{deepseek_forward.26} parent=19 // pred_check_branch
        %232 = sbr.rel (%p230) target = $region32
      $region31: #{deepseek_forward.26} parent=19 // pred_region
        %p233 = scmp.lt.s32.totalorder %s19, 3
        %s234 = scalar_select %p233, %s19, 3
        %s235 = smul.addr %s234, 16
        %s236 = smul.addr %s235, 4
        %s237 = scalar_lea.vmem %s3, %s236
      $region32: #{deepseek_forward.26} parent=19 // pred_fallthru
        _
      // Predicated region
      $region33: #{deepseek_forward.26} parent=19 // pred_check
        %p238 = pneg %p149
      $region34: #{deepseek_forward.26} parent=19 // pred_check_branch
        %240 = sbr.rel (%p238) target = $region36
      $region35: #{deepseek_forward.26} parent=19 // pred_region
        %p241 = scmp.lt.s32.totalorder %s19, 3
        %s242 = scalar_select %p241, %s19, 3
        %s243 = smul.addr %s242, 8
        %s244 = smul.addr %s243, 4
        %s245 = scalar_lea.vmem %s4, %s244
      $region36: #{deepseek_forward.26} parent=19 // pred_fallthru
        _
    $region20: #{deepseek_forward.26} parent=5 // pred_fallthru
      _
    %p246 = scmp.le.s32.totalorder 1, %s11
    %p247 = scmp.lt.s32.totalorder %s11, 5
    %p248 = pnand %p246, %p247
    %p249 = pneg %p248
    // Predicated region
    $region37: #{deepseek_forward.26} parent=5 // pred_check
      _
    $region38: #{deepseek_forward.26} parent=5 // pred_check_branch
      %251 = sbr.rel (%p248) target = $region40
    $region39: #{deepseek_forward.26} parent=5 // pred_region
      %s252 = ssub.s32 %s11, 1
      %s253 = smul.u32 2, %s20
      %p254 = scmp.lt.s32.totalorder %s253, 1
      %s255 = scalar_select %p254, %s253, 1
      %s256 = smul.addr %s255, 8
      %s257 = scalar_lea.vmem %s0, %s256
      %p258 = pneg %p49
      %p259 = pneg %p46
      %s260 = smul.u32 2, %s20
      %p261 = scmp.lt.s32.totalorder %s21, 3
      %s262 = scalar_select %p261, %s21, 3
      %p263 = scmp.lt.s32.totalorder %s260, 1
      %s264 = scalar_select %p263, %s260, 1
      %s265 = smul.addr %s262, 2
      %s266 = sadd.s32 %s264, %s265
      %s267 = smul.addr %s266, 8
      %s268 = scalar_lea.vmem %s1, %s267
      %p269 = pneg %p77
      %p270 = pneg %p74
      %p271 = scmp.lt.s32.totalorder %s21, 3
      %s272 = scalar_select %p271, %s21, 3
      %s273 = smul.addr %s272, 16
      %s274 = smul.addr %s273, 4
      %s275 = scalar_lea.vmem %s2, %s274
      %p276 = pneg %p103
      %p277 = pneg %p100
      %p278 = scmp.lt.s32.totalorder %s21, 3
      %s279 = scalar_select %p278, %s21, 3
      %s280 = smul.addr %s279, 16
      %s281 = smul.addr %s280, 4
      %s282 = scalar_lea.vmem %s3, %s281
      %p283 = pneg %p129
      %p284 = pneg %p126
      %p285 = scmp.lt.s32.totalorder %s21, 3
      %s286 = scalar_select %p285, %s21, 3
      %s287 = smul.addr %s286, 8
      %s288 = smul.addr %s287, 4
      %s289 = scalar_lea.vmem %s4, %s288
      %p290 = pneg %p155
      %p291 = pneg %p152
      %p292 = pneg %p181
      %p293 = pneg %p178
      %s294 = smul.u32 2, %s20
      %p295 = scmp.lt.s32.totalorder %s294, 1
      %s296 = scalar_select %p295, %s294, 1
      %s297 = smul.addr %s296, 8
      %s298 = scalar_lea.vmem %s5, %s297
      %s299 = smul.u32 2, %s20
      %p300 = scmp.lt.s32.totalorder %s299, 1
      %s301 = scalar_select %p300, %s299, 1
      %s302 = smul.addr %s301, 8
      %s303 = scalar_lea.vmem %s0, %s302
      %s304 = smul.u32 2, %s20
      %s305 = smul.u32 2, %s20
      %p306 = scmp.lt.s32.totalorder %s21, 3
      %s307 = scalar_select %p306, %s21, 3
      %p308 = scmp.lt.s32.totalorder %s305, 1
      %s309 = scalar_select %p308, %s305, 1
      %s310 = smul.addr %s307, 2
      %s311 = sadd.s32 %s309, %s310
      %s312 = smul.addr %s311, 8
      %s313 = scalar_lea.vmem %s1, %s312
      %s314 = smul.u32 2, %s20
      %p315 = scmp.lt.s32.totalorder %s21, 3
      %s316 = scalar_select %p315, %s21, 3
      %s317 = smul.addr %s316, 16
      %s318 = smul.addr %s317, 4
      %s319 = scalar_lea.vmem %s2, %s318
      %p320 = scmp.lt.s32.totalorder %s21, 3
      %s321 = scalar_select %p320, %s21, 3
      %s322 = smul.addr %s321, 16
      %s323 = smul.addr %s322, 4
      %s324 = scalar_lea.vmem %s3, %s323
      %p325 = scmp.lt.s32.totalorder %s21, 3
      %s326 = scalar_select %p325, %s21, 3
      %s327 = smul.addr %s326, 8
      %s328 = smul.addr %s327, 4
      %s329 = scalar_lea.vmem %s4, %s328
      %s330 = smul.u32 2, %s20
      %p331 = scmp.lt.s32.totalorder %s330, 1
      %s332 = scalar_select %p331, %s330, 1
      %s333 = smul.addr %s332, 8
      %s334 = scalar_lea.vmem %s5, %s333
      %s335 = smul.u32 2, %s20
      %p337 = scmp.eq.s32.totalorder %s21, 0
      // Predicated region
      $region41: #{deepseek_forward.26} parent=39 // pred_check
        %p338 = pneg %p337
      $region42: #{deepseek_forward.26} parent=39 // pred_check_branch
        %340 = sbr.rel (%p338) target = $region44
      $region43: #{deepseek_forward.26} parent=39 // pred_region
        %341 = vst [vmem:[#allocation2] sm:$0xff] 0.0
        %342 = vst [vmem:[#allocation2 + $0x8] sm:$0xff] 0.0
      $region44: #{deepseek_forward.26} parent=39 // pred_fallthru
        _
      %v343 = vld [vmem:[%s303] sm:$0xff]
      %v344 = vld [vmem:[%s303 + $0x8] sm:$0xff]
      %v345 = vpack.c.bf16 %v344, %v343
      %v346 = vld [vmem:[%s319] sm:$0xf]
      %v347 = vld [vmem:[%s319 + $0x4] sm:$0xf]
      %v348 = vld [vmem:[%s319 + $0x8] sm:$0xf]
      %v349 = vld [vmem:[%s319 + $0xc] sm:$0xf]
      %v350 = vld [vmem:[%s319 + $0x10] sm:$0xf]
      %v351 = vld [vmem:[%s319 + $0x14] sm:$0xf]
      %v352 = vld [vmem:[%s319 + $0x18] sm:$0xf]
      %v353 = vld [vmem:[%s319 + $0x1c] sm:$0xf]
      %v354 = vld [vmem:[%s319 + $0x20] sm:$0xf]
      %v355 = vld [vmem:[%s319 + $0x24] sm:$0xf]
      %v356 = vld [vmem:[%s319 + $0x28] sm:$0xf]
      %v357 = vld [vmem:[%s319 + $0x2c] sm:$0xf]
      %v358 = vld [vmem:[%s319 + $0x30] sm:$0xf]
      %v359 = vld [vmem:[%s319 + $0x34] sm:$0xf]
      %v360 = vld [vmem:[%s319 + $0x38] sm:$0xf]
      %v361 = vld [vmem:[%s319 + $0x3c] sm:$0xf]
      %v378 = vunpack.c.l.b16 %v346
      %v379 = vunpack.c.l.b16 %v347
      %v380 = vunpack.c.l.b16 %v348
      %v381 = vunpack.c.l.b16 %v349
      %v382 = vunpack.c.l.b16 %v350
      %v383 = vunpack.c.l.b16 %v351
      %v384 = vunpack.c.l.b16 %v352
      %v385 = vunpack.c.l.b16 %v353
      %v386 = vunpack.c.l.b16 %v354
      %v387 = vunpack.c.l.b16 %v355
      %v388 = vunpack.c.l.b16 %v356
      %v389 = vunpack.c.l.b16 %v357
      %v390 = vunpack.c.l.b16 %v358
      %v391 = vunpack.c.l.b16 %v359
      %v392 = vunpack.c.l.b16 %v360
      %v393 = vunpack.c.l.b16 %v361
      %v394 = vpack.c.b16 %v379, %v378
      %v395 = vpack.c.b16 %v381, %v380
      %v396 = vpack.c.b16 %v383, %v382
      %v397 = vpack.c.b16 %v385, %v384
      %v398 = vpack.c.b16 %v387, %v386
      %v399 = vpack.c.b16 %v389, %v388
      %v400 = vpack.c.b16 %v391, %v390
      %v401 = vpack.c.b16 %v393, %v392
      %410 = vmatprep.subr.bf16.mxu0 0
      %411 = vmatpush1.bf16.msra.mxu0 %v401
      %412 = vmatprep.subr.bf16.mxu0 0
      %413 = vmatpush1.bf16.msra.mxu0 %v400
      %414 = vmatprep.subr.bf16.mxu0 0
      %415 = vmatpush1.bf16.msra.mxu0 %v399
      %416 = vmatprep.subr.bf16.mxu0 0
      %417 = vmatpush1.bf16.msra.mxu0 %v398
      %418 = vmatprep.subr.bf16.mxu0 0
      %419 = vmatpush1.bf16.msra.mxu0 %v397
      %420 = vmatprep.subr.bf16.mxu0 0
      %421 = vmatpush1.bf16.msra.mxu0 %v396
      %422 = vmatprep.subr.bf16.mxu0 0
      %423 = vmatpush1.bf16.msra.mxu0 %v395
      %424 = vmatprep.subr.bf16.mxu0 0
      %425 = vmatpush1.bf16.msra.mxu0 %v394
      %426 = vmatprep.subr.bf16.mxu0 0
      %427 = vmatpush2.bf16.msra.mxu0 0
      %428 = vmatprep.subr.bf16.mxu0 0
      %429 = vmatpush2.bf16.msra.mxu0 0
      %430 = vmatprep.subr.bf16.mxu0 0
      %431 = vmatpush2.bf16.msra.mxu0 0
      %432 = vmatprep.subr.bf16.mxu0 0
      %433 = vmatpush2.bf16.msra.mxu0 0
      %434 = vmatprep.subr.bf16.mxu0 0
      %435 = vmatpush2.bf16.msra.mxu0 0
      %436 = vmatprep.subr.bf16.mxu0 0
      %437 = vmatpush2.bf16.msra.mxu0 0
      %438 = vmatprep.subr.bf16.mxu0 0
      %439 = vmatpush2.bf16.msra.mxu0 0
      %440 = vmatprep.subr.bf16.mxu0 0
      %441 = vmatpush2.bf16.msra.mxu0 0
      %442 = vmatprep.mubr.bf16.mxu0 0
      %443 = vmatmul.mubr.bf16.gmra.mxu0 %v345
      %v444 = vpop.f32.mrf.mxu0
      %v445 = vadd.f32 0.0, %v444
      %v446 = vpop.f32.mrf.mxu0
      %v447 = vpop.f32.mrf.mxu0
      %v448 = vadd.f32 0.0, %v447
      %v449 = vpop.f32.mrf.mxu0
      %450 = vdwg.mxu0
      %v451 = vld [vmem:[%s324] sm:$0xf]
      %v452 = vld [vmem:[%s324 + $0x4] sm:$0xf]
      %v453 = vld [vmem:[%s324 + $0x8] sm:$0xf]
      %v454 = vld [vmem:[%s324 + $0xc] sm:$0xf]
      %v455 = vld [vmem:[%s324 + $0x10] sm:$0xf]
      %v456 = vld [vmem:[%s324 + $0x14] sm:$0xf]
      %v457 = vld [vmem:[%s324 + $0x18] sm:$0xf]
      %v458 = vld [vmem:[%s324 + $0x1c] sm:$0xf]
      %v459 = vld [vmem:[%s324 + $0x20] sm:$0xf]
      %v460 = vld [vmem:[%s324 + $0x24] sm:$0xf]
      %v461 = vld [vmem:[%s324 + $0x28] sm:$0xf]
      %v462 = vld [vmem:[%s324 + $0x2c] sm:$0xf]
      %v463 = vld [vmem:[%s324 + $0x30] sm:$0xf]
      %v464 = vld [vmem:[%s324 + $0x34] sm:$0xf]
      %v465 = vld [vmem:[%s324 + $0x38] sm:$0xf]
      %v466 = vld [vmem:[%s324 + $0x3c] sm:$0xf]
      %v483 = vunpack.c.l.b16 %v451
      %v484 = vunpack.c.l.b16 %v452
      %v485 = vunpack.c.l.b16 %v453
      %v486 = vunpack.c.l.b16 %v454
      %v487 = vunpack.c.l.b16 %v455
      %v488 = vunpack.c.l.b16 %v456
      %v489 = vunpack.c.l.b16 %v457
      %v490 = vunpack.c.l.b16 %v458
      %v491 = vunpack.c.l.b16 %v459
      %v492 = vunpack.c.l.b16 %v460
      %v493 = vunpack.c.l.b16 %v461
      %v494 = vunpack.c.l.b16 %v462
      %v495 = vunpack.c.l.b16 %v463
      %v496 = vunpack.c.l.b16 %v464
      %v497 = vunpack.c.l.b16 %v465
      %v498 = vunpack.c.l.b16 %v466
      %v499 = vpack.c.b16 %v484, %v483
      %v500 = vpack.c.b16 %v486, %v485
      %v501 = vpack.c.b16 %v488, %v487
      %v502 = vpack.c.b16 %v490, %v489
      %v503 = vpack.c.b16 %v492, %v491
      %v504 = vpack.c.b16 %v494, %v493
      %v505 = vpack.c.b16 %v496, %v495
      %v506 = vpack.c.b16 %v498, %v497
      %515 = vmatprep.subr.bf16.mxu0 0
      %516 = vmatpush1.bf16.msra.mxu0 %v506
      %517 = vmatprep.subr.bf16.mxu0 0
      %518 = vmatpush1.bf16.msra.mxu0 %v505
      %519 = vmatprep.subr.bf16.mxu0 0
      %520 = vmatpush1.bf16.msra.mxu0 %v504
      %521 = vmatprep.subr.bf16.mxu0 0
      %522 = vmatpush1.bf16.msra.mxu0 %v503
      %523 = vmatprep.subr.bf16.mxu0 0
      %524 = vmatpush1.bf16.msra.mxu0 %v502
      %525 = vmatprep.subr.bf16.mxu0 0
      %526 = vmatpush1.bf16.msra.mxu0 %v501
      %527 = vmatprep.subr.bf16.mxu0 0
      %528 = vmatpush1.bf16.msra.mxu0 %v500
      %529 = vmatprep.subr.bf16.mxu0 0
      %530 = vmatpush1.bf16.msra.mxu0 %v499
      %531 = vmatprep.subr.bf16.mxu0 0
      %532 = vmatpush2.bf16.msra.mxu0 0
      %533 = vmatprep.subr.bf16.mxu0 0
      %534 = vmatpush2.bf16.msra.mxu0 0
      %535 = vmatprep.subr.bf16.mxu0 0
      %536 = vmatpush2.bf16.msra.mxu0 0
      %537 = vmatprep.subr.bf16.mxu0 0
      %538 = vmatpush2.bf16.msra.mxu0 0
      %539 = vmatprep.subr.bf16.mxu0 0
      %540 = vmatpush2.bf16.msra.mxu0 0
      %541 = vmatprep.subr.bf16.mxu0 0
      %542 = vmatpush2.bf16.msra.mxu0 0
      %543 = vmatprep.subr.bf16.mxu0 0
      %544 = vmatpush2.bf16.msra.mxu0 0
      %545 = vmatprep.subr.bf16.mxu0 0
      %546 = vmatpush2.bf16.msra.mxu0 0
      %547 = vmatprep.mubr.bf16.mxu0 0
      %548 = vmatmul.mubr.bf16.gmra.mxu0 %v345
      %v549 = vpop.f32.mrf.mxu0
      %v550 = vadd.f32 0.0, %v549
      %v551 = vpop.f32.mrf.mxu0
      %v552 = vpop.f32.mrf.mxu0
      %v553 = vadd.f32 0.0, %v552
      %v554 = vpop.f32.mrf.mxu0
      %555 = vdwg.mxu0
      %v556 = vxor.u32 %v445, 2147483648
      %v557 = vxor.u32 %v448, 2147483648
      %v558 = vmul.f32 %v556, 1.442695
      %v559 = vpow.pop %v558
      %v560 = vmul.f32 %v557, 1.442695
      %v561 = vpow.pop %v560
      %v562 = vadd.f32 %v559, 1.0
      %v563 = vadd.f32 %v561, 1.0
      %v564 = vrcp.pop %v562
      %v565 = vmul.f32 1.0, %v564
      %v566 = vrcp.pop %v563
      %v567 = vmul.f32 1.0, %v566
      %v568 = vmul.f32 %v445, %v565
      %v569 = vmul.f32 %v448, %v567
      %v570 = vmul.f32 %v568, %v550
      %v571 = vmul.f32 %v569, %v553
      %v572 = vpack.c.bf16 %v571, %v570
      %v573 = vld [vmem:[%s329] sm:$0xf]
      %v574 = vld [vmem:[%s329 + $0x4] sm:$0xf]
      %v575 = vld [vmem:[%s329 + $0x8] sm:$0xf]
      %v576 = vld [vmem:[%s329 + $0xc] sm:$0xf]
      %v577 = vld [vmem:[%s329 + $0x10] sm:$0xf]
      %v578 = vld [vmem:[%s329 + $0x14] sm:$0xf]
      %v579 = vld [vmem:[%s329 + $0x18] sm:$0xf]
      %v580 = vld [vmem:[%s329 + $0x1c] sm:$0xf]
      %v589 = vunpack.c.l.b16 %v573
      %v590 = vunpack.c.l.b16 %v574
      %v591 = vunpack.c.l.b16 %v575
      %v592 = vunpack.c.l.b16 %v576
      %v593 = vunpack.c.l.b16 %v577
      %v594 = vunpack.c.l.b16 %v578
      %v595 = vunpack.c.l.b16 %v579
      %v596 = vunpack.c.l.b16 %v580
      %v597 = vpack.c.b16 %v590, %v589
      %v598 = vpack.c.b16 %v592, %v591
      %v599 = vpack.c.b16 %v594, %v593
      %v600 = vpack.c.b16 %v596, %v595
      %vm605 = vcmask 523264
      %v607 = vsel %vm605, %v572, 0
      %609 = vmatprep.subr.bf16.mxu0 0
      %610 = vmatpush1.bf16.msra.mxu0 0
      %611 = vmatprep.subr.bf16.mxu0 0
      %612 = vmatpush1.bf16.msra.mxu0 0
      %613 = vmatprep.subr.bf16.mxu0 0
      %614 = vmatpush1.bf16.msra.mxu0 0
      %615 = vmatprep.subr.bf16.mxu0 0
      %616 = vmatpush1.bf16.msra.mxu0 0
      %617 = vmatprep.subr.bf16.mxu0 0
      %618 = vmatpush1.bf16.msra.mxu0 %v600
      %619 = vmatprep.subr.bf16.mxu0 0
      %620 = vmatpush1.bf16.msra.mxu0 %v599
      %621 = vmatprep.subr.bf16.mxu0 0
      %622 = vmatpush1.bf16.msra.mxu0 %v598
      %623 = vmatprep.subr.bf16.mxu0 0
      %624 = vmatpush1.bf16.msra.mxu0 %v597
      %625 = vmatprep.subr.bf16.mxu0 0
      %626 = vmatpush2.bf16.msra.mxu0 0
      %627 = vmatprep.subr.bf16.mxu0 0
      %628 = vmatpush2.bf16.msra.mxu0 0
      %629 = vmatprep.subr.bf16.mxu0 0
      %630 = vmatpush2.bf16.msra.mxu0 0
      %631 = vmatprep.subr.bf16.mxu0 0
      %632 = vmatpush2.bf16.msra.mxu0 0
      %633 = vmatprep.subr.bf16.mxu0 0
      %634 = vmatpush2.bf16.msra.mxu0 0
      %635 = vmatprep.subr.bf16.mxu0 0
      %636 = vmatpush2.bf16.msra.mxu0 0
      %637 = vmatprep.subr.bf16.mxu0 0
      %638 = vmatpush2.bf16.msra.mxu0 0
      %639 = vmatprep.subr.bf16.mxu0 0
      %640 = vmatpush2.bf16.msra.mxu0 0
      %641 = vmatprep.mubr.bf16.mxu0 0
      %642 = vmatmul.mubr.bf16.gmra.mxu0 %v607
      %v643 = vpop.f32.mrf.mxu0
      %v644 = vadd.f32 0.0, %v643
      %v645 = vpop.f32.mrf.mxu0
      %v646 = vpop.f32.mrf.mxu0
      %v647 = vadd.f32 0.0, %v646
      %v648 = vpop.f32.mrf.mxu0
      %649 = vdwg.mxu0
      %v650 = vld [vmem:[#allocation2] sm:$0xff]
      %v651 = vld [vmem:[#allocation2 + $0x8] sm:$0xff]
      %v652 = vld [vmem:[%s313] sm:$0xff]
      %v653 = vld [vmem:[%s313 + $0x8] sm:$0xff]
      %655 = vset.pattern.permute.xlu0 0
      %656 = vperm.xlu0 %655, %v652
      %v657 = vpop.permute.xlu0 %656
      %660 = vset.pattern.permute.xlu0 0
      %661 = vperm.xlu0 %660, %v653
      %v662 = vpop.permute.xlu0 %661
      %v664 = vmul.f32 %v657, %v644
      %v665 = vmul.f32 %v662, %v647
      %v666 = vadd.f32 %v650, %v664
      %v667 = vadd.f32 %v651, %v665
      %668 = vst [vmem:[#allocation2] sm:$0xff] %v666
      %669 = vst [vmem:[#allocation2 + $0x8] sm:$0xff] %v667
      %p670 = scmp.eq.s32.totalorder %s21, 3
      // Predicated region
      $region45: #{deepseek_forward.26} parent=39 // pred_check
        %p671 = pneg %p670
      $region46: #{deepseek_forward.26} parent=39 // pred_check_branch
        %673 = sbr.rel (%p671) target = $region48
      $region47: #{deepseek_forward.26} parent=39 // pred_region
        %v674 = vld [vmem:[#allocation2] sm:$0xff]
        %v675 = vld [vmem:[#allocation2 + $0x8] sm:$0xff]
        %676 = vst [vmem:[%s334] sm:$0xff] %v674
        %677 = vst [vmem:[%s334 + $0x8] sm:$0xff] %v675
      $region48: #{deepseek_forward.26} parent=39 // pred_fallthru
        _
      %s678 = smul.u32 2, %s20
      %p679 = scmp.lt.s32.totalorder %s678, 1
      %s680 = scalar_select %p679, %s678, 1
      %s681 = smul.addr %s680, 8
      %s682 = scalar_lea.vmem %s5, %s681
      // Predicated region
      $region49: #{deepseek_forward.26} parent=39 // pred_check
        %p683 = pneg %p178
      $region50: #{deepseek_forward.26} parent=39 // pred_check_branch
        %685 = sbr.rel (%p683) target = $region52
      $region51: #{deepseek_forward.26} parent=39 // pred_region
        %s686 = smul.u32 2, %s20
      $region52: #{deepseek_forward.26} parent=39 // pred_fallthru
        _
      // Predicated region
      $region53: #{deepseek_forward.26} parent=39 // pred_check
        %p687 = pneg %p178
      $region54: #{deepseek_forward.26} parent=39 // pred_check_branch
        %689 = sbr.rel (%p687) target = $region56
      $region55: #{deepseek_forward.26} parent=39 // pred_region
        %s690 = smul.u32 2, %s20
        %p691 = scmp.lt.s32.totalorder %s690, 1
        %s692 = scalar_select %p691, %s690, 1
        %s693 = smul.addr %s692, 8
        %s694 = scalar_lea.vmem %s5, %s693
      $region56: #{deepseek_forward.26} parent=39 // pred_fallthru
        _
    $region40: #{deepseek_forward.26} parent=5 // pred_fallthru
      _
    %p695 = scmp.le.s32.totalorder 2, %s11
    // Predicated region
    $region57: #{deepseek_forward.26} parent=5 // pred_check
      %p696 = pneg %p695
    $region58: #{deepseek_forward.26} parent=5 // pred_check_branch
      %698 = sbr.rel (%p696) target = $region60
    $region59: #{deepseek_forward.26} parent=5 // pred_region
      %s699 = ssub.s32 %s11, 2
    $region60: #{deepseek_forward.26} parent=5 // pred_fallthru
      _
  $region6: #{deepseek_forward.26} parent=0 // loop_footer
    %s15 = sadd.s32 1, %s11
  $region7: #{deepseek_forward.26} parent=0 // loop_footer_branch
    %10 = sbr.rel target = $region3
  $region8: #{deepseek_forward.26} parent=0 // loop_exit
    _

// kernel: deepseek_forward.29
$region0: #{deepseek_forward.29}
  #allocation0 [shape = 'u32[]', space=smem, size = 0x4, offset = 0x4, fixed_abs, tag = 'smem constant byte address 0x4 - core index']
  #allocation1 [shape = 'u32[144,128]{1,0:T(1,128)}', space=vmem, size = 0x12000, scoped, tag = 'internal scratch']
  #allocation2 [shape = 'f32[1,1]{1,0:T(1,128)}', space=vmem, size = 0x200, scoped, tag = 'scratch operand']
  %s0 = inlined_call_operand.vmem [shape: f32[16,256], index: 0, kind: input, shape index: {}]
  %s1 = inlined_call_operand.vmem [shape: s32[16,1], index: 1, kind: input, shape index: {}]
  %s2 = inlined_call_operand.hbm [shape: f32[1,1], index: 2, kind: output, shape index: {}]
  %s3 = sld [smem:[#allocation0]]
  $region26: #{deepseek_forward.29} parent=0
    _
  %s5 = ssub.s32 1, %s3
  %s6 = scalar_select 0, %s5, %s3
  $region1: #{deepseek_forward.29} parent=0
    #allocation3 [shape = 'u8[512]{0}', space=vmem, size = 0x400, scoped, tag = 'output window, operand 0, single buffered']
    #allocation4 [shape = 's32[1]{0}', space=sflag, size = 0x4, scoped, tag = 'scoped memory for deepseek_forward.29']
    %7 = vsyncpa [#allocation4], 0
    // Predicated region
    $region2: #{deepseek_forward.29} parent=1 // pred_check
      _
    $region3: #{deepseek_forward.29} parent=1 // pred_check_branch
      %9 = sbr.rel (0) target = $region5
    $region4: #{deepseek_forward.29} parent=1 // pred_region
      _
    $region5: #{deepseek_forward.29} parent=1 // pred_fallthru
      _
    // Predicated region
    $region6: #{deepseek_forward.29} parent=1 // pred_check
      _
    $region7: #{deepseek_forward.29} parent=1 // pred_check_branch
      %11 = sbr.rel (0) target = $region9
    $region8: #{deepseek_forward.29} parent=1 // pred_region
      _
    $region9: #{deepseek_forward.29} parent=1 // pred_fallthru
      _
    %p12 = scmp.eq.s32.totalorder 0, 0
    // Predicated region
    $region10: #{deepseek_forward.29} parent=1 // pred_check
      %p13 = pneg %p12
    $region11: #{deepseek_forward.29} parent=1 // pred_check_branch
      %15 = sbr.rel (%p13) target = $region13
    $region12: #{deepseek_forward.29} parent=1 // pred_region
      %vm16 = vcmask 0
      %17 = vst.msk [vmem:[#allocation2] sm:$0x1] %vm16, 0.0
    $region13: #{deepseek_forward.29} parent=1 // pred_fallthru
      _
    %v18 = vld [vmem:[%s0] sm:$0xff]
    %v19 = vld [vmem:[%s0 + $0x8] sm:$0xff]
    %v20 = vld [vmem:[%s0 + $0x10] sm:$0xff]
    %v21 = vld [vmem:[%s0 + $0x18] sm:$0xff]
    %v22 = vmax.f32 %v18, %v19
    %23 = vmax.xlane.f32.xlu0 %v22
    %v24 = vpop.xlane.xlu0 %23
    %v25 = vmax.f32 %v20, %v21
    %26 = vmax.xlane.f32.xlu0 %v25
    %v27 = vpop.xlane.xlu0 %26
    %v28 = vsub.f32 %v18, %v24
    %v29 = vsub.f32 %v19, %v24
    %v30 = vsub.f32 %v20, %v27
    %v31 = vsub.f32 %v21, %v27
    %v32 = vmul.f32 %v28, 1.442695
    %v33 = vpow.pop %v32
    %v34 = vmul.f32 %v29, 1.442695
    %v35 = vpow.pop %v34
    %v36 = vmul.f32 %v30, 1.442695
    %v37 = vpow.pop %v36
    %v38 = vmul.f32 %v31, 1.442695
    %v39 = vpow.pop %v38
    %v40 = vadd.f32 %v33, %v35
    %41 = vadd.xlane.f32.xlu0 %v40
    %v42 = vpop.xlane.xlu0 %41
    %v43 = vadd.f32 %v37, %v39
    %44 = vadd.xlane.f32.xlu0 %v43
    %v45 = vpop.xlane.xlu0 %44
    %v46 = vlog2.pop %v42
    %v47 = vmul.f32 %v46, 0.6931472
    %v48 = vlog2.pop %v45
    %v49 = vmul.f32 %v48, 0.6931472
    %v50 = vadd.f32 %v47, %v24
    %v51 = vadd.f32 %v49, %v27
    %v52 = vlaneseq
    %v53 = vand.u32 %v52, 127
    %v54 = vadd.s32 %v53, 128
    %v55 = vld [vmem:[%s1] sm:$0xff]
    %v56 = vld [vmem:[%s1 + $0x8] sm:$0xff]
    %57 = vset.pattern.permute.xlu0 0
    %58 = vperm.xlu0 %57, %v55
    %v59 = vpop.permute.xlu0 %58
    %60 = vset.pattern.permute.xlu0 0
    %61 = vperm.xlu0 %60, %v56
    %v62 = vpop.permute.xlu0 %61
    %vm63 = vcmp.eq.s32.totalorder %v53, %v59
    %vm64 = vcmp.eq.s32.totalorder %v54, %v59
    %vm65 = vcmp.eq.s32.totalorder %v53, %v62
    %vm66 = vcmp.eq.s32.totalorder %v54, %v62
    %v67 = vsel %vm63, %v18, 0.0
    %v68 = vsel %vm64, %v19, 0.0
    %v69 = vsel %vm65, %v20, 0.0
    %v70 = vsel %vm66, %v21, 0.0
    %v71 = vadd.f32 %v67, %v68
    %72 = vadd.xlane.f32.xlu0 %v71
    %v73 = vpop.xlane.xlu0 %72
    %v74 = vadd.f32 %v69, %v70
    %75 = vadd.xlane.f32.xlu0 %v74
    %v76 = vpop.xlane.xlu0 %75
    %v77 = vld [vmem:[#allocation2] sm:$0x1]
    %v78 = vsub.f32 %v50, %v73
    %v79 = vsub.f32 %v51, %v76
    %vm80 = vcmask 7168
    %v81 = vsel %vm80, %v78, 0.0
    %v82 = vsel %vm80, %v79, 0.0
    %v83 = vadd.f32 %v81, %v82
    %84 = vadd.xlane.f32.xlu0 %v83
    %v85 = vpop.xlane.xlu0 %84
    %v86 = vrot.slane %v85, 4
    %v87 = vadd.f32 %v85, %v86
    %v88 = vrot.slane %v87, 2
    %v89 = vadd.f32 %v87, %v88
    %v90 = vrot.slane %v89, 1
    %v91 = vadd.f32 %v89, %v90
    %s92 = vtos %v91
    %v93 = vstv %s92
    %v94 = vadd.f32 %v77, %v93
    %vm95 = vcmask 0
    %96 = vst.msk [vmem:[#allocation2] sm:$0x1] %vm95, %v94
    // Predicated region
    $region14: #{deepseek_forward.29} parent=1 // pred_check
      %p97 = pneg %p12
    $region15: #{deepseek_forward.29} parent=1 // pred_check_branch
      %99 = sbr.rel (%p97) target = $region17
    $region16: #{deepseek_forward.29} parent=1 // pred_region
      %v100 = vld [vmem:[#allocation2] sm:$0x1]
      %v101 = vrcp.pop 16.0
      %v102 = vmul.f32 %v100, %v101
      %103 = vst.msk [vmem:[#allocation3] sm:$0x1] %vm95, %v102
    $region17: #{deepseek_forward.29} parent=1 // pred_fallthru
      _
    // Predicated region
    $region18: #{deepseek_forward.29} parent=1 // pred_check
      _
    $region19: #{deepseek_forward.29} parent=1 // pred_check_branch
      %105 = sbr.rel (0) target = $region21
    $region20: #{deepseek_forward.29} parent=1 // pred_region
      %s107 = ssub.s32 16, 16
      %108 = vsyncadd [#allocation4], %s107
      %s110 = sshll.u32 [#allocation3], 4
      %s111 = int_to_ptr.vmem [resolvable:$true] %s110
      %113 = dma.vmem_to_hbm [thread:$0]  %s111, 16, %s2, [#allocation4]
    $region21: #{deepseek_forward.29} parent=1 // pred_fallthru
      _
    // Predicated region
    $region22: #{deepseek_forward.29} parent=1 // pred_check
      _
    $region23: #{deepseek_forward.29} parent=1 // pred_check_branch
      %115 = sbr.rel (0) target = $region25
    $region24: #{deepseek_forward.29} parent=1 // pred_region
      %116 = dma.done [#allocation4], 16
    $region25: #{deepseek_forward.29} parent=1 // pred_fallthru
      _
    %117 = vsyncpa [#allocation4], 1

</llo_original>
